<compile_context>
chip_gen: v6e
topology: v6e:2x2x1
jax: 0.10.0
libtpu: 0.0.40
codegen_flags: <defaults>
</compile_context>

<pallas_src>
import functools
import math

import jax
import jax.numpy as jnp
from jax.experimental import pallas as pl
from jax.experimental.pallas import tpu as pltpu


# ------------------------------- helpers ----------------------------------- #

def _choose_tq(T):
    for cand in (256, 128):
        if T % cand == 0 and T > cand:
            return cand
    return T


def _const_spec(shape):
    """BlockSpec for a block whose index never changes (weights): no double buffer."""
    zeros = (0,) * len(shape)
    try:
        return pl.BlockSpec(shape, lambda *_: zeros, pipeline_mode=pl.Buffered(1))
    except TypeError:  # older jax without pipeline_mode kwarg
        return pl.BlockSpec(shape, lambda *_: zeros)


def _vmem_budget(est_bytes):
    """Scoped-VMEM request capped by the physical per-core VMEM of this chip."""
    try:
        cap = int(pltpu.get_tpu_info().vmem_capacity_bytes)
    except Exception:
        cap = 64 * 1024 * 1024  # conservative default (v7x per-TensorCore VMEM)
    cap = int(cap * 0.9)        # leave headroom for Mosaic internal scratch
    return int(min(cap, max(32 * 1024 * 1024, int(est_bytes))))


# ----------------------------- Pallas kernels ------------------------------ #

def qkv_project_kernel(x_ref, wqkv_ref, bqkv_ref, q_ref, k_ref, v_ref, *, d_model):
    """Fused QKV projection for one (batch, row-tile) grid step."""
    D = d_model
    x = x_ref[0].astype(jnp.bfloat16)                                  # (tp, D)
    qkv = jnp.dot(x, wqkv_ref[...],
                  preferred_element_type=jnp.float32) + bqkv_ref[...]  # (tp, 3D) f32
    qkv = qkv.astype(jnp.bfloat16)
    q_ref[0] = qkv[:, :D]
    k_ref[0] = qkv[:, D:2 * D]
    v_ref[0] = qkv[:, 2 * D:]


def attn_ffn_kernel(x_ref, q_ref, k_ref, v_ref, wo_ref, bo_ref, g1_ref, b1_ref,
                    w1_ref, bf1_ref, w2_ref, bf2_ref, g2_ref, b2_ref,
                    o_ref, ctx_scr, *, nhead):
    """Attention + out-proj + LN1 + FFN + LN2 for one (batch, q-tile) grid step."""
    D = x_ref.shape[2]
    hd = D // nhead

    x = x_ref[0]                       # (tq, D) f32 residual rows
    q = q_ref[0]                       # (tq, D) bf16 (1/sqrt(hd) pre-folded)
    k = k_ref[0]                       # (T,  D) bf16
    v = v_ref[0]                       # (T,  D) bf16

    # Per-head scaled-dot-product attention; contexts land in a contiguous
    # (tq, D) buffer so the out-projection is ONE full-width MXU matmul.
    # TODO(synk): pad hd to 128 / pair heads + lax.fori_loop for the real
    # nhead=8, hd=192 config on v6e/v7x.
    for h in range(nhead):
        lo, hi = h * hd, (h + 1) * hd
        s = jax.lax.dot_general(q[:, lo:hi], k[:, lo:hi],
                                (((1,), (1,)), ((), ())),
                                preferred_element_type=jnp.float32)    # (tq, T)
        s = s - jnp.max(s, axis=-1, keepdims=True)
        p = jnp.exp(s)
        p = p * pl.reciprocal(jnp.sum(p, axis=-1, keepdims=True), approx=True)
        ctx = jnp.dot(p.astype(jnp.bfloat16), v[:, lo:hi],
                      preferred_element_type=jnp.float32)              # (tq, hd)
        ctx_scr[:, lo:hi] = ctx.astype(jnp.bfloat16)

    # Single fused out-projection (K = D contraction).
    attn = jnp.dot(ctx_scr[...], wo_ref[...],
                   preferred_element_type=jnp.float32) + bo_ref[...]

    # residual + LayerNorm1 (f32)
    x1 = x + attn
    mu = jnp.mean(x1, axis=-1, keepdims=True)
    var = jnp.mean((x1 - mu) ** 2, axis=-1, keepdims=True)
    x1 = (x1 - mu) * jax.lax.rsqrt(var + 1e-5) * g1_ref[...] + b1_ref[...]

    # FFN: Linear -> ReLU -> Linear (bf16 operands, f32 accumulation)
    h1 = jnp.dot(x1.astype(jnp.bfloat16), w1_ref[...],
                 preferred_element_type=jnp.float32) + bf1_ref[...]
    h1 = jnp.maximum(h1, 0.0).astype(jnp.bfloat16)
    ff = jnp.dot(h1, w2_ref[...],
                 preferred_element_type=jnp.float32) + bf2_ref[...]

    # residual + LayerNorm2 (f32)
    x2 = x1 + ff
    mu2 = jnp.mean(x2, axis=-1, keepdims=True)
    var2 = jnp.mean((x2 - mu2) ** 2, axis=-1, keepdims=True)
    o_ref[0] = (x2 - mu2) * jax.lax.rsqrt(var2 + 1e-5) * g2_ref[...] + b2_ref[...]


# ------------------------------ host wrappers ------------------------------ #

def _prep_layer(p, nhead):
    """Pack / pre-transpose weights; fold 1/sqrt(hd) into the Q columns."""
    D = p["wq"].shape[0]
    hd = D // nhead
    scale = 1.0 / math.sqrt(hd)
    wqkv = jnp.concatenate([p["wq"] * scale, p["wk"], p["wv"]], axis=0).T  # (D, 3D)
    bqkv = jnp.concatenate([p["bq"] * scale, p["bk"], p["bv"]], axis=1)    # (1, 3D)
    return dict(
        wqkv=wqkv.astype(jnp.bfloat16),
        bqkv=bqkv.astype(jnp.float32),
        wo=p["wo"].T.astype(jnp.bfloat16),           # (D, D)
        bo=p["bo"].astype(jnp.float32),
        g1=p["g1"].astype(jnp.float32), b1=p["b1"].astype(jnp.float32),
        w1=p["w1"].T.astype(jnp.bfloat16),           # (D, 4D)
        bf1=p["bf1"].astype(jnp.float32),
        w2=p["w2"].T.astype(jnp.bfloat16),           # (4D, D)
        bf2=p["bf2"].astype(jnp.float32),
        g2=p["g2"].astype(jnp.float32), b2=p["b2"].astype(jnp.float32),
    )


def qkv_project(xt, lw, *, tq):
    """xt: (B, T, D) f32 -> q, k, v each (B, T, D) bf16 (scale folded into q)."""
    B, T, D = xt.shape
    nq = T // tq
    wqkv, bqkv = lw["wqkv"], lw["bqkv"]

    est = (int(wqkv.size) * 2 + int(bqkv.size) * 4
           + 2 * tq * D * 4 + 3 * 2 * tq * D * 2 + (8 << 20))
    flops = 6 * B * T * D * D
    bytes_accessed = B * T * D * 4 + int(wqkv.size) * 2 + 3 * B * T * D * 2

    out_sds = jax.ShapeDtypeStruct((B, T, D), jnp.bfloat16)
    out_spec = pl.BlockSpec((1, tq, D), lambda b, i: (b, i, 0))
    return pl.pallas_call(
        functools.partial(qkv_project_kernel, d_model=D),
        out_shape=(out_sds, out_sds, out_sds),
        grid=(B, nq),
        in_specs=[pl.BlockSpec((1, tq, D), lambda b, i: (b, i, 0)),
                  _const_spec(wqkv.shape),
                  _const_spec(bqkv.shape)],
        out_specs=(out_spec, out_spec, out_spec),
        compiler_params=pltpu.CompilerParams(
            dimension_semantics=("parallel", "parallel"),
            vmem_limit_bytes=_vmem_budget(est)),
        cost_estimate=pl.CostEstimate(flops=int(flops), transcendentals=0,
                                      bytes_accessed=int(bytes_accessed)),
    )(xt, wqkv, bqkv)


def attn_ffn(xt, q, k, v, lw, *, nhead, tq):
    """xt residual (B,T,D) f32; q/k/v (B,T,D) bf16 -> layer output (B,T,D) f32."""
    B, T, D = xt.shape
    nq = T // tq
    weights = [lw["wo"], lw["bo"], lw["g1"], lw["b1"], lw["w1"], lw["bf1"],
               lw["w2"], lw["bf2"], lw["g2"], lw["b2"]]

    in_specs = [pl.BlockSpec((1, tq, D), lambda b, i: (b, i, 0)),   # residual rows
                pl.BlockSpec((1, tq, D), lambda b, i: (b, i, 0)),   # q tile
                pl.BlockSpec((1, T, D), lambda b, i: (b, 0, 0)),    # full K slab
                pl.BlockSpec((1, T, D), lambda b, i: (b, 0, 0))]    # full V slab
    in_specs += [_const_spec(w.shape) for w in weights]

    wbytes = sum(int(w.size) * w.dtype.itemsize for w in weights)   # single-buffered
    est = (wbytes
           + 2 * (tq * D * 4 + tq * D * 2 + tq * D * 4)             # x, q, out (x2)
           + 2 * 2 * T * D * 2                                      # K, V (x2)
           + tq * T * 4 + tq * 4 * D * 4 + tq * D * 2               # scores, h1, ctx
           + (8 << 20))
    flops = 4 * B * T * T * D + 18 * B * T * D * D
    transcendentals = B * T * T + 4 * B * T
    bytes_accessed = wbytes + B * T * D * (4 + 3 * 2 + 4)

    return pl.pallas_call(
        functools.partial(attn_ffn_kernel, nhead=nhead),
        out_shape=jax.ShapeDtypeStruct((B, T, D), jnp.float32),
        grid=(B, nq),
        in_specs=in_specs,
        out_specs=pl.BlockSpec((1, tq, D), lambda b, i: (b, i, 0)),
        scratch_shapes=[pltpu.VMEM((tq, D), jnp.bfloat16)],          # ctx buffer
        compiler_params=pltpu.CompilerParams(
            dimension_semantics=("parallel", "parallel"),
            vmem_limit_bytes=_vmem_budget(est)),
        cost_estimate=pl.CostEstimate(flops=int(flops),
                                      transcendentals=int(transcendentals),
                                      bytes_accessed=int(bytes_accessed)),
    )(xt, q, k, v, *weights)


def encoder_layer(xt, lw, *, nhead, tq):
    q, k, v = qkv_project(xt, lw, tq=tq)
    return attn_ffn(xt, q, k, v, lw, nhead=nhead, tq=tq)


def transformer_block_forward(x_bct, params, nhead):
    """Pallas implementation of TransformerBlock.forward.  x_bct: (B, d_model, T)."""
    B, D, T = x_bct.shape
    pos = params["pos"][:, :, :T]                                   # (1, D, T)
    # BCT -> BTD once in XLA, fused with the positional-embedding add.
    xt = jnp.transpose(x_bct, (0, 2, 1)) + jnp.transpose(pos, (0, 2, 1))
    tq = _choose_tq(T)
    h = xt
    for p in params["layers"]:
        lw = _prep_layer(p, nhead)
        h = encoder_layer(h, lw, nhead=nhead, tq=tq)
    return jnp.transpose(h, (0, 2, 1))                              # (B, D, T)


# ------------------------- pure-JAX reference check ------------------------ #

def _ln(x, g, b):
    mu = jnp.mean(x, axis=-1, keepdims=True)
    var = jnp.mean((x - mu) ** 2, axis=-1, keepdims=True)
    return (x - mu) * jax.lax.rsqrt(var + 1e-5) * g + b


def reference_forward(x_bct, params, nhead):
    B, D, T = x_bct.shape
    hd = D // nhead
    x = jnp.transpose(x_bct, (0, 2, 1)) + jnp.transpose(params["pos"][:, :, :T], (0, 2, 1))
    for p in params["layers"]:
        q = x @ p["wq"].T + p["bq"]
        k = x @ p["wk"].T + p["bk"]
        v = x @ p["wv"].T + p["bv"]
        qh = q.reshape(B, T, nhead, hd).transpose(0, 2, 1, 3)
        kh = k.reshape(B, T, nhead, hd).transpose(0, 2, 1, 3)
        vh = v.reshape(B, T, nhead, hd).transpose(0, 2, 1, 3)
        s = jnp.einsum("bhqd,bhkd->bhqk", qh, kh) / math.sqrt(hd)
        a = jax.nn.softmax(s, axis=-1)
        o = jnp.einsum("bhqk,bhkd->bhqd", a, vh).transpose(0, 2, 1, 3).reshape(B, T, D)
        o = o @ p["wo"].T + p["bo"]
        x = _ln(x + o, p["g1"], p["b1"])
        f = jnp.maximum(x @ p["w1"].T + p["bf1"], 0.0) @ p["w2"].T + p["bf2"]
        x = _ln(x + f, p["g2"], p["b2"])
    return jnp.transpose(x, (0, 2, 1))


# ------------------------------ params / main ------------------------------ #

def init_params(key, d_model, nhead, num_layers, max_len):
    keys = jax.random.split(key, 1 + num_layers)
    params = {"pos": jax.random.normal(keys[0], (1, d_model, max_len), jnp.float32)}
    layers = []
    s = 0.05
    D, F = d_model, 4 * d_model
    for li in range(num_layers):
        k = jax.random.split(keys[1 + li], 11)
        layers.append(dict(
            wq=jax.random.normal(k[0], (D, D), jnp.float32) * s,
            bq=jax.random.normal(k[1], (1, D), jnp.float32) * s,
            wk=jax.random.normal(k[2], (D, D), jnp.float32) * s,
            bk=jax.random.normal(k[3], (1, D), jnp.float32) * s,
            wv=jax.random.normal(k[4], (D, D), jnp.float32) * s,
            bv=jax.random.normal(k[5], (1, D), jnp.float32) * s,
            wo=jax.random.normal(k[6], (D, D), jnp.float32) * s,
            bo=jax.random.normal(k[7], (1, D), jnp.float32) * s,
            g1=jnp.ones((1, D), jnp.float32),
            b1=jnp.zeros((1, D), jnp.float32),
            w1=jax.random.normal(k[8], (F, D), jnp.float32) * s,
            bf1=jax.random.normal(k[9], (1, F), jnp.float32) * s,
            w2=jax.random.normal(k[10], (D, F), jnp.float32) * s,
            bf2=jnp.zeros((1, D), jnp.float32),
            g2=jnp.ones((1, D), jnp.float32),
            b2=jnp.zeros((1, D), jnp.float32),
        ))
    params["layers"] = layers
    return params


if __name__ == "__main__":
    # Small shapes consistent with the module (d_model plays the role of 1536).
    B, D_MODEL, T = 2, 32, 8
    NHEAD, NUM_LAYERS, MAX_LEN = 4, 2, 64

    key = jax.random.PRNGKey(0)
    kx, kp = jax.random.split(key)
    params = init_params(kp, D_MODEL, NHEAD, NUM_LAYERS, MAX_LEN)
    x = jax.random.normal(kx, (B, D_MODEL, T), jnp.float32)   # (B, C, T) like PyTorch

    fwd = jax.jit(lambda xx, pp: transformer_block_forward(xx, pp, NHEAD))
    out = jax.block_until_ready(fwd(x, params))

    ref = jax.block_until_ready(reference_forward(x, params, NHEAD))
    assert out.shape == (B, D_MODEL, T)
    # bf16 matmul operands + approximate reciprocal -> relaxed tolerance vs f32 ref
    max_diff = float(jnp.max(jnp.abs(out - ref)))
    assert jnp.allclose(out, ref, atol=2e-2, rtol=2e-2), max_diff

    print("KERNEL_OK")
</pallas_src>

<mosaic_0001>
module attributes {stable_mosaic.version = 11 : i64} {
  func.func @qkv_project_kernel(%arg0: i32, %arg1: i32, %arg2: memref<1x8x32xf32, #tpu.memory_space<vmem>>, %arg3: memref<32x96xbf16, #tpu.memory_space<vmem>>, %arg4: memref<1x96xf32, #tpu.memory_space<vmem>>, %arg5: memref<1x8x32xbf16, #tpu.memory_space<vmem>>, %arg6: memref<1x8x32xbf16, #tpu.memory_space<vmem>>, %arg7: memref<1x8x32xbf16, #tpu.memory_space<vmem>>) attributes {dimension_semantics = [#tpu.dimension_semantics<parallel>, #tpu.dimension_semantics<parallel>], iteration_bounds = array<i64: 2, 1>, scalar_prefetch = 0 : i64, scratch_operands = 0 : i64, tpu.core_type = #tpu.core_type<tc>, window_params = [{transform_indices = @transform_0, window_bounds = array<i64: 1, 8, 32>}, {pipeline_mode = #tpu.pipeline_mode<synchronous>, transform_indices = @transform_1, window_bounds = array<i64: 32, 96>}, {pipeline_mode = #tpu.pipeline_mode<synchronous>, transform_indices = @transform_2, window_bounds = array<i64: 1, 96>}, {transform_indices = @transform_3, window_bounds = array<i64: 1, 8, 32>}, {transform_indices = @transform_4, window_bounds = array<i64: 1, 8, 32>}, {transform_indices = @transform_5, window_bounds = array<i64: 1, 8, 32>}]} {
    %c0 = arith.constant 0 : index
    %c0_0 = arith.constant 0 : index
    %c0_1 = arith.constant 0 : index
    %0 = vector.load %arg2[%c0, %c0_0, %c0_1] : memref<1x8x32xf32, #tpu.memory_space<vmem>>, vector<1x8x32xf32>
    %1 = vector.shape_cast %0 : vector<1x8x32xf32> to vector<8x32xf32>
    %2 = arith.truncf %1 : vector<8x32xf32> to vector<8x32xbf16>
    %c0_2 = arith.constant 0 : index
    %c0_3 = arith.constant 0 : index
    %3 = vector.load %arg3[%c0_2, %c0_3] : memref<32x96xbf16, #tpu.memory_space<vmem>>, vector<32x96xbf16>
    %cst = arith.constant dense<0.000000e+00> : vector<8x96xf32>
    %4 = tpu.matmul %2, %3, %cst {dimension_numbers = #tpu.dot_dimension_numbers<[1], [0], [0], [1], [0, 0, 1, 1], [], []>} : vector<8x32xbf16>, vector<32x96xbf16>, vector<8x96xf32> -> vector<8x96xf32>
    %c0_4 = arith.constant 0 : index
    %c0_5 = arith.constant 0 : index
    %5 = vector.load %arg4[%c0_4, %c0_5] : memref<1x96xf32, #tpu.memory_space<vmem>>, vector<1x96xf32>
    %6 = vector.broadcast %5 : vector<1x96xf32> to vector<8x96xf32>
    %7 = arith.addf %4, %6 : vector<8x96xf32>
    %8 = arith.truncf %7 : vector<8x96xf32> to vector<8x96xbf16>
    %9 = vector.extract_strided_slice %8 {offsets = [0, 0], sizes = [8, 32], strides = [1, 1]} : vector<8x96xbf16> to vector<8x32xbf16>
    %c0_6 = arith.constant 0 : index
    %c0_7 = arith.constant 0 : index
    %c0_8 = arith.constant 0 : index
    %10 = vector.load %arg5[%c0_6, %c0_7, %c0_8] : memref<1x8x32xbf16, #tpu.memory_space<vmem>>, vector<1x8x32xbf16>
    %11 = vector.shape_cast %10 : vector<1x8x32xbf16> to vector<8x32xbf16>
    %12 = vector.shape_cast %9 : vector<8x32xbf16> to vector<1x8x32xbf16>
    tpu.vector_store %arg5[%c0_6, %c0_7, %c0_8], %12 {strides = array<i32>} : memref<1x8x32xbf16, #tpu.memory_space<vmem>>, vector<1x8x32xbf16>,
    %13 = vector.extract_strided_slice %8 {offsets = [0, 32], sizes = [8, 32], strides = [1, 1]} : vector<8x96xbf16> to vector<8x32xbf16>
    %c0_9 = arith.constant 0 : index
    %c0_10 = arith.constant 0 : index
    %c0_11 = arith.constant 0 : index
    %14 = vector.load %arg6[%c0_9, %c0_10, %c0_11] : memref<1x8x32xbf16, #tpu.memory_space<vmem>>, vector<1x8x32xbf16>
    %15 = vector.shape_cast %14 : vector<1x8x32xbf16> to vector<8x32xbf16>
    %16 = vector.shape_cast %13 : vector<8x32xbf16> to vector<1x8x32xbf16>
    tpu.vector_store %arg6[%c0_9, %c0_10, %c0_11], %16 {strides = array<i32>} : memref<1x8x32xbf16, #tpu.memory_space<vmem>>, vector<1x8x32xbf16>,
    %17 = vector.extract_strided_slice %8 {offsets = [0, 64], sizes = [8, 32], strides = [1, 1]} : vector<8x96xbf16> to vector<8x32xbf16>
    %c0_12 = arith.constant 0 : index
    %c0_13 = arith.constant 0 : index
    %c0_14 = arith.constant 0 : index
    %18 = vector.load %arg7[%c0_12, %c0_13, %c0_14] : memref<1x8x32xbf16, #tpu.memory_space<vmem>>, vector<1x8x32xbf16>
    %19 = vector.shape_cast %18 : vector<1x8x32xbf16> to vector<8x32xbf16>
    %20 = vector.shape_cast %17 : vector<8x32xbf16> to vector<1x8x32xbf16>
    tpu.vector_store %arg7[%c0_12, %c0_13, %c0_14], %20 {strides = array<i32>} : memref<1x8x32xbf16, #tpu.memory_space<vmem>>, vector<1x8x32xbf16>,
    return
  }
  func.func @transform_0(%arg0: i32, %arg1: i32) -> (i32, i32, i32) {
    %c0_i32 = arith.constant 0 : i32
    %c0_i32_0 = arith.constant 0 : i32
    return %arg0, %arg1, %c0_i32 : i32, i32, i32
  }
  func.func @transform_1(%arg0: i32, %arg1: i32) -> (i32, i32) {
    %c0_i32 = arith.constant 0 : i32
    %c0_i32_0 = arith.constant 0 : i32
    %c0_i32_1 = arith.constant 0 : i32
    return %c0_i32, %c0_i32_0 : i32, i32
  }
  func.func @transform_2(%arg0: i32, %arg1: i32) -> (i32, i32) {
    %c0_i32 = arith.constant 0 : i32
    %c0_i32_0 = arith.constant 0 : i32
    %c0_i32_1 = arith.constant 0 : i32
    return %c0_i32, %c0_i32_0 : i32, i32
  }
  func.func @transform_3(%arg0: i32, %arg1: i32) -> (i32, i32, i32) {
    %c0_i32 = arith.constant 0 : i32
    %c0_i32_0 = arith.constant 0 : i32
    return %arg0, %arg1, %c0_i32 : i32, i32, i32
  }
  func.func @transform_4(%arg0: i32, %arg1: i32) -> (i32, i32, i32) {
    %c0_i32 = arith.constant 0 : i32
    %c0_i32_0 = arith.constant 0 : i32
    return %arg0, %arg1, %c0_i32 : i32, i32, i32
  }
  func.func @transform_5(%arg0: i32, %arg1: i32) -> (i32, i32, i32) {
    %c0_i32 = arith.constant 0 : i32
    %c0_i32_0 = arith.constant 0 : i32
    return %arg0, %arg1, %c0_i32 : i32, i32, i32
  }
}

module attributes {stable_mosaic.version = 11 : i64} {
  func.func @attn_ffn_kernel(%arg0: i32, %arg1: i32, %arg2: memref<1x8x32xf32, #tpu.memory_space<vmem>>, %arg3: memref<1x8x32xbf16, #tpu.memory_space<vmem>>, %arg4: memref<1x8x32xbf16, #tpu.memory_space<vmem>>, %arg5: memref<1x8x32xbf16, #tpu.memory_space<vmem>>, %arg6: memref<32x32xbf16, #tpu.memory_space<vmem>>, %arg7: memref<1x32xf32, #tpu.memory_space<vmem>>, %arg8: memref<1x32xf32, #tpu.memory_space<vmem>>, %arg9: memref<1x32xf32, #tpu.memory_space<vmem>>, %arg10: memref<32x128xbf16, #tpu.memory_space<vmem>>, %arg11: memref<1x128xf32, #tpu.memory_space<vmem>>, %arg12: memref<128x32xbf16, #tpu.memory_space<vmem>>, %arg13: memref<1x32xf32, #tpu.memory_space<vmem>>, %arg14: memref<1x32xf32, #tpu.memory_space<vmem>>, %arg15: memref<1x32xf32, #tpu.memory_space<vmem>>, %arg16: memref<1x8x32xf32, #tpu.memory_space<vmem>>, %arg17: memref<8x32xbf16, #tpu.memory_space<vmem>>) attributes {dimension_semantics = [#tpu.dimension_semantics<parallel>, #tpu.dimension_semantics<parallel>], iteration_bounds = array<i64: 2, 1>, scalar_prefetch = 0 : i64, scratch_operands = 1 : i64, tpu.core_type = #tpu.core_type<tc>, window_params = [{transform_indices = @transform_0, window_bounds = array<i64: 1, 8, 32>}, {transform_indices = @transform_1, window_bounds = array<i64: 1, 8, 32>}, {transform_indices = @transform_2, window_bounds = array<i64: 1, 8, 32>}, {transform_indices = @transform_3, window_bounds = array<i64: 1, 8, 32>}, {pipeline_mode = #tpu.pipeline_mode<synchronous>, transform_indices = @transform_4, window_bounds = array<i64: 32, 32>}, {pipeline_mode = #tpu.pipeline_mode<synchronous>, transform_indices = @transform_5, window_bounds = array<i64: 1, 32>}, {pipeline_mode = #tpu.pipeline_mode<synchronous>, transform_indices = @transform_6, window_bounds = array<i64: 1, 32>}, {pipeline_mode = #tpu.pipeline_mode<synchronous>, transform_indices = @transform_7, window_bounds = array<i64: 1, 32>}, {pipeline_mode = #tpu.pipeline_mode<synchronous>, transform_indices = @transform_8, window_bounds = array<i64: 32, 128>}, {pipeline_mode = #tpu.pipeline_mode<synchronous>, transform_indices = @transform_9, window_bounds = array<i64: 1, 128>}, {pipeline_mode = #tpu.pipeline_mode<synchronous>, transform_indices = @transform_10, window_bounds = array<i64: 128, 32>}, {pipeline_mode = #tpu.pipeline_mode<synchronous>, transform_indices = @transform_11, window_bounds = array<i64: 1, 32>}, {pipeline_mode = #tpu.pipeline_mode<synchronous>, transform_indices = @transform_12, window_bounds = array<i64: 1, 32>}, {pipeline_mode = #tpu.pipeline_mode<synchronous>, transform_indices = @transform_13, window_bounds = array<i64: 1, 32>}, {transform_indices = @transform_14, window_bounds = array<i64: 1, 8, 32>}]} {
    %c0 = arith.constant 0 : index
    %c0_0 = arith.constant 0 : index
    %c0_1 = arith.constant 0 : index
    %0 = vector.load %arg2[%c0, %c0_0, %c0_1] : memref<1x8x32xf32, #tpu.memory_space<vmem>>, vector<1x8x32xf32>
    %1 = vector.shape_cast %0 : vector<1x8x32xf32> to vector<8x32xf32>
    %c0_2 = arith.constant 0 : index
    %c0_3 = arith.constant 0 : index
    %c0_4 = arith.constant 0 : index
    %2 = vector.load %arg3[%c0_2, %c0_3, %c0_4] : memref<1x8x32xbf16, #tpu.memory_space<vmem>>, vector<1x8x32xbf16>
    %3 = vector.shape_cast %2 : vector<1x8x32xbf16> to vector<8x32xbf16>
    %c0_5 = arith.constant 0 : index
    %c0_6 = arith.constant 0 : index
    %c0_7 = arith.constant 0 : index
    %4 = vector.load %arg4[%c0_5, %c0_6, %c0_7] : memref<1x8x32xbf16, #tpu.memory_space<vmem>>, vector<1x8x32xbf16>
    %5 = vector.shape_cast %4 : vector<1x8x32xbf16> to vector<8x32xbf16>
    %c0_8 = arith.constant 0 : index
    %c0_9 = arith.constant 0 : index
    %c0_10 = arith.constant 0 : index
    %6 = vector.load %arg5[%c0_8, %c0_9, %c0_10] : memref<1x8x32xbf16, #tpu.memory_space<vmem>>, vector<1x8x32xbf16>
    %7 = vector.shape_cast %6 : vector<1x8x32xbf16> to vector<8x32xbf16>
    %8 = vector.extract_strided_slice %3 {offsets = [0, 0], sizes = [8, 8], strides = [1, 1]} : vector<8x32xbf16> to vector<8x8xbf16>
    %9 = vector.extract_strided_slice %5 {offsets = [0, 0], sizes = [8, 8], strides = [1, 1]} : vector<8x32xbf16> to vector<8x8xbf16>
    %cst = arith.constant dense<0.000000e+00> : vector<8x8xf32>
    %10 = tpu.matmul %8, %9, %cst {dimension_numbers = #tpu.dot_dimension_numbers<[1], [1], [0], [0], [0, 0, 1, 0], [], []>} : vector<8x8xbf16>, vector<8x8xbf16>, vector<8x8xf32> -> vector<8x8xf32>
    %cst_11 = arith.constant dense<0xFF800000> : vector<8xf32>
    %11 = vector.multi_reduction <maximumf>, %10, %cst_11 [1] : vector<8x8xf32> to vector<8xf32>
    %12 = vector.shape_cast %11 : vector<8xf32> to vector<8x1xf32>
    %13 = vector.broadcast %12 : vector<8x1xf32> to vector<8x8xf32>
    %14 = arith.subf %10, %13 : vector<8x8xf32>
    %15 = math.exp %14 : vector<8x8xf32>
    %cst_12 = arith.constant dense<0.000000e+00> : vector<8xf32>
    %16 = vector.multi_reduction <add>, %15, %cst_12 [1] : vector<8x8xf32> to vector<8xf32>
    %17 = vector.shape_cast %16 : vector<8xf32> to vector<8x1xf32>
    %18 = tpu.reciprocal %17 {approx = true} : vector<8x1xf32> -> vector<8x1xf32>
    %19 = vector.broadcast %18 : vector<8x1xf32> to vector<8x8xf32>
    %20 = arith.mulf %15, %19 : vector<8x8xf32>
    %21 = arith.truncf %20 : vector<8x8xf32> to vector<8x8xbf16>
    %22 = vector.extract_strided_slice %7 {offsets = [0, 0], sizes = [8, 8], strides = [1, 1]} : vector<8x32xbf16> to vector<8x8xbf16>
    %cst_13 = arith.constant dense<0.000000e+00> : vector<8x8xf32>
    %23 = tpu.matmul %21, %22, %cst_13 {dimension_numbers = #tpu.dot_dimension_numbers<[1], [0], [0], [1], [0, 0, 1, 1], [], []>} : vector<8x8xbf16>, vector<8x8xbf16>, vector<8x8xf32> -> vector<8x8xf32>
    %24 = arith.truncf %23 : vector<8x8xf32> to vector<8x8xbf16>
    %c0_14 = arith.constant 0 : index
    %c0_15 = arith.constant 0 : index
    %25 = vector.load %arg17[%c0_14, %c0_15] : memref<8x32xbf16, #tpu.memory_space<vmem>>, vector<8x8xbf16>
    tpu.vector_store %arg17[%c0_14, %c0_15], %24 {strides = array<i32>} : memref<8x32xbf16, #tpu.memory_space<vmem>>, vector<8x8xbf16>,
    %26 = vector.extract_strided_slice %3 {offsets = [0, 8], sizes = [8, 8], strides = [1, 1]} : vector<8x32xbf16> to vector<8x8xbf16>
    %27 = vector.extract_strided_slice %5 {offsets = [0, 8], sizes = [8, 8], strides = [1, 1]} : vector<8x32xbf16> to vector<8x8xbf16>
    %cst_16 = arith.constant dense<0.000000e+00> : vector<8x8xf32>
    %28 = tpu.matmul %26, %27, %cst_16 {dimension_numbers = #tpu.dot_dimension_numbers<[1], [1], [0], [0], [0, 0, 1, 0], [], []>} : vector<8x8xbf16>, vector<8x8xbf16>, vector<8x8xf32> -> vector<8x8xf32>
    %cst_17 = arith.constant dense<0xFF800000> : vector<8xf32>
    %29 = vector.multi_reduction <maximumf>, %28, %cst_17 [1] : vector<8x8xf32> to vector<8xf32>
    %30 = vector.shape_cast %29 : vector<8xf32> to vector<8x1xf32>
    %31 = vector.broadcast %30 : vector<8x1xf32> to vector<8x8xf32>
    %32 = arith.subf %28, %31 : vector<8x8xf32>
    %33 = math.exp %32 : vector<8x8xf32>
    %cst_18 = arith.constant dense<0.000000e+00> : vector<8xf32>
    %34 = vector.multi_reduction <add>, %33, %cst_18 [1] : vector<8x8xf32> to vector<8xf32>
    %35 = vector.shape_cast %34 : vector<8xf32> to vector<8x1xf32>
    %36 = tpu.reciprocal %35 {approx = true} : vector<8x1xf32> -> vector<8x1xf32>
    %37 = vector.broadcast %36 : vector<8x1xf32> to vector<8x8xf32>
    %38 = arith.mulf %33, %37 : vector<8x8xf32>
    %39 = arith.truncf %38 : vector<8x8xf32> to vector<8x8xbf16>
    %40 = vector.extract_strided_slice %7 {offsets = [0, 8], sizes = [8, 8], strides = [1, 1]} : vector<8x32xbf16> to vector<8x8xbf16>
    %cst_19 = arith.constant dense<0.000000e+00> : vector<8x8xf32>
    %41 = tpu.matmul %39, %40, %cst_19 {dimension_numbers = #tpu.dot_dimension_numbers<[1], [0], [0], [1], [0, 0, 1, 1], [], []>} : vector<8x8xbf16>, vector<8x8xbf16>, vector<8x8xf32> -> vector<8x8xf32>
    %42 = arith.truncf %41 : vector<8x8xf32> to vector<8x8xbf16>
    %c0_20 = arith.constant 0 : index
    %c8 = arith.constant 8 : index
    %43 = vector.load %arg17[%c0_20, %c8] : memref<8x32xbf16, #tpu.memory_space<vmem>>, vector<8x8xbf16>
    tpu.vector_store %arg17[%c0_20, %c8], %42 {strides = array<i32>} : memref<8x32xbf16, #tpu.memory_space<vmem>>, vector<8x8xbf16>,
    %44 = vector.extract_strided_slice %3 {offsets = [0, 16], sizes = [8, 8], strides = [1, 1]} : vector<8x32xbf16> to vector<8x8xbf16>
    %45 = vector.extract_strided_slice %5 {offsets = [0, 16], sizes = [8, 8], strides = [1, 1]} : vector<8x32xbf16> to vector<8x8xbf16>
    %cst_21 = arith.constant dense<0.000000e+00> : vector<8x8xf32>
    %46 = tpu.matmul %44, %45, %cst_21 {dimension_numbers = #tpu.dot_dimension_numbers<[1], [1], [0], [0], [0, 0, 1, 0], [], []>} : vector<8x8xbf16>, vector<8x8xbf16>, vector<8x8xf32> -> vector<8x8xf32>
    %cst_22 = arith.constant dense<0xFF800000> : vector<8xf32>
    %47 = vector.multi_reduction <maximumf>, %46, %cst_22 [1] : vector<8x8xf32> to vector<8xf32>
    %48 = vector.shape_cast %47 : vector<8xf32> to vector<8x1xf32>
    %49 = vector.broadcast %48 : vector<8x1xf32> to vector<8x8xf32>
    %50 = arith.subf %46, %49 : vector<8x8xf32>
    %51 = math.exp %50 : vector<8x8xf32>
    %cst_23 = arith.constant dense<0.000000e+00> : vector<8xf32>
    %52 = vector.multi_reduction <add>, %51, %cst_23 [1] : vector<8x8xf32> to vector<8xf32>
    %53 = vector.shape_cast %52 : vector<8xf32> to vector<8x1xf32>
    %54 = tpu.reciprocal %53 {approx = true} : vector<8x1xf32> -> vector<8x1xf32>
    %55 = vector.broadcast %54 : vector<8x1xf32> to vector<8x8xf32>
    %56 = arith.mulf %51, %55 : vector<8x8xf32>
    %57 = arith.truncf %56 : vector<8x8xf32> to vector<8x8xbf16>
    %58 = vector.extract_strided_slice %7 {offsets = [0, 16], sizes = [8, 8], strides = [1, 1]} : vector<8x32xbf16> to vector<8x8xbf16>
    %cst_24 = arith.constant dense<0.000000e+00> : vector<8x8xf32>
    %59 = tpu.matmul %57, %58, %cst_24 {dimension_numbers = #tpu.dot_dimension_numbers<[1], [0], [0], [1], [0, 0, 1, 1], [], []>} : vector<8x8xbf16>, vector<8x8xbf16>, vector<8x8xf32> -> vector<8x8xf32>
    %60 = arith.truncf %59 : vector<8x8xf32> to vector<8x8xbf16>
    %c0_25 = arith.constant 0 : index
    %c16 = arith.constant 16 : index
    %61 = vector.load %arg17[%c0_25, %c16] : memref<8x32xbf16, #tpu.memory_space<vmem>>, vector<8x8xbf16>
    tpu.vector_store %arg17[%c0_25, %c16], %60 {strides = array<i32>} : memref<8x32xbf16, #tpu.memory_space<vmem>>, vector<8x8xbf16>,
    %62 = vector.extract_strided_slice %3 {offsets = [0, 24], sizes = [8, 8], strides = [1, 1]} : vector<8x32xbf16> to vector<8x8xbf16>
    %63 = vector.extract_strided_slice %5 {offsets = [0, 24], sizes = [8, 8], strides = [1, 1]} : vector<8x32xbf16> to vector<8x8xbf16>
    %cst_26 = arith.constant dense<0.000000e+00> : vector<8x8xf32>
    %64 = tpu.matmul %62, %63, %cst_26 {dimension_numbers = #tpu.dot_dimension_numbers<[1], [1], [0], [0], [0, 0, 1, 0], [], []>} : vector<8x8xbf16>, vector<8x8xbf16>, vector<8x8xf32> -> vector<8x8xf32>
    %cst_27 = arith.constant dense<0xFF800000> : vector<8xf32>
    %65 = vector.multi_reduction <maximumf>, %64, %cst_27 [1] : vector<8x8xf32> to vector<8xf32>
    %66 = vector.shape_cast %65 : vector<8xf32> to vector<8x1xf32>
    %67 = vector.broadcast %66 : vector<8x1xf32> to vector<8x8xf32>
    %68 = arith.subf %64, %67 : vector<8x8xf32>
    %69 = math.exp %68 : vector<8x8xf32>
    %cst_28 = arith.constant dense<0.000000e+00> : vector<8xf32>
    %70 = vector.multi_reduction <add>, %69, %cst_28 [1] : vector<8x8xf32> to vector<8xf32>
    %71 = vector.shape_cast %70 : vector<8xf32> to vector<8x1xf32>
    %72 = tpu.reciprocal %71 {approx = true} : vector<8x1xf32> -> vector<8x1xf32>
    %73 = vector.broadcast %72 : vector<8x1xf32> to vector<8x8xf32>
    %74 = arith.mulf %69, %73 : vector<8x8xf32>
    %75 = arith.truncf %74 : vector<8x8xf32> to vector<8x8xbf16>
    %76 = vector.extract_strided_slice %7 {offsets = [0, 24], sizes = [8, 8], strides = [1, 1]} : vector<8x32xbf16> to vector<8x8xbf16>
    %cst_29 = arith.constant dense<0.000000e+00> : vector<8x8xf32>
    %77 = tpu.matmul %75, %76, %cst_29 {dimension_numbers = #tpu.dot_dimension_numbers<[1], [0], [0], [1], [0, 0, 1, 1], [], []>} : vector<8x8xbf16>, vector<8x8xbf16>, vector<8x8xf32> -> vector<8x8xf32>
    %78 = arith.truncf %77 : vector<8x8xf32> to vector<8x8xbf16>
    %c0_30 = arith.constant 0 : index
    %c24 = arith.constant 24 : index
    %79 = vector.load %arg17[%c0_30, %c24] : memref<8x32xbf16, #tpu.memory_space<vmem>>, vector<8x8xbf16>
    tpu.vector_store %arg17[%c0_30, %c24], %78 {strides = array<i32>} : memref<8x32xbf16, #tpu.memory_space<vmem>>, vector<8x8xbf16>,
    %c0_31 = arith.constant 0 : index
    %c0_32 = arith.constant 0 : index
    %80 = vector.load %arg17[%c0_31, %c0_32] : memref<8x32xbf16, #tpu.memory_space<vmem>>, vector<8x32xbf16>
    %c0_33 = arith.constant 0 : index
    %c0_34 = arith.constant 0 : index
    %81 = vector.load %arg6[%c0_33, %c0_34] : memref<32x32xbf16, #tpu.memory_space<vmem>>, vector<32x32xbf16>
    %cst_35 = arith.constant dense<0.000000e+00> : vector<8x32xf32>
    %82 = tpu.matmul %80, %81, %cst_35 {dimension_numbers = #tpu.dot_dimension_numbers<[1], [0], [0], [1], [0, 0, 1, 1], [], []>} : vector<8x32xbf16>, vector<32x32xbf16>, vector<8x32xf32> -> vector<8x32xf32>
    %c0_36 = arith.constant 0 : index
    %c0_37 = arith.constant 0 : index
    %83 = vector.load %arg7[%c0_36, %c0_37] : memref<1x32xf32, #tpu.memory_space<vmem>>, vector<1x32xf32>
    %84 = vector.broadcast %83 : vector<1x32xf32> to vector<8x32xf32>
    %85 = arith.addf %82, %84 : vector<8x32xf32>
    %86 = arith.addf %1, %85 : vector<8x32xf32>
    %cst_38 = arith.constant dense<0.000000e+00> : vector<8xf32>
    %87 = vector.multi_reduction <add>, %86, %cst_38 [1] : vector<8x32xf32> to vector<8xf32>
    %88 = vector.shape_cast %87 : vector<8xf32> to vector<8x1xf32>
    %cst_39 = arith.constant 3.200000e+01 : f32
    %89 = vector.broadcast %cst_39 : f32 to vector<8x1xf32>
    %90 = arith.divf %88, %89 : vector<8x1xf32>
    %91 = vector.broadcast %90 : vector<8x1xf32> to vector<8x32xf32>
    %92 = arith.subf %86, %91 : vector<8x32xf32>
    %93 = arith.mulf %92, %92 : vector<8x32xf32>
    %cst_40 = arith.constant dense<0.000000e+00> : vector<8xf32>
    %94 = vector.multi_reduction <add>, %93, %cst_40 [1] : vector<8x32xf32> to vector<8xf32>
    %95 = vector.shape_cast %94 : vector<8xf32> to vector<8x1xf32>
    %cst_41 = arith.constant 3.200000e+01 : f32
    %96 = vector.broadcast %cst_41 : f32 to vector<8x1xf32>
    %97 = arith.divf %95, %96 : vector<8x1xf32>
    %98 = vector.broadcast %90 : vector<8x1xf32> to vector<8x32xf32>
    %99 = arith.subf %86, %98 : vector<8x32xf32>
    %cst_42 = arith.constant 9.99999974E-6 : f32
    %100 = vector.broadcast %cst_42 : f32 to vector<8x1xf32>
    %101 = arith.addf %97, %100 : vector<8x1xf32>
    %102 = math.rsqrt %101 : vector<8x1xf32>
    %103 = vector.broadcast %102 : vector<8x1xf32> to vector<8x32xf32>
    %104 = arith.mulf %99, %103 : vector<8x32xf32>
    %c0_43 = arith.constant 0 : index
    %c0_44 = arith.constant 0 : index
    %105 = vector.load %arg8[%c0_43, %c0_44] : memref<1x32xf32, #tpu.memory_space<vmem>>, vector<1x32xf32>
    %106 = vector.broadcast %105 : vector<1x32xf32> to vector<8x32xf32>
    %107 = arith.mulf %104, %106 : vector<8x32xf32>
    %c0_45 = arith.constant 0 : index
    %c0_46 = arith.constant 0 : index
    %108 = vector.load %arg9[%c0_45, %c0_46] : memref<1x32xf32, #tpu.memory_space<vmem>>, vector<1x32xf32>
    %109 = vector.broadcast %108 : vector<1x32xf32> to vector<8x32xf32>
    %110 = arith.addf %107, %109 : vector<8x32xf32>
    %111 = arith.truncf %110 : vector<8x32xf32> to vector<8x32xbf16>
    %c0_47 = arith.constant 0 : index
    %c0_48 = arith.constant 0 : index
    %112 = vector.load %arg10[%c0_47, %c0_48] : memref<32x128xbf16, #tpu.memory_space<vmem>>, vector<32x128xbf16>
    %cst_49 = arith.constant dense<0.000000e+00> : vector<8x128xf32>
    %113 = tpu.matmul %111, %112, %cst_49 {dimension_numbers = #tpu.dot_dimension_numbers<[1], [0], [0], [1], [0, 0, 1, 1], [], []>} : vector<8x32xbf16>, vector<32x128xbf16>, vector<8x128xf32> -> vector<8x128xf32>
    %c0_50 = arith.constant 0 : index
    %c0_51 = arith.constant 0 : index
    %114 = vector.load %arg11[%c0_50, %c0_51] : memref<1x128xf32, #tpu.memory_space<vmem>>, vector<1x128xf32>
    %115 = vector.broadcast %114 : vector<1x128xf32> to vector<8x128xf32>
    %116 = arith.addf %113, %115 : vector<8x128xf32>
    %cst_52 = arith.constant 0.000000e+00 : f32
    %117 = vector.broadcast %cst_52 : f32 to vector<8x128xf32>
    %118 = arith.maximumf %116, %117 : vector<8x128xf32>
    %119 = arith.truncf %118 : vector<8x128xf32> to vector<8x128xbf16>
    %c0_53 = arith.constant 0 : index
    %c0_54 = arith.constant 0 : index
    %120 = vector.load %arg12[%c0_53, %c0_54] : memref<128x32xbf16, #tpu.memory_space<vmem>>, vector<128x32xbf16>
    %cst_55 = arith.constant dense<0.000000e+00> : vector<8x32xf32>
    %121 = tpu.matmul %119, %120, %cst_55 {dimension_numbers = #tpu.dot_dimension_numbers<[1], [0], [0], [1], [0, 0, 1, 1], [], []>} : vector<8x128xbf16>, vector<128x32xbf16>, vector<8x32xf32> -> vector<8x32xf32>
    %c0_56 = arith.constant 0 : index
    %c0_57 = arith.constant 0 : index
    %122 = vector.load %arg13[%c0_56, %c0_57] : memref<1x32xf32, #tpu.memory_space<vmem>>, vector<1x32xf32>
    %123 = vector.broadcast %122 : vector<1x32xf32> to vector<8x32xf32>
    %124 = arith.addf %121, %123 : vector<8x32xf32>
    %125 = arith.addf %110, %124 : vector<8x32xf32>
    %cst_58 = arith.constant dense<0.000000e+00> : vector<8xf32>
    %126 = vector.multi_reduction <add>, %125, %cst_58 [1] : vector<8x32xf32> to vector<8xf32>
    %127 = vector.shape_cast %126 : vector<8xf32> to vector<8x1xf32>
    %cst_59 = arith.constant 3.200000e+01 : f32
    %128 = vector.broadcast %cst_59 : f32 to vector<8x1xf32>
    %129 = arith.divf %127, %128 : vector<8x1xf32>
    %130 = vector.broadcast %129 : vector<8x1xf32> to vector<8x32xf32>
    %131 = arith.subf %125, %130 : vector<8x32xf32>
    %132 = arith.mulf %131, %131 : vector<8x32xf32>
    %cst_60 = arith.constant dense<0.000000e+00> : vector<8xf32>
    %133 = vector.multi_reduction <add>, %132, %cst_60 [1] : vector<8x32xf32> to vector<8xf32>
    %134 = vector.shape_cast %133 : vector<8xf32> to vector<8x1xf32>
    %cst_61 = arith.constant 3.200000e+01 : f32
    %135 = vector.broadcast %cst_61 : f32 to vector<8x1xf32>
    %136 = arith.divf %134, %135 : vector<8x1xf32>
    %137 = vector.broadcast %129 : vector<8x1xf32> to vector<8x32xf32>
    %138 = arith.subf %125, %137 : vector<8x32xf32>
    %cst_62 = arith.constant 9.99999974E-6 : f32
    %139 = vector.broadcast %cst_62 : f32 to vector<8x1xf32>
    %140 = arith.addf %136, %139 : vector<8x1xf32>
    %141 = math.rsqrt %140 : vector<8x1xf32>
    %142 = vector.broadcast %141 : vector<8x1xf32> to vector<8x32xf32>
    %143 = arith.mulf %138, %142 : vector<8x32xf32>
    %c0_63 = arith.constant 0 : index
    %c0_64 = arith.constant 0 : index
    %144 = vector.load %arg14[%c0_63, %c0_64] : memref<1x32xf32, #tpu.memory_space<vmem>>, vector<1x32xf32>
    %145 = vector.broadcast %144 : vector<1x32xf32> to vector<8x32xf32>
    %146 = arith.mulf %143, %145 : vector<8x32xf32>
    %c0_65 = arith.constant 0 : index
    %c0_66 = arith.constant 0 : index
    %147 = vector.load %arg15[%c0_65, %c0_66] : memref<1x32xf32, #tpu.memory_space<vmem>>, vector<1x32xf32>
    %148 = vector.broadcast %147 : vector<1x32xf32> to vector<8x32xf32>
    %149 = arith.addf %146, %148 : vector<8x32xf32>
    %c0_67 = arith.constant 0 : index
    %c0_68 = arith.constant 0 : index
    %c0_69 = arith.constant 0 : index
    %150 = vector.load %arg16[%c0_67, %c0_68, %c0_69] : memref<1x8x32xf32, #tpu.memory_space<vmem>>, vector<1x8x32xf32>
    %151 = vector.shape_cast %150 : vector<1x8x32xf32> to vector<8x32xf32>
    %152 = vector.shape_cast %149 : vector<8x32xf32> to vector<1x8x32xf32>
    tpu.vector_store %arg16[%c0_67, %c0_68, %c0_69], %152 {strides = array<i32>} : memref<1x8x32xf32, #tpu.memory_space<vmem>>, vector<1x8x32xf32>,
    return
  }
  func.func @transform_0(%arg0: i32, %arg1: i32) -> (i32, i32, i32) {
    %c0_i32 = arith.constant 0 : i32
    %c0_i32_0 = arith.constant 0 : i32
    return %arg0, %arg1, %c0_i32 : i32, i32, i32
  }
  func.func @transform_1(%arg0: i32, %arg1: i32) -> (i32, i32, i32) {
    %c0_i32 = arith.constant 0 : i32
    %c0_i32_0 = arith.constant 0 : i32
    return %arg0, %arg1, %c0_i32 : i32, i32, i32
  }
  func.func @transform_2(%arg0: i32, %arg1: i32) -> (i32, i32, i32) {
    %c0_i32 = arith.constant 0 : i32
    %c0_i32_0 = arith.constant 0 : i32
    %c0_i32_1 = arith.constant 0 : i32
    return %arg0, %c0_i32, %c0_i32_0 : i32, i32, i32
  }
  func.func @transform_3(%arg0: i32, %arg1: i32) -> (i32, i32, i32) {
    %c0_i32 = arith.constant 0 : i32
    %c0_i32_0 = arith.constant 0 : i32
    %c0_i32_1 = arith.constant 0 : i32
    return %arg0, %c0_i32, %c0_i32_0 : i32, i32, i32
  }
  func.func @transform_4(%arg0: i32, %arg1: i32) -> (i32, i32) {
    %c0_i32 = arith.constant 0 : i32
    %c0_i32_0 = arith.constant 0 : i32
    %c0_i32_1 = arith.constant 0 : i32
    return %c0_i32, %c0_i32_0 : i32, i32
  }
  func.func @transform_5(%arg0: i32, %arg1: i32) -> (i32, i32) {
    %c0_i32 = arith.constant 0 : i32
    %c0_i32_0 = arith.constant 0 : i32
    %c0_i32_1 = arith.constant 0 : i32
    return %c0_i32, %c0_i32_0 : i32, i32
  }
  func.func @transform_6(%arg0: i32, %arg1: i32) -> (i32, i32) {
    %c0_i32 = arith.constant 0 : i32
    %c0_i32_0 = arith.constant 0 : i32
    %c0_i32_1 = arith.constant 0 : i32
    return %c0_i32, %c0_i32_0 : i32, i32
  }
  func.func @transform_7(%arg0: i32, %arg1: i32) -> (i32, i32) {
    %c0_i32 = arith.constant 0 : i32
    %c0_i32_0 = arith.constant 0 : i32
    %c0_i32_1 = arith.constant 0 : i32
    return %c0_i32, %c0_i32_0 : i32, i32
  }
  func.func @transform_8(%arg0: i32, %arg1: i32) -> (i32, i32) {
    %c0_i32 = arith.constant 0 : i32
    %c0_i32_0 = arith.constant 0 : i32
    %c0_i32_1 = arith.constant 0 : i32
    return %c0_i32, %c0_i32_0 : i32, i32
  }
  func.func @transform_9(%arg0: i32, %arg1: i32) -> (i32, i32) {
    %c0_i32 = arith.constant 0 : i32
    %c0_i32_0 = arith.constant 0 : i32
    %c0_i32_1 = arith.constant 0 : i32
    return %c0_i32, %c0_i32_0 : i32, i32
  }
  func.func @transform_10(%arg0: i32, %arg1: i32) -> (i32, i32) {
    %c0_i32 = arith.constant 0 : i32
    %c0_i32_0 = arith.constant 0 : i32
    %c0_i32_1 = arith.constant 0 : i32
    return %c0_i32, %c0_i32_0 : i32, i32
  }
  func.func @transform_11(%arg0: i32, %arg1: i32) -> (i32, i32) {
    %c0_i32 = arith.constant 0 : i32
    %c0_i32_0 = arith.constant 0 : i32
    %c0_i32_1 = arith.constant 0 : i32
    return %c0_i32, %c0_i32_0 : i32, i32
  }
  func.func @transform_12(%arg0: i32, %arg1: i32) -> (i32, i32) {
    %c0_i32 = arith.constant 0 : i32
    %c0_i32_0 = arith.constant 0 : i32
    %c0_i32_1 = arith.constant 0 : i32
    return %c0_i32, %c0_i32_0 : i32, i32
  }
  func.func @transform_13(%arg0: i32, %arg1: i32) -> (i32, i32) {
    %c0_i32 = arith.constant 0 : i32
    %c0_i32_0 = arith.constant 0 : i32
    %c0_i32_1 = arith.constant 0 : i32
    return %c0_i32, %c0_i32_0 : i32, i32
  }
  func.func @transform_14(%arg0: i32, %arg1: i32) -> (i32, i32, i32) {
    %c0_i32 = arith.constant 0 : i32
    %c0_i32_0 = arith.constant 0 : i32
    return %arg0, %arg1, %c0_i32 : i32, i32, i32
  }
}

module attributes {stable_mosaic.version = 11 : i64} {
  func.func @attn_ffn_kernel(%arg0: i32, %arg1: i32, %arg2: memref<1x8x32xf32, #tpu.memory_space<vmem>>, %arg3: memref<1x8x32xbf16, #tpu.memory_space<vmem>>, %arg4: memref<1x8x32xbf16, #tpu.memory_space<vmem>>, %arg5: memref<1x8x32xbf16, #tpu.memory_space<vmem>>, %arg6: memref<32x32xbf16, #tpu.memory_space<vmem>>, %arg7: memref<1x32xf32, #tpu.memory_space<vmem>>, %arg8: memref<1x32xf32, #tpu.memory_space<vmem>>, %arg9: memref<1x32xf32, #tpu.memory_space<vmem>>, %arg10: memref<32x128xbf16, #tpu.memory_space<vmem>>, %arg11: memref<1x128xf32, #tpu.memory_space<vmem>>, %arg12: memref<128x32xbf16, #tpu.memory_space<vmem>>, %arg13: memref<1x32xf32, #tpu.memory_space<vmem>>, %arg14: memref<1x32xf32, #tpu.memory_space<vmem>>, %arg15: memref<1x32xf32, #tpu.memory_space<vmem>>, %arg16: memref<1x8x32xf32, #tpu.memory_space<vmem>>, %arg17: memref<8x32xbf16, #tpu.memory_space<vmem>>) attributes {dimension_semantics = [#tpu.dimension_semantics<parallel>, #tpu.dimension_semantics<parallel>], iteration_bounds = array<i64: 2, 1>, scalar_prefetch = 0 : i64, scratch_operands = 1 : i64, tpu.core_type = #tpu.core_type<tc>, window_params = [{transform_indices = @transform_0, window_bounds = array<i64: 1, 8, 32>}, {transform_indices = @transform_1, window_bounds = array<i64: 1, 8, 32>}, {transform_indices = @transform_2, window_bounds = array<i64: 1, 8, 32>}, {transform_indices = @transform_3, window_bounds = array<i64: 1, 8, 32>}, {pipeline_mode = #tpu.pipeline_mode<synchronous>, transform_indices = @transform_4, window_bounds = array<i64: 32, 32>}, {pipeline_mode = #tpu.pipeline_mode<synchronous>, transform_indices = @transform_5, window_bounds = array<i64: 1, 32>}, {pipeline_mode = #tpu.pipeline_mode<synchronous>, transform_indices = @transform_6, window_bounds = array<i64: 1, 32>}, {pipeline_mode = #tpu.pipeline_mode<synchronous>, transform_indices = @transform_7, window_bounds = array<i64: 1, 32>}, {pipeline_mode = #tpu.pipeline_mode<synchronous>, transform_indices = @transform_8, window_bounds = array<i64: 32, 128>}, {pipeline_mode = #tpu.pipeline_mode<synchronous>, transform_indices = @transform_9, window_bounds = array<i64: 1, 128>}, {pipeline_mode = #tpu.pipeline_mode<synchronous>, transform_indices = @transform_10, window_bounds = array<i64: 128, 32>}, {pipeline_mode = #tpu.pipeline_mode<synchronous>, transform_indices = @transform_11, window_bounds = array<i64: 1, 32>}, {pipeline_mode = #tpu.pipeline_mode<synchronous>, transform_indices = @transform_12, window_bounds = array<i64: 1, 32>}, {pipeline_mode = #tpu.pipeline_mode<synchronous>, transform_indices = @transform_13, window_bounds = array<i64: 1, 32>}, {transform_indices = @transform_14, window_bounds = array<i64: 1, 8, 32>}]} {
    %c0 = arith.constant 0 : index
    %c0_0 = arith.constant 0 : index
    %c0_1 = arith.constant 0 : index
    %0 = vector.load %arg2[%c0, %c0_0, %c0_1] : memref<1x8x32xf32, #tpu.memory_space<vmem>>, vector<1x8x32xf32>
    %1 = vector.shape_cast %0 : vector<1x8x32xf32> to vector<8x32xf32>
    %c0_2 = arith.constant 0 : index
    %c0_3 = arith.constant 0 : index
    %c0_4 = arith.constant 0 : index
    %2 = vector.load %arg3[%c0_2, %c0_3, %c0_4] : memref<1x8x32xbf16, #tpu.memory_space<vmem>>, vector<1x8x32xbf16>
    %3 = vector.shape_cast %2 : vector<1x8x32xbf16> to vector<8x32xbf16>
    %c0_5 = arith.constant 0 : index
    %c0_6 = arith.constant 0 : index
    %c0_7 = arith.constant 0 : index
    %4 = vector.load %arg4[%c0_5, %c0_6, %c0_7] : memref<1x8x32xbf16, #tpu.memory_space<vmem>>, vector<1x8x32xbf16>
    %5 = vector.shape_cast %4 : vector<1x8x32xbf16> to vector<8x32xbf16>
    %c0_8 = arith.constant 0 : index
    %c0_9 = arith.constant 0 : index
    %c0_10 = arith.constant 0 : index
    %6 = vector.load %arg5[%c0_8, %c0_9, %c0_10] : memref<1x8x32xbf16, #tpu.memory_space<vmem>>, vector<1x8x32xbf16>
    %7 = vector.shape_cast %6 : vector<1x8x32xbf16> to vector<8x32xbf16>
    %8 = vector.extract_strided_slice %3 {offsets = [0, 0], sizes = [8, 8], strides = [1, 1]} : vector<8x32xbf16> to vector<8x8xbf16>
    %9 = vector.extract_strided_slice %5 {offsets = [0, 0], sizes = [8, 8], strides = [1, 1]} : vector<8x32xbf16> to vector<8x8xbf16>
    %cst = arith.constant dense<0.000000e+00> : vector<8x8xf32>
    %10 = tpu.matmul %8, %9, %cst {dimension_numbers = #tpu.dot_dimension_numbers<[1], [1], [0], [0], [0, 0, 1, 0], [], []>} : vector<8x8xbf16>, vector<8x8xbf16>, vector<8x8xf32> -> vector<8x8xf32>
    %cst_11 = arith.constant dense<0xFF800000> : vector<8xf32>
    %11 = vector.multi_reduction <maximumf>, %10, %cst_11 [1] : vector<8x8xf32> to vector<8xf32>
    %12 = vector.shape_cast %11 : vector<8xf32> to vector<8x1xf32>
    %13 = vector.broadcast %12 : vector<8x1xf32> to vector<8x8xf32>
    %14 = arith.subf %10, %13 : vector<8x8xf32>
    %15 = math.exp %14 : vector<8x8xf32>
    %cst_12 = arith.constant dense<0.000000e+00> : vector<8xf32>
    %16 = vector.multi_reduction <add>, %15, %cst_12 [1] : vector<8x8xf32> to vector<8xf32>
    %17 = vector.shape_cast %16 : vector<8xf32> to vector<8x1xf32>
    %18 = tpu.reciprocal %17 {approx = true} : vector<8x1xf32> -> vector<8x1xf32>
    %19 = vector.broadcast %18 : vector<8x1xf32> to vector<8x8xf32>
    %20 = arith.mulf %15, %19 : vector<8x8xf32>
    %21 = arith.truncf %20 : vector<8x8xf32> to vector<8x8xbf16>
    %22 = vector.extract_strided_slice %7 {offsets = [0, 0], sizes = [8, 8], strides = [1, 1]} : vector<8x32xbf16> to vector<8x8xbf16>
    %cst_13 = arith.constant dense<0.000000e+00> : vector<8x8xf32>
    %23 = tpu.matmul %21, %22, %cst_13 {dimension_numbers = #tpu.dot_dimension_numbers<[1], [0], [0], [1], [0, 0, 1, 1], [], []>} : vector<8x8xbf16>, vector<8x8xbf16>, vector<8x8xf32> -> vector<8x8xf32>
    %24 = arith.truncf %23 : vector<8x8xf32> to vector<8x8xbf16>
    %c0_14 = arith.constant 0 : index
    %c0_15 = arith.constant 0 : index
    %25 = vector.load %arg17[%c0_14, %c0_15] : memref<8x32xbf16, #tpu.memory_space<vmem>>, vector<8x8xbf16>
    tpu.vector_store %arg17[%c0_14, %c0_15], %24 {strides = array<i32>} : memref<8x32xbf16, #tpu.memory_space<vmem>>, vector<8x8xbf16>,
    %26 = vector.extract_strided_slice %3 {offsets = [0, 8], sizes = [8, 8], strides = [1, 1]} : vector<8x32xbf16> to vector<8x8xbf16>
    %27 = vector.extract_strided_slice %5 {offsets = [0, 8], sizes = [8, 8], strides = [1, 1]} : vector<8x32xbf16> to vector<8x8xbf16>
    %cst_16 = arith.constant dense<0.000000e+00> : vector<8x8xf32>
    %28 = tpu.matmul %26, %27, %cst_16 {dimension_numbers = #tpu.dot_dimension_numbers<[1], [1], [0], [0], [0, 0, 1, 0], [], []>} : vector<8x8xbf16>, vector<8x8xbf16>, vector<8x8xf32> -> vector<8x8xf32>
    %cst_17 = arith.constant dense<0xFF800000> : vector<8xf32>
    %29 = vector.multi_reduction <maximumf>, %28, %cst_17 [1] : vector<8x8xf32> to vector<8xf32>
    %30 = vector.shape_cast %29 : vector<8xf32> to vector<8x1xf32>
    %31 = vector.broadcast %30 : vector<8x1xf32> to vector<8x8xf32>
    %32 = arith.subf %28, %31 : vector<8x8xf32>
    %33 = math.exp %32 : vector<8x8xf32>
    %cst_18 = arith.constant dense<0.000000e+00> : vector<8xf32>
    %34 = vector.multi_reduction <add>, %33, %cst_18 [1] : vector<8x8xf32> to vector<8xf32>
    %35 = vector.shape_cast %34 : vector<8xf32> to vector<8x1xf32>
    %36 = tpu.reciprocal %35 {approx = true} : vector<8x1xf32> -> vector<8x1xf32>
    %37 = vector.broadcast %36 : vector<8x1xf32> to vector<8x8xf32>
    %38 = arith.mulf %33, %37 : vector<8x8xf32>
    %39 = arith.truncf %38 : vector<8x8xf32> to vector<8x8xbf16>
    %40 = vector.extract_strided_slice %7 {offsets = [0, 8], sizes = [8, 8], strides = [1, 1]} : vector<8x32xbf16> to vector<8x8xbf16>
    %cst_19 = arith.constant dense<0.000000e+00> : vector<8x8xf32>
    %41 = tpu.matmul %39, %40, %cst_19 {dimension_numbers = #tpu.dot_dimension_numbers<[1], [0], [0], [1], [0, 0, 1, 1], [], []>} : vector<8x8xbf16>, vector<8x8xbf16>, vector<8x8xf32> -> vector<8x8xf32>
    %42 = arith.truncf %41 : vector<8x8xf32> to vector<8x8xbf16>
    %c0_20 = arith.constant 0 : index
    %c8 = arith.constant 8 : index
    %43 = vector.load %arg17[%c0_20, %c8] : memref<8x32xbf16, #tpu.memory_space<vmem>>, vector<8x8xbf16>
    tpu.vector_store %arg17[%c0_20, %c8], %42 {strides = array<i32>} : memref<8x32xbf16, #tpu.memory_space<vmem>>, vector<8x8xbf16>,
    %44 = vector.extract_strided_slice %3 {offsets = [0, 16], sizes = [8, 8], strides = [1, 1]} : vector<8x32xbf16> to vector<8x8xbf16>
    %45 = vector.extract_strided_slice %5 {offsets = [0, 16], sizes = [8, 8], strides = [1, 1]} : vector<8x32xbf16> to vector<8x8xbf16>
    %cst_21 = arith.constant dense<0.000000e+00> : vector<8x8xf32>
    %46 = tpu.matmul %44, %45, %cst_21 {dimension_numbers = #tpu.dot_dimension_numbers<[1], [1], [0], [0], [0, 0, 1, 0], [], []>} : vector<8x8xbf16>, vector<8x8xbf16>, vector<8x8xf32> -> vector<8x8xf32>
    %cst_22 = arith.constant dense<0xFF800000> : vector<8xf32>
    %47 = vector.multi_reduction <maximumf>, %46, %cst_22 [1] : vector<8x8xf32> to vector<8xf32>
    %48 = vector.shape_cast %47 : vector<8xf32> to vector<8x1xf32>
    %49 = vector.broadcast %48 : vector<8x1xf32> to vector<8x8xf32>
    %50 = arith.subf %46, %49 : vector<8x8xf32>
    %51 = math.exp %50 : vector<8x8xf32>
    %cst_23 = arith.constant dense<0.000000e+00> : vector<8xf32>
    %52 = vector.multi_reduction <add>, %51, %cst_23 [1] : vector<8x8xf32> to vector<8xf32>
    %53 = vector.shape_cast %52 : vector<8xf32> to vector<8x1xf32>
    %54 = tpu.reciprocal %53 {approx = true} : vector<8x1xf32> -> vector<8x1xf32>
    %55 = vector.broadcast %54 : vector<8x1xf32> to vector<8x8xf32>
    %56 = arith.mulf %51, %55 : vector<8x8xf32>
    %57 = arith.truncf %56 : vector<8x8xf32> to vector<8x8xbf16>
    %58 = vector.extract_strided_slice %7 {offsets = [0, 16], sizes = [8, 8], strides = [1, 1]} : vector<8x32xbf16> to vector<8x8xbf16>
    %cst_24 = arith.constant dense<0.000000e+00> : vector<8x8xf32>
    %59 = tpu.matmul %57, %58, %cst_24 {dimension_numbers = #tpu.dot_dimension_numbers<[1], [0], [0], [1], [0, 0, 1, 1], [], []>} : vector<8x8xbf16>, vector<8x8xbf16>, vector<8x8xf32> -> vector<8x8xf32>
    %60 = arith.truncf %59 : vector<8x8xf32> to vector<8x8xbf16>
    %c0_25 = arith.constant 0 : index
    %c16 = arith.constant 16 : index
    %61 = vector.load %arg17[%c0_25, %c16] : memref<8x32xbf16, #tpu.memory_space<vmem>>, vector<8x8xbf16>
    tpu.vector_store %arg17[%c0_25, %c16], %60 {strides = array<i32>} : memref<8x32xbf16, #tpu.memory_space<vmem>>, vector<8x8xbf16>,
    %62 = vector.extract_strided_slice %3 {offsets = [0, 24], sizes = [8, 8], strides = [1, 1]} : vector<8x32xbf16> to vector<8x8xbf16>
    %63 = vector.extract_strided_slice %5 {offsets = [0, 24], sizes = [8, 8], strides = [1, 1]} : vector<8x32xbf16> to vector<8x8xbf16>
    %cst_26 = arith.constant dense<0.000000e+00> : vector<8x8xf32>
    %64 = tpu.matmul %62, %63, %cst_26 {dimension_numbers = #tpu.dot_dimension_numbers<[1], [1], [0], [0], [0, 0, 1, 0], [], []>} : vector<8x8xbf16>, vector<8x8xbf16>, vector<8x8xf32> -> vector<8x8xf32>
    %cst_27 = arith.constant dense<0xFF800000> : vector<8xf32>
    %65 = vector.multi_reduction <maximumf>, %64, %cst_27 [1] : vector<8x8xf32> to vector<8xf32>
    %66 = vector.shape_cast %65 : vector<8xf32> to vector<8x1xf32>
    %67 = vector.broadcast %66 : vector<8x1xf32> to vector<8x8xf32>
    %68 = arith.subf %64, %67 : vector<8x8xf32>
    %69 = math.exp %68 : vector<8x8xf32>
    %cst_28 = arith.constant dense<0.000000e+00> : vector<8xf32>
    %70 = vector.multi_reduction <add>, %69, %cst_28 [1] : vector<8x8xf32> to vector<8xf32>
    %71 = vector.shape_cast %70 : vector<8xf32> to vector<8x1xf32>
    %72 = tpu.reciprocal %71 {approx = true} : vector<8x1xf32> -> vector<8x1xf32>
    %73 = vector.broadcast %72 : vector<8x1xf32> to vector<8x8xf32>
    %74 = arith.mulf %69, %73 : vector<8x8xf32>
    %75 = arith.truncf %74 : vector<8x8xf32> to vector<8x8xbf16>
    %76 = vector.extract_strided_slice %7 {offsets = [0, 24], sizes = [8, 8], strides = [1, 1]} : vector<8x32xbf16> to vector<8x8xbf16>
    %cst_29 = arith.constant dense<0.000000e+00> : vector<8x8xf32>
    %77 = tpu.matmul %75, %76, %cst_29 {dimension_numbers = #tpu.dot_dimension_numbers<[1], [0], [0], [1], [0, 0, 1, 1], [], []>} : vector<8x8xbf16>, vector<8x8xbf16>, vector<8x8xf32> -> vector<8x8xf32>
    %78 = arith.truncf %77 : vector<8x8xf32> to vector<8x8xbf16>
    %c0_30 = arith.constant 0 : index
    %c24 = arith.constant 24 : index
    %79 = vector.load %arg17[%c0_30, %c24] : memref<8x32xbf16, #tpu.memory_space<vmem>>, vector<8x8xbf16>
    tpu.vector_store %arg17[%c0_30, %c24], %78 {strides = array<i32>} : memref<8x32xbf16, #tpu.memory_space<vmem>>, vector<8x8xbf16>,
    %c0_31 = arith.constant 0 : index
    %c0_32 = arith.constant 0 : index
    %80 = vector.load %arg17[%c0_31, %c0_32] : memref<8x32xbf16, #tpu.memory_space<vmem>>, vector<8x32xbf16>
    %c0_33 = arith.constant 0 : index
    %c0_34 = arith.constant 0 : index
    %81 = vector.load %arg6[%c0_33, %c0_34] : memref<32x32xbf16, #tpu.memory_space<vmem>>, vector<32x32xbf16>
    %cst_35 = arith.constant dense<0.000000e+00> : vector<8x32xf32>
    %82 = tpu.matmul %80, %81, %cst_35 {dimension_numbers = #tpu.dot_dimension_numbers<[1], [0], [0], [1], [0, 0, 1, 1], [], []>} : vector<8x32xbf16>, vector<32x32xbf16>, vector<8x32xf32> -> vector<8x32xf32>
    %c0_36 = arith.constant 0 : index
    %c0_37 = arith.constant 0 : index
    %83 = vector.load %arg7[%c0_36, %c0_37] : memref<1x32xf32, #tpu.memory_space<vmem>>, vector<1x32xf32>
    %84 = vector.broadcast %83 : vector<1x32xf32> to vector<8x32xf32>
    %85 = arith.addf %82, %84 : vector<8x32xf32>
    %86 = arith.addf %1, %85 : vector<8x32xf32>
    %cst_38 = arith.constant dense<0.000000e+00> : vector<8xf32>
    %87 = vector.multi_reduction <add>, %86, %cst_38 [1] : vector<8x32xf32> to vector<8xf32>
    %88 = vector.shape_cast %87 : vector<8xf32> to vector<8x1xf32>
    %cst_39 = arith.constant 3.200000e+01 : f32
    %89 = vector.broadcast %cst_39 : f32 to vector<8x1xf32>
    %90 = arith.divf %88, %89 : vector<8x1xf32>
    %91 = vector.broadcast %90 : vector<8x1xf32> to vector<8x32xf32>
    %92 = arith.subf %86, %91 : vector<8x32xf32>
    %93 = arith.mulf %92, %92 : vector<8x32xf32>
    %cst_40 = arith.constant dense<0.000000e+00> : vector<8xf32>
    %94 = vector.multi_reduction <add>, %93, %cst_40 [1] : vector<8x32xf32> to vector<8xf32>
    %95 = vector.shape_cast %94 : vector<8xf32> to vector<8x1xf32>
    %cst_41 = arith.constant 3.200000e+01 : f32
    %96 = vector.broadcast %cst_41 : f32 to vector<8x1xf32>
    %97 = arith.divf %95, %96 : vector<8x1xf32>
    %98 = vector.broadcast %90 : vector<8x1xf32> to vector<8x32xf32>
    %99 = arith.subf %86, %98 : vector<8x32xf32>
    %cst_42 = arith.constant 9.99999974E-6 : f32
    %100 = vector.broadcast %cst_42 : f32 to vector<8x1xf32>
    %101 = arith.addf %97, %100 : vector<8x1xf32>
    %102 = math.rsqrt %101 : vector<8x1xf32>
    %103 = vector.broadcast %102 : vector<8x1xf32> to vector<8x32xf32>
    %104 = arith.mulf %99, %103 : vector<8x32xf32>
    %c0_43 = arith.constant 0 : index
    %c0_44 = arith.constant 0 : index
    %105 = vector.load %arg8[%c0_43, %c0_44] : memref<1x32xf32, #tpu.memory_space<vmem>>, vector<1x32xf32>
    %106 = vector.broadcast %105 : vector<1x32xf32> to vector<8x32xf32>
    %107 = arith.mulf %104, %106 : vector<8x32xf32>
    %c0_45 = arith.constant 0 : index
    %c0_46 = arith.constant 0 : index
    %108 = vector.load %arg9[%c0_45, %c0_46] : memref<1x32xf32, #tpu.memory_space<vmem>>, vector<1x32xf32>
    %109 = vector.broadcast %108 : vector<1x32xf32> to vector<8x32xf32>
    %110 = arith.addf %107, %109 : vector<8x32xf32>
    %111 = arith.truncf %110 : vector<8x32xf32> to vector<8x32xbf16>
    %c0_47 = arith.constant 0 : index
    %c0_48 = arith.constant 0 : index
    %112 = vector.load %arg10[%c0_47, %c0_48] : memref<32x128xbf16, #tpu.memory_space<vmem>>, vector<32x128xbf16>
    %cst_49 = arith.constant dense<0.000000e+00> : vector<8x128xf32>
    %113 = tpu.matmul %111, %112, %cst_49 {dimension_numbers = #tpu.dot_dimension_numbers<[1], [0], [0], [1], [0, 0, 1, 1], [], []>} : vector<8x32xbf16>, vector<32x128xbf16>, vector<8x128xf32> -> vector<8x128xf32>
    %c0_50 = arith.constant 0 : index
    %c0_51 = arith.constant 0 : index
    %114 = vector.load %arg11[%c0_50, %c0_51] : memref<1x128xf32, #tpu.memory_space<vmem>>, vector<1x128xf32>
    %115 = vector.broadcast %114 : vector<1x128xf32> to vector<8x128xf32>
    %116 = arith.addf %113, %115 : vector<8x128xf32>
    %cst_52 = arith.constant 0.000000e+00 : f32
    %117 = vector.broadcast %cst_52 : f32 to vector<8x128xf32>
    %118 = arith.maximumf %116, %117 : vector<8x128xf32>
    %119 = arith.truncf %118 : vector<8x128xf32> to vector<8x128xbf16>
    %c0_53 = arith.constant 0 : index
    %c0_54 = arith.constant 0 : index
    %120 = vector.load %arg12[%c0_53, %c0_54] : memref<128x32xbf16, #tpu.memory_space<vmem>>, vector<128x32xbf16>
    %cst_55 = arith.constant dense<0.000000e+00> : vector<8x32xf32>
    %121 = tpu.matmul %119, %120, %cst_55 {dimension_numbers = #tpu.dot_dimension_numbers<[1], [0], [0], [1], [0, 0, 1, 1], [], []>} : vector<8x128xbf16>, vector<128x32xbf16>, vector<8x32xf32> -> vector<8x32xf32>
    %c0_56 = arith.constant 0 : index
    %c0_57 = arith.constant 0 : index
    %122 = vector.load %arg13[%c0_56, %c0_57] : memref<1x32xf32, #tpu.memory_space<vmem>>, vector<1x32xf32>
    %123 = vector.broadcast %122 : vector<1x32xf32> to vector<8x32xf32>
    %124 = arith.addf %121, %123 : vector<8x32xf32>
    %125 = arith.addf %110, %124 : vector<8x32xf32>
    %cst_58 = arith.constant dense<0.000000e+00> : vector<8xf32>
    %126 = vector.multi_reduction <add>, %125, %cst_58 [1] : vector<8x32xf32> to vector<8xf32>
    %127 = vector.shape_cast %126 : vector<8xf32> to vector<8x1xf32>
    %cst_59 = arith.constant 3.200000e+01 : f32
    %128 = vector.broadcast %cst_59 : f32 to vector<8x1xf32>
    %129 = arith.divf %127, %128 : vector<8x1xf32>
    %130 = vector.broadcast %129 : vector<8x1xf32> to vector<8x32xf32>
    %131 = arith.subf %125, %130 : vector<8x32xf32>
    %132 = arith.mulf %131, %131 : vector<8x32xf32>
    %cst_60 = arith.constant dense<0.000000e+00> : vector<8xf32>
    %133 = vector.multi_reduction <add>, %132, %cst_60 [1] : vector<8x32xf32> to vector<8xf32>
    %134 = vector.shape_cast %133 : vector<8xf32> to vector<8x1xf32>
    %cst_61 = arith.constant 3.200000e+01 : f32
    %135 = vector.broadcast %cst_61 : f32 to vector<8x1xf32>
    %136 = arith.divf %134, %135 : vector<8x1xf32>
    %137 = vector.broadcast %129 : vector<8x1xf32> to vector<8x32xf32>
    %138 = arith.subf %125, %137 : vector<8x32xf32>
    %cst_62 = arith.constant 9.99999974E-6 : f32
    %139 = vector.broadcast %cst_62 : f32 to vector<8x1xf32>
    %140 = arith.addf %136, %139 : vector<8x1xf32>
    %141 = math.rsqrt %140 : vector<8x1xf32>
    %142 = vector.broadcast %141 : vector<8x1xf32> to vector<8x32xf32>
    %143 = arith.mulf %138, %142 : vector<8x32xf32>
    %c0_63 = arith.constant 0 : index
    %c0_64 = arith.constant 0 : index
    %144 = vector.load %arg14[%c0_63, %c0_64] : memref<1x32xf32, #tpu.memory_space<vmem>>, vector<1x32xf32>
    %145 = vector.broadcast %144 : vector<1x32xf32> to vector<8x32xf32>
    %146 = arith.mulf %143, %145 : vector<8x32xf32>
    %c0_65 = arith.constant 0 : index
    %c0_66 = arith.constant 0 : index
    %147 = vector.load %arg15[%c0_65, %c0_66] : memref<1x32xf32, #tpu.memory_space<vmem>>, vector<1x32xf32>
    %148 = vector.broadcast %147 : vector<1x32xf32> to vector<8x32xf32>
    %149 = arith.addf %146, %148 : vector<8x32xf32>
    %c0_67 = arith.constant 0 : index
    %c0_68 = arith.constant 0 : index
    %c0_69 = arith.constant 0 : index
    %150 = vector.load %arg16[%c0_67, %c0_68, %c0_69] : memref<1x8x32xf32, #tpu.memory_space<vmem>>, vector<1x8x32xf32>
    %151 = vector.shape_cast %150 : vector<1x8x32xf32> to vector<8x32xf32>
    %152 = vector.shape_cast %149 : vector<8x32xf32> to vector<1x8x32xf32>
    tpu.vector_store %arg16[%c0_67, %c0_68, %c0_69], %152 {strides = array<i32>} : memref<1x8x32xf32, #tpu.memory_space<vmem>>, vector<1x8x32xf32>,
    return
  }
  func.func @transform_0(%arg0: i32, %arg1: i32) -> (i32, i32, i32) {
    %c0_i32 = arith.constant 0 : i32
    %c0_i32_0 = arith.constant 0 : i32
    return %arg0, %arg1, %c0_i32 : i32, i32, i32
  }
  func.func @transform_1(%arg0: i32, %arg1: i32) -> (i32, i32, i32) {
    %c0_i32 = arith.constant 0 : i32
    %c0_i32_0 = arith.constant 0 : i32
    return %arg0, %arg1, %c0_i32 : i32, i32, i32
  }
  func.func @transform_2(%arg0: i32, %arg1: i32) -> (i32, i32, i32) {
    %c0_i32 = arith.constant 0 : i32
    %c0_i32_0 = arith.constant 0 : i32
    %c0_i32_1 = arith.constant 0 : i32
    return %arg0, %c0_i32, %c0_i32_0 : i32, i32, i32
  }
  func.func @transform_3(%arg0: i32, %arg1: i32) -> (i32, i32, i32) {
    %c0_i32 = arith.constant 0 : i32
    %c0_i32_0 = arith.constant 0 : i32
    %c0_i32_1 = arith.constant 0 : i32
    return %arg0, %c0_i32, %c0_i32_0 : i32, i32, i32
  }
  func.func @transform_4(%arg0: i32, %arg1: i32) -> (i32, i32) {
    %c0_i32 = arith.constant 0 : i32
    %c0_i32_0 = arith.constant 0 : i32
    %c0_i32_1 = arith.constant 0 : i32
    return %c0_i32, %c0_i32_0 : i32, i32
  }
  func.func @transform_5(%arg0: i32, %arg1: i32) -> (i32, i32) {
    %c0_i32 = arith.constant 0 : i32
    %c0_i32_0 = arith.constant 0 : i32
    %c0_i32_1 = arith.constant 0 : i32
    return %c0_i32, %c0_i32_0 : i32, i32
  }
  func.func @transform_6(%arg0: i32, %arg1: i32) -> (i32, i32) {
    %c0_i32 = arith.constant 0 : i32
    %c0_i32_0 = arith.constant 0 : i32
    %c0_i32_1 = arith.constant 0 : i32
    return %c0_i32, %c0_i32_0 : i32, i32
  }
  func.func @transform_7(%arg0: i32, %arg1: i32) -> (i32, i32) {
    %c0_i32 = arith.constant 0 : i32
    %c0_i32_0 = arith.constant 0 : i32
    %c0_i32_1 = arith.constant 0 : i32
    return %c0_i32, %c0_i32_0 : i32, i32
  }
  func.func @transform_8(%arg0: i32, %arg1: i32) -> (i32, i32) {
    %c0_i32 = arith.constant 0 : i32
    %c0_i32_0 = arith.constant 0 : i32
    %c0_i32_1 = arith.constant 0 : i32
    return %c0_i32, %c0_i32_0 : i32, i32
  }
  func.func @transform_9(%arg0: i32, %arg1: i32) -> (i32, i32) {
    %c0_i32 = arith.constant 0 : i32
    %c0_i32_0 = arith.constant 0 : i32
    %c0_i32_1 = arith.constant 0 : i32
    return %c0_i32, %c0_i32_0 : i32, i32
  }
  func.func @transform_10(%arg0: i32, %arg1: i32) -> (i32, i32) {
    %c0_i32 = arith.constant 0 : i32
    %c0_i32_0 = arith.constant 0 : i32
    %c0_i32_1 = arith.constant 0 : i32
    return %c0_i32, %c0_i32_0 : i32, i32
  }
  func.func @transform_11(%arg0: i32, %arg1: i32) -> (i32, i32) {
    %c0_i32 = arith.constant 0 : i32
    %c0_i32_0 = arith.constant 0 : i32
    %c0_i32_1 = arith.constant 0 : i32
    return %c0_i32, %c0_i32_0 : i32, i32
  }
  func.func @transform_12(%arg0: i32, %arg1: i32) -> (i32, i32) {
    %c0_i32 = arith.constant 0 : i32
    %c0_i32_0 = arith.constant 0 : i32
    %c0_i32_1 = arith.constant 0 : i32
    return %c0_i32, %c0_i32_0 : i32, i32
  }
  func.func @transform_13(%arg0: i32, %arg1: i32) -> (i32, i32) {
    %c0_i32 = arith.constant 0 : i32
    %c0_i32_0 = arith.constant 0 : i32
    %c0_i32_1 = arith.constant 0 : i32
    return %c0_i32, %c0_i32_0 : i32, i32
  }
  func.func @transform_14(%arg0: i32, %arg1: i32) -> (i32, i32, i32) {
    %c0_i32 = arith.constant 0 : i32
    %c0_i32_0 = arith.constant 0 : i32
    return %arg0, %arg1, %c0_i32 : i32, i32, i32
  }
}

</mosaic_0001>

<llo_original>
// kernel: _lambda_.4
$region0: #{_lambda_.4}
  #allocation0 [shape = 'u32[]', space=smem, size = 0x4, offset = 0x4, fixed_abs, tag = 'smem constant byte address 0x4 - core index']
  #allocation1 [shape = 'u32[144,128]{1,0:T(1,128)}', space=vmem, size = 0x12000, scoped, tag = 'internal scratch']
  %s0 = inlined_call_operand.vmem [shape: f32[2,8,32], index: 0, kind: input, shape index: {}]
  %s1 = inlined_call_operand.vmem [shape: bf16[32,96], index: 1, kind: input, shape index: {}]
  %s2 = inlined_call_operand.vmem [shape: f32[1,96], index: 2, kind: input, shape index: {}]
  %s3 = inlined_call_operand.vmem [shape: bf16[2,8,32], index: 3, kind: output, shape index: {0}]
  %s4 = inlined_call_operand.vmem [shape: bf16[2,8,32], index: 4, kind: output, shape index: {1}]
  %s5 = inlined_call_operand.vmem [shape: bf16[2,8,32], index: 5, kind: output, shape index: {2}]
  %6 = xla_tuple %s3, %s4, %s5
  %s7 = sld [smem:[#allocation0]]
  $region61: #{_lambda_.4} parent=0
    _
  %s9 = ssub.s32 1, %s7
  %s10 = scalar_select 0, %s9, %s7
  loop: start=0, step=1, limit=4
  $region2: #{_lambda_.4} parent=0 // loop_pre_header
    _
  $region3: #{_lambda_.4} parent=0 // loop_header
    %s12 = sphi 0, %s16
    %p13 = scmp.ge.s32.totalorder %s12, 4
    %s19 = sphi 0, %s31
    %s20 = sphi 0, %s27
    %s21 = sphi 0, %s19
    %s22 = sphi 0, %s20
    %s23 = sphi 0, %s21
    %s24 = sphi 0, %s22
    %s36 = sphi 0, %s38
    %s39 = sphi 0, %s36
    %s40 = sphi 0, %s39
    %s56 = sphi 0, %s40
    %s60 = sphi 0, %s60
    %s62 = sphi 0, %s60
    %s63 = sphi 0, %s62
    %s77 = sphi 0, %s63
    %s81 = sphi 0, %s81
    %s83 = sphi 0, %s81
    %s84 = sphi 0, %s83
    %s98 = sphi 0, %s84
    %s106 = sphi 0, %s108
    %s109 = sphi 0, %s106
    %s110 = sphi 0, %s109
    %s126 = sphi 0, %s110
    %s134 = sphi 0, %s136
    %s137 = sphi 0, %s134
    %s138 = sphi 0, %s137
    %s154 = sphi 0, %s138
    %s162 = sphi 0, %s164
    %s165 = sphi 0, %s162
    %s166 = sphi 0, %s165
    %s182 = sphi 0, %s166
  $region4: #{_lambda_.4} parent=0 // loop_header_branch
    %15 = sbr.rel (%p13) target = $region8
  $region5: #{_lambda_.4} parent=0 // loop_body
    %s17 = ssub.s32 %s12, 1
    %s18 = ssub.s32 %s12, 2
    %s25 = sadd.s32 1, %s20
    %p26 = scmp.ge.s32.totalorder %s25, 1
    %s27 = scalar_select %p26, 0, %s25
    %s28 = sadd.s32 1, %s19
    %s29 = scalar_select %p26, %s28, %s19
    %p30 = scmp.ge.s32.totalorder %s29, 2
    %s31 = scalar_select %p30, 0, %s29
    %s32 = ssub.s32 %s19, %s31
    %s33 = ssub.s32 %s20, %s27
    %s34 = sor.u32 %s32, %s33
    %p35 = scmp.eq.s32.totalorder %s34, 0
    %s37 = sadd.s32 %s36, 1
    %s38 = scalar_select %p35, %s36, %s37
    %p41 = pneg %p35
    %p42 = scmp.eq.s32.totalorder %s12, 1
    %p43 = por %p41, %p42
    %p44 = scmp.ne.s32.totalorder %s36, %s39
    %p45 = scmp.eq.s32.totalorder %s12, 0
    %p46 = por %p44, %p45
    %p47 = scmp.ne.s32.totalorder %s36, %s39
    %p48 = scmp.eq.s32.totalorder %s17, 1
    %p49 = por %p47, %p48
    %p50 = scmp.ne.s32.totalorder %s39, %s40
    %p51 = scmp.eq.s32.totalorder %s17, 0
    %p52 = por %p50, %p51
    %p53 = scmp.ne.s32.totalorder %s39, %s40
    %p54 = scmp.eq.s32.totalorder %s18, 1
    %p55 = por %p53, %p54
    %p57 = scmp.ne.s32.totalorder %s40, %s56
    %p58 = scmp.eq.s32.totalorder %s18, 0
    %p59 = por %p57, %p58
    %s61 = sadd.s32 %s60, 1
    %p64 = scmp.eq.s32.totalorder %s12, 1
    %p65 = scmp.ne.s32.totalorder %s60, %s62
    %p66 = scmp.eq.s32.totalorder %s12, 0
    %p67 = por %p65, %p66
    %p68 = scmp.ne.s32.totalorder %s60, %s62
    %p69 = scmp.eq.s32.totalorder %s17, 1
    %p70 = por %p68, %p69
    %p71 = scmp.ne.s32.totalorder %s62, %s63
    %p72 = scmp.eq.s32.totalorder %s17, 0
    %p73 = por %p71, %p72
    %p74 = scmp.ne.s32.totalorder %s62, %s63
    %p75 = scmp.eq.s32.totalorder %s18, 1
    %p76 = por %p74, %p75
    %p78 = scmp.ne.s32.totalorder %s63, %s77
    %p79 = scmp.eq.s32.totalorder %s18, 0
    %p80 = por %p78, %p79
    %s82 = sadd.s32 %s81, 1
    %p85 = scmp.eq.s32.totalorder %s12, 1
    %p86 = scmp.ne.s32.totalorder %s81, %s83
    %p87 = scmp.eq.s32.totalorder %s12, 0
    %p88 = por %p86, %p87
    %p89 = scmp.ne.s32.totalorder %s81, %s83
    %p90 = scmp.eq.s32.totalorder %s17, 1
    %p91 = por %p89, %p90
    %p92 = scmp.ne.s32.totalorder %s83, %s84
    %p93 = scmp.eq.s32.totalorder %s17, 0
    %p94 = por %p92, %p93
    %p95 = scmp.ne.s32.totalorder %s83, %s84
    %p96 = scmp.eq.s32.totalorder %s18, 1
    %p97 = por %p95, %p96
    %p99 = scmp.ne.s32.totalorder %s84, %s98
    %p100 = scmp.eq.s32.totalorder %s18, 0
    %p101 = por %p99, %p100
    %s102 = ssub.s32 %s19, %s31
    %s103 = ssub.s32 %s20, %s27
    %s104 = sor.u32 %s102, %s103
    %p105 = scmp.eq.s32.totalorder %s104, 0
    %s107 = sadd.s32 %s106, 1
    %s108 = scalar_select %p105, %s106, %s107
    %p111 = pneg %p105
    %p112 = scmp.eq.s32.totalorder %s12, 1
    %p113 = por %p111, %p112
    %p114 = scmp.ne.s32.totalorder %s106, %s109
    %p115 = scmp.eq.s32.totalorder %s12, 0
    %p116 = por %p114, %p115
    %p117 = scmp.ne.s32.totalorder %s106, %s109
    %p118 = scmp.eq.s32.totalorder %s17, 1
    %p119 = por %p117, %p118
    %p120 = scmp.ne.s32.totalorder %s109, %s110
    %p121 = scmp.eq.s32.totalorder %s17, 0
    %p122 = por %p120, %p121
    %p123 = scmp.ne.s32.totalorder %s109, %s110
    %p124 = scmp.eq.s32.totalorder %s18, 1
    %p125 = por %p123, %p124
    %p127 = scmp.ne.s32.totalorder %s110, %s126
    %p128 = scmp.eq.s32.totalorder %s18, 0
    %p129 = por %p127, %p128
    %s130 = ssub.s32 %s19, %s31
    %s131 = ssub.s32 %s20, %s27
    %s132 = sor.u32 %s130, %s131
    %p133 = scmp.eq.s32.totalorder %s132, 0
    %s135 = sadd.s32 %s134, 1
    %s136 = scalar_select %p133, %s134, %s135
    %p139 = pneg %p133
    %p140 = scmp.eq.s32.totalorder %s12, 1
    %p141 = por %p139, %p140
    %p142 = scmp.ne.s32.totalorder %s134, %s137
    %p143 = scmp.eq.s32.totalorder %s12, 0
    %p144 = por %p142, %p143
    %p145 = scmp.ne.s32.totalorder %s134, %s137
    %p146 = scmp.eq.s32.totalorder %s17, 1
    %p147 = por %p145, %p146
    %p148 = scmp.ne.s32.totalorder %s137, %s138
    %p149 = scmp.eq.s32.totalorder %s17, 0
    %p150 = por %p148, %p149
    %p151 = scmp.ne.s32.totalorder %s137, %s138
    %p152 = scmp.eq.s32.totalorder %s18, 1
    %p153 = por %p151, %p152
    %p155 = scmp.ne.s32.totalorder %s138, %s154
    %p156 = scmp.eq.s32.totalorder %s18, 0
    %p157 = por %p155, %p156
    %s158 = ssub.s32 %s19, %s31
    %s159 = ssub.s32 %s20, %s27
    %s160 = sor.u32 %s158, %s159
    %p161 = scmp.eq.s32.totalorder %s160, 0
    %s163 = sadd.s32 %s162, 1
    %s164 = scalar_select %p161, %s162, %s163
    %p167 = pneg %p161
    %p168 = scmp.eq.s32.totalorder %s12, 1
    %p169 = por %p167, %p168
    %p170 = scmp.ne.s32.totalorder %s162, %s165
    %p171 = scmp.eq.s32.totalorder %s12, 0
    %p172 = por %p170, %p171
    %p173 = scmp.ne.s32.totalorder %s162, %s165
    %p174 = scmp.eq.s32.totalorder %s17, 1
    %p175 = por %p173, %p174
    %p176 = scmp.ne.s32.totalorder %s165, %s166
    %p177 = scmp.eq.s32.totalorder %s17, 0
    %p178 = por %p176, %p177
    %p179 = scmp.ne.s32.totalorder %s165, %s166
    %p180 = scmp.eq.s32.totalorder %s18, 1
    %p181 = por %p179, %p180
    %p183 = scmp.ne.s32.totalorder %s166, %s182
    %p184 = scmp.eq.s32.totalorder %s18, 0
    %p185 = por %p183, %p184
    %p186 = scmp.le.s32.totalorder 1, %s12
    %p187 = scmp.lt.s32.totalorder %s12, 3
    %p188 = pnand %p186, %p187
    %p189 = pneg %p188
    // Predicated region
    $region9: #{_lambda_.4} parent=5 // pred_check
      _
    $region10: #{_lambda_.4} parent=5 // pred_check_branch
      %191 = sbr.rel (%p188) target = $region12
    $region11: #{_lambda_.4} parent=5 // pred_region
      %s192 = ssub.s32 %s12, 1
      // Predicated region
      $region13: #{_lambda_.4} parent=11 // pred_check
        %p193 = pneg %p73
      $region14: #{_lambda_.4} parent=11 // pred_check_branch
        %195 = sbr.rel (%p193) target = $region16
      $region15: #{_lambda_.4} parent=11 // pred_region
        _
      $region16: #{_lambda_.4} parent=11 // pred_fallthru
        _
      // Predicated region
      $region17: #{_lambda_.4} parent=11 // pred_check
        %p196 = pneg %p94
      $region18: #{_lambda_.4} parent=11 // pred_check_branch
        %198 = sbr.rel (%p196) target = $region20
      $region19: #{_lambda_.4} parent=11 // pred_region
        _
      $region20: #{_lambda_.4} parent=11 // pred_fallthru
        _
    $region12: #{_lambda_.4} parent=5 // pred_fallthru
      _
    %p199 = scmp.lt.s32.totalorder %s12, 2
    // Predicated region
    $region21: #{_lambda_.4} parent=5 // pred_check
      %p200 = pneg %p199
    $region22: #{_lambda_.4} parent=5 // pred_check_branch
      %202 = sbr.rel (%p200) target = $region24
    $region23: #{_lambda_.4} parent=5 // pred_region
      // Predicated region
      $region25: #{_lambda_.4} parent=23 // pred_check
        %p203 = pneg %p46
      $region26: #{_lambda_.4} parent=23 // pred_check_branch
        %205 = sbr.rel (%p203) target = $region28
      $region27: #{_lambda_.4} parent=23 // pred_region
        %p206 = scmp.lt.s32.totalorder %s19, 1
        %s207 = scalar_select %p206, %s19, 1
        %p208 = scmp.lt.s32.totalorder %s20, 0
        %s209 = scalar_select %p208, %s20, 0
        %s210 = sadd.s32 %s209, %s207
        %s211 = smul.addr %s210, 8
        %s212 = scalar_lea.vmem %s0, %s211
      $region28: #{_lambda_.4} parent=23 // pred_fallthru
        _
    $region24: #{_lambda_.4} parent=5 // pred_fallthru
      _
    %p213 = scmp.le.s32.totalorder 1, %s12
    %p214 = scmp.lt.s32.totalorder %s12, 3
    %p215 = pnand %p213, %p214
    %p216 = pneg %p215
    // Predicated region
    $region29: #{_lambda_.4} parent=5 // pred_check
      _
    $region30: #{_lambda_.4} parent=5 // pred_check_branch
      %218 = sbr.rel (%p215) target = $region32
    $region31: #{_lambda_.4} parent=5 // pred_region
      %s219 = ssub.s32 %s12, 1
      %p220 = scmp.lt.s32.totalorder %s21, 1
      %s221 = scalar_select %p220, %s21, 1
      %p222 = scmp.lt.s32.totalorder %s22, 0
      %s223 = scalar_select %p222, %s22, 0
      %s224 = sadd.s32 %s223, %s221
      %s225 = smul.addr %s224, 8
      %s226 = scalar_lea.vmem %s0, %s225
      %p227 = pneg %p52
      %p228 = pneg %p49
      %p229 = pneg %p73
      %p230 = pneg %p70
      %p231 = pneg %p94
      %p232 = pneg %p91
      %p233 = pneg %p122
      %p234 = pneg %p119
      %p235 = scmp.lt.s32.totalorder %s21, 1
      %s236 = scalar_select %p235, %s21, 1
      %p237 = scmp.lt.s32.totalorder %s22, 0
      %s238 = scalar_select %p237, %s22, 0
      %s239 = sadd.s32 %s238, %s236
      %s240 = smul.addr %s239, 4
      %s241 = scalar_lea.vmem %s3, %s240
      %p242 = pneg %p150
      %p243 = pneg %p147
      %p244 = scmp.lt.s32.totalorder %s21, 1
      %s245 = scalar_select %p244, %s21, 1
      %p246 = scmp.lt.s32.totalorder %s22, 0
      %s247 = scalar_select %p246, %s22, 0
      %s248 = sadd.s32 %s247, %s245
      %s249 = smul.addr %s248, 4
      %s250 = scalar_lea.vmem %s4, %s249
      %p251 = pneg %p178
      %p252 = pneg %p175
      %p253 = scmp.lt.s32.totalorder %s21, 1
      %s254 = scalar_select %p253, %s21, 1
      %p255 = scmp.lt.s32.totalorder %s22, 0
      %s256 = scalar_select %p255, %s22, 0
      %s257 = sadd.s32 %s256, %s254
      %s258 = smul.addr %s257, 4
      %s259 = scalar_lea.vmem %s5, %s258
      %p260 = scmp.lt.s32.totalorder %s21, 1
      %s261 = scalar_select %p260, %s21, 1
      %p262 = scmp.lt.s32.totalorder %s22, 0
      %s263 = scalar_select %p262, %s22, 0
      %s264 = sadd.s32 %s263, %s261
      %s265 = smul.addr %s264, 8
      %s266 = scalar_lea.vmem %s0, %s265
      %p267 = scmp.lt.s32.totalorder %s21, 1
      %s268 = scalar_select %p267, %s21, 1
      %p269 = scmp.lt.s32.totalorder %s22, 0
      %s270 = scalar_select %p269, %s22, 0
      %s271 = sadd.s32 %s270, %s268
      %s272 = smul.addr %s271, 4
      %s273 = scalar_lea.vmem %s3, %s272
      %p274 = scmp.lt.s32.totalorder %s21, 1
      %s275 = scalar_select %p274, %s21, 1
      %p276 = scmp.lt.s32.totalorder %s22, 0
      %s277 = scalar_select %p276, %s22, 0
      %s278 = sadd.s32 %s277, %s275
      %s279 = smul.addr %s278, 4
      %s280 = scalar_lea.vmem %s4, %s279
      %p281 = scmp.lt.s32.totalorder %s21, 1
      %s282 = scalar_select %p281, %s21, 1
      %p283 = scmp.lt.s32.totalorder %s22, 0
      %s284 = scalar_select %p283, %s22, 0
      %s285 = sadd.s32 %s284, %s282
      %s286 = smul.addr %s285, 4
      %s287 = scalar_lea.vmem %s5, %s286
      %v289 = vld [vmem:[%s266] sm:$0xff]
      %v290 = vpack.c.bf16 %v289, %v289
      %v291 = vld [vmem:[%s1] sm:$0xf]
      %v292 = vld [vmem:[%s1 + $0x4] sm:$0xf]
      %v293 = vld [vmem:[%s1 + $0x8] sm:$0xf]
      %v294 = vld [vmem:[%s1 + $0xc] sm:$0xf]
      %v295 = vld [vmem:[%s2] sm:$0x1]
      %v297 = vlaneseq
      %v298 = vshrl.u32 %v297, 7
      %v299 = vsub.s32 0, %v298
      %v300 = vrot.slane %v295, %v299
      %v306 = vunpack.c.l.b16 %v291
      %v307 = vunpack.c.l.b16 %v292
      %v308 = vunpack.c.l.b16 %v293
      %v309 = vunpack.c.l.b16 %v294
      %v310 = vpack.c.b16 %v307, %v306
      %v311 = vpack.c.b16 %v309, %v308
      %vm314 = vcmask 261120
      %v316 = vsel %vm314, %v290, 0
      %318 = vmatprep.subr.bf16.mxu0 0
      %319 = vmatpush1.bf16.msra.mxu0 0
      %320 = vmatprep.subr.bf16.mxu0 0
      %321 = vmatpush1.bf16.msra.mxu0 0
      %322 = vmatprep.subr.bf16.mxu0 0
      %323 = vmatpush1.bf16.msra.mxu0 0
      %324 = vmatprep.subr.bf16.mxu0 0
      %325 = vmatpush1.bf16.msra.mxu0 0
      %326 = vmatprep.subr.bf16.mxu0 0
      %327 = vmatpush1.bf16.msra.mxu0 0
      %328 = vmatprep.subr.bf16.mxu0 0
      %329 = vmatpush1.bf16.msra.mxu0 0
      %330 = vmatprep.subr.bf16.mxu0 0
      %331 = vmatpush1.bf16.msra.mxu0 %v311
      %332 = vmatprep.subr.bf16.mxu0 0
      %333 = vmatpush1.bf16.msra.mxu0 %v310
      %334 = vmatprep.subr.bf16.mxu0 0
      %335 = vmatpush2.bf16.msra.mxu0 0
      %336 = vmatprep.subr.bf16.mxu0 0
      %337 = vmatpush2.bf16.msra.mxu0 0
      %338 = vmatprep.subr.bf16.mxu0 0
      %339 = vmatpush2.bf16.msra.mxu0 0
      %340 = vmatprep.subr.bf16.mxu0 0
      %341 = vmatpush2.bf16.msra.mxu0 0
      %342 = vmatprep.subr.bf16.mxu0 0
      %343 = vmatpush2.bf16.msra.mxu0 0
      %344 = vmatprep.subr.bf16.mxu0 0
      %345 = vmatpush2.bf16.msra.mxu0 0
      %346 = vmatprep.subr.bf16.mxu0 0
      %347 = vmatpush2.bf16.msra.mxu0 0
      %348 = vmatprep.subr.bf16.mxu0 0
      %349 = vmatpush2.bf16.msra.mxu0 0
      %350 = vmatprep.mubr.bf16.mxu0 0
      %351 = vmatmul.mubr.bf16.gmra.mxu0 %v316
      %v352 = vpop.f32.mrf.mxu0
      %v353 = vadd.f32 %v300, %v352
      %v354 = vpop.f32.mrf.mxu0
      %v355 = vpop.f32.mrf.mxu0
      %v356 = vpop.f32.mrf.mxu0
      %357 = vdwg.mxu0
      %v358 = vpack.c.bf16 %v353, %v353
      %vm359 = vcmask 257024
      %360 = vst.msk [vmem:[%s273] sm:$0xf] %vm359, %v358
      %v362 = vunpack.c.l.b16 %v358
      %v363 = vpack.c.b16 %v362, %v362
      %364 = vrot.lane.b32.xlu0 %v363, 96
      %v365 = vpop.permute.xlu0 %364
      %367 = vst.msk [vmem:[%s280] sm:$0xf] %vm359, %v365
      %368 = vrot.lane.b32.xlu0 %v363, 64
      %v369 = vpop.permute.xlu0 %368
      %371 = vst.msk [vmem:[%s287] sm:$0xf] %vm359, %v369
      %p372 = scmp.lt.s32.totalorder %s21, 1
      %s373 = scalar_select %p372, %s21, 1
      %p374 = scmp.lt.s32.totalorder %s22, 0
      %s375 = scalar_select %p374, %s22, 0
      %s376 = sadd.s32 %s375, %s373
      %s377 = smul.addr %s376, 4
      %s378 = scalar_lea.vmem %s3, %s377
      %p379 = scmp.lt.s32.totalorder %s21, 1
      %s380 = scalar_select %p379, %s21, 1
      %p381 = scmp.lt.s32.totalorder %s22, 0
      %s382 = scalar_select %p381, %s22, 0
      %s383 = sadd.s32 %s382, %s380
      %s384 = smul.addr %s383, 4
      %s385 = scalar_lea.vmem %s4, %s384
      %p386 = scmp.lt.s32.totalorder %s21, 1
      %s387 = scalar_select %p386, %s21, 1
      %p388 = scmp.lt.s32.totalorder %s22, 0
      %s389 = scalar_select %p388, %s22, 0
      %s390 = sadd.s32 %s389, %s387
      %s391 = smul.addr %s390, 4
      %s392 = scalar_lea.vmem %s5, %s391
      // Predicated region
      $region33: #{_lambda_.4} parent=31 // pred_check
        %p393 = pneg %p119
      $region34: #{_lambda_.4} parent=31 // pred_check_branch
        %395 = sbr.rel (%p393) target = $region36
      $region35: #{_lambda_.4} parent=31 // pred_region
        _
      $region36: #{_lambda_.4} parent=31 // pred_fallthru
        _
      // Predicated region
      $region37: #{_lambda_.4} parent=31 // pred_check
        %p396 = pneg %p147
      $region38: #{_lambda_.4} parent=31 // pred_check_branch
        %398 = sbr.rel (%p396) target = $region40
      $region39: #{_lambda_.4} parent=31 // pred_region
        _
      $region40: #{_lambda_.4} parent=31 // pred_fallthru
        _
      // Predicated region
      $region41: #{_lambda_.4} parent=31 // pred_check
        %p399 = pneg %p175
      $region42: #{_lambda_.4} parent=31 // pred_check_branch
        %401 = sbr.rel (%p399) target = $region44
      $region43: #{_lambda_.4} parent=31 // pred_region
        _
      $region44: #{_lambda_.4} parent=31 // pred_fallthru
        _
    $region32: #{_lambda_.4} parent=5 // pred_fallthru
      _
    %p402 = scmp.le.s32.totalorder 2, %s12
    // Predicated region
    $region45: #{_lambda_.4} parent=5 // pred_check
      %p403 = pneg %p402
    $region46: #{_lambda_.4} parent=5 // pred_check_branch
      %405 = sbr.rel (%p403) target = $region48
    $region47: #{_lambda_.4} parent=5 // pred_region
      %s406 = ssub.s32 %s12, 2
      // Predicated region
      $region49: #{_lambda_.4} parent=47 // pred_check
        %p407 = pneg %p125
      $region50: #{_lambda_.4} parent=47 // pred_check_branch
        %409 = sbr.rel (%p407) target = $region52
      $region51: #{_lambda_.4} parent=47 // pred_region
        %p410 = scmp.lt.s32.totalorder %s23, 1
        %s411 = scalar_select %p410, %s23, 1
        %p412 = scmp.lt.s32.totalorder %s24, 0
        %s413 = scalar_select %p412, %s24, 0
        %s414 = sadd.s32 %s413, %s411
        %s415 = smul.addr %s414, 4
        %s416 = scalar_lea.vmem %s3, %s415
      $region52: #{_lambda_.4} parent=47 // pred_fallthru
        _
      // Predicated region
      $region53: #{_lambda_.4} parent=47 // pred_check
        %p417 = pneg %p153
      $region54: #{_lambda_.4} parent=47 // pred_check_branch
        %419 = sbr.rel (%p417) target = $region56
      $region55: #{_lambda_.4} parent=47 // pred_region
        %p420 = scmp.lt.s32.totalorder %s23, 1
        %s421 = scalar_select %p420, %s23, 1
        %p422 = scmp.lt.s32.totalorder %s24, 0
        %s423 = scalar_select %p422, %s24, 0
        %s424 = sadd.s32 %s423, %s421
        %s425 = smul.addr %s424, 4
        %s426 = scalar_lea.vmem %s4, %s425
      $region56: #{_lambda_.4} parent=47 // pred_fallthru
        _
      // Predicated region
      $region57: #{_lambda_.4} parent=47 // pred_check
        %p427 = pneg %p181
      $region58: #{_lambda_.4} parent=47 // pred_check_branch
        %429 = sbr.rel (%p427) target = $region60
      $region59: #{_lambda_.4} parent=47 // pred_region
        %p430 = scmp.lt.s32.totalorder %s23, 1
        %s431 = scalar_select %p430, %s23, 1
        %p432 = scmp.lt.s32.totalorder %s24, 0
        %s433 = scalar_select %p432, %s24, 0
        %s434 = sadd.s32 %s433, %s431
        %s435 = smul.addr %s434, 4
        %s436 = scalar_lea.vmem %s5, %s435
      $region60: #{_lambda_.4} parent=47 // pred_fallthru
        _
    $region48: #{_lambda_.4} parent=5 // pred_fallthru
      _
  $region6: #{_lambda_.4} parent=0 // loop_footer
    %s16 = sadd.s32 1, %s12
  $region7: #{_lambda_.4} parent=0 // loop_footer_branch
    %11 = sbr.rel target = $region3
  $region8: #{_lambda_.4} parent=0 // loop_exit
    _

// kernel: _lambda_.5
$region0: #{_lambda_.5}
  #allocation0 [shape = 'u32[]', space=smem, size = 0x4, offset = 0x4, fixed_abs, tag = 'smem constant byte address 0x4 - core index']
  #allocation1 [shape = 'u32[144,128]{1,0:T(1,128)}', space=vmem, size = 0x12000, scoped, tag = 'internal scratch']
  #allocation2 [shape = 'bf16[8,32]{1,0:T(8,128)(2,1)}', space=vmem, size = 0x800, scoped, tag = 'scratch operand']
  %s0 = inlined_call_operand.vmem [shape: f32[2,8,32], index: 0, kind: input, shape index: {}]
  %s1 = inlined_call_operand.vmem [shape: bf16[2,8,32], index: 1, kind: input, shape index: {}]
  %s2 = inlined_call_operand.vmem [shape: bf16[2,8,32], index: 2, kind: input, shape index: {}]
  %s3 = inlined_call_operand.vmem [shape: bf16[2,8,32], index: 3, kind: input, shape index: {}]
  %s4 = inlined_call_operand.vmem [shape: bf16[32,32], index: 4, kind: input, shape index: {}]
  %s5 = inlined_call_operand.vmem [shape: f32[1,32], index: 5, kind: input, shape index: {}]
  %s6 = inlined_call_operand.vmem [shape: f32[1,32], index: 6, kind: input, shape index: {}]
  %s7 = inlined_call_operand.vmem [shape: f32[1,32], index: 7, kind: input, shape index: {}]
  %s8 = inlined_call_operand.vmem [shape: bf16[32,128], index: 8, kind: input, shape index: {}]
  %s9 = inlined_call_operand.vmem [shape: f32[1,128], index: 9, kind: input, shape index: {}]
  %s10 = inlined_call_operand.vmem [shape: bf16[128,32], index: 10, kind: input, shape index: {}]
  %s11 = inlined_call_operand.vmem [shape: f32[1,32], index: 11, kind: input, shape index: {}]
  %s12 = inlined_call_operand.vmem [shape: f32[1,32], index: 12, kind: input, shape index: {}]
  %s13 = inlined_call_operand.vmem [shape: f32[1,32], index: 13, kind: input, shape index: {}]
  %s14 = inlined_call_operand.vmem [shape: f32[2,8,32], index: 14, kind: output, shape index: {}]
  %s15 = sld [smem:[#allocation0]]
  $region89: #{_lambda_.5} parent=0
    _
  %s17 = ssub.s32 1, %s15
  %s18 = scalar_select 0, %s17, %s15
  loop: start=0, step=1, limit=4
  $region2: #{_lambda_.5} parent=0 // loop_pre_header
    _
  $region3: #{_lambda_.5} parent=0 // loop_header
    %s20 = sphi 0, %s24
    %p21 = scmp.ge.s32.totalorder %s20, 4
    %s27 = sphi 0, %s39
    %s28 = sphi 0, %s35
    %s29 = sphi 0, %s27
    %s30 = sphi 0, %s28
    %s31 = sphi 0, %s29
    %s32 = sphi 0, %s30
    %s44 = sphi 0, %s46
    %s47 = sphi 0, %s44
    %s48 = sphi 0, %s47
    %s64 = sphi 0, %s48
    %s72 = sphi 0, %s74
    %s75 = sphi 0, %s72
    %s76 = sphi 0, %s75
    %s92 = sphi 0, %s76
    %s98 = sphi 0, %s100
    %s101 = sphi 0, %s98
    %s102 = sphi 0, %s101
    %s118 = sphi 0, %s102
    %s124 = sphi 0, %s126
    %s127 = sphi 0, %s124
    %s128 = sphi 0, %s127
    %s144 = sphi 0, %s128
    %s148 = sphi 0, %s148
    %s150 = sphi 0, %s148
    %s151 = sphi 0, %s150
    %s165 = sphi 0, %s151
    %s169 = sphi 0, %s169
    %s171 = sphi 0, %s169
    %s172 = sphi 0, %s171
    %s186 = sphi 0, %s172
    %s190 = sphi 0, %s190
    %s192 = sphi 0, %s190
    %s193 = sphi 0, %s192
    %s207 = sphi 0, %s193
    %s211 = sphi 0, %s211
    %s213 = sphi 0, %s211
    %s214 = sphi 0, %s213
    %s228 = sphi 0, %s214
    %s232 = sphi 0, %s232
    %s234 = sphi 0, %s232
    %s235 = sphi 0, %s234
    %s249 = sphi 0, %s235
    %s253 = sphi 0, %s253
    %s255 = sphi 0, %s253
    %s256 = sphi 0, %s255
    %s270 = sphi 0, %s256
    %s274 = sphi 0, %s274
    %s276 = sphi 0, %s274
    %s277 = sphi 0, %s276
    %s291 = sphi 0, %s277
    %s295 = sphi 0, %s295
    %s297 = sphi 0, %s295
    %s298 = sphi 0, %s297
    %s312 = sphi 0, %s298
    %s316 = sphi 0, %s316
    %s318 = sphi 0, %s316
    %s319 = sphi 0, %s318
    %s333 = sphi 0, %s319
    %s337 = sphi 0, %s337
    %s339 = sphi 0, %s337
    %s340 = sphi 0, %s339
    %s354 = sphi 0, %s340
    %s362 = sphi 0, %s364
    %s365 = sphi 0, %s362
    %s366 = sphi 0, %s365
    %s382 = sphi 0, %s366
  $region4: #{_lambda_.5} parent=0 // loop_header_branch
    %23 = sbr.rel (%p21) target = $region8
  $region5: #{_lambda_.5} parent=0 // loop_body
    %s25 = ssub.s32 %s20, 1
    %s26 = ssub.s32 %s20, 2
    %s33 = sadd.s32 1, %s28
    %p34 = scmp.ge.s32.totalorder %s33, 1
    %s35 = scalar_select %p34, 0, %s33
    %s36 = sadd.s32 1, %s27
    %s37 = scalar_select %p34, %s36, %s27
    %p38 = scmp.ge.s32.totalorder %s37, 2
    %s39 = scalar_select %p38, 0, %s37
    %s40 = ssub.s32 %s27, %s39
    %s41 = ssub.s32 %s28, %s35
    %s42 = sor.u32 %s40, %s41
    %p43 = scmp.eq.s32.totalorder %s42, 0
    %s45 = sadd.s32 %s44, 1
    %s46 = scalar_select %p43, %s44, %s45
    %p49 = pneg %p43
    %p50 = scmp.eq.s32.totalorder %s20, 1
    %p51 = por %p49, %p50
    %p52 = scmp.ne.s32.totalorder %s44, %s47
    %p53 = scmp.eq.s32.totalorder %s20, 0
    %p54 = por %p52, %p53
    %p55 = scmp.ne.s32.totalorder %s44, %s47
    %p56 = scmp.eq.s32.totalorder %s25, 1
    %p57 = por %p55, %p56
    %p58 = scmp.ne.s32.totalorder %s47, %s48
    %p59 = scmp.eq.s32.totalorder %s25, 0
    %p60 = por %p58, %p59
    %p61 = scmp.ne.s32.totalorder %s47, %s48
    %p62 = scmp.eq.s32.totalorder %s26, 1
    %p63 = por %p61, %p62
    %p65 = scmp.ne.s32.totalorder %s48, %s64
    %p66 = scmp.eq.s32.totalorder %s26, 0
    %p67 = por %p65, %p66
    %s68 = ssub.s32 %s27, %s39
    %s69 = ssub.s32 %s28, %s35
    %s70 = sor.u32 %s68, %s69
    %p71 = scmp.eq.s32.totalorder %s70, 0
    %s73 = sadd.s32 %s72, 1
    %s74 = scalar_select %p71, %s72, %s73
    %p77 = pneg %p71
    %p78 = scmp.eq.s32.totalorder %s20, 1
    %p79 = por %p77, %p78
    %p80 = scmp.ne.s32.totalorder %s72, %s75
    %p81 = scmp.eq.s32.totalorder %s20, 0
    %p82 = por %p80, %p81
    %p83 = scmp.ne.s32.totalorder %s72, %s75
    %p84 = scmp.eq.s32.totalorder %s25, 1
    %p85 = por %p83, %p84
    %p86 = scmp.ne.s32.totalorder %s75, %s76
    %p87 = scmp.eq.s32.totalorder %s25, 0
    %p88 = por %p86, %p87
    %p89 = scmp.ne.s32.totalorder %s75, %s76
    %p90 = scmp.eq.s32.totalorder %s26, 1
    %p91 = por %p89, %p90
    %p93 = scmp.ne.s32.totalorder %s76, %s92
    %p94 = scmp.eq.s32.totalorder %s26, 0
    %p95 = por %p93, %p94
    %s96 = ssub.s32 %s27, %s39
    %p97 = scmp.eq.s32.totalorder %s96, 0
    %s99 = sadd.s32 %s98, 1
    %s100 = scalar_select %p97, %s98, %s99
    %p103 = pneg %p97
    %p104 = scmp.eq.s32.totalorder %s20, 1
    %p105 = por %p103, %p104
    %p106 = scmp.ne.s32.totalorder %s98, %s101
    %p107 = scmp.eq.s32.totalorder %s20, 0
    %p108 = por %p106, %p107
    %p109 = scmp.ne.s32.totalorder %s98, %s101
    %p110 = scmp.eq.s32.totalorder %s25, 1
    %p111 = por %p109, %p110
    %p112 = scmp.ne.s32.totalorder %s101, %s102
    %p113 = scmp.eq.s32.totalorder %s25, 0
    %p114 = por %p112, %p113
    %p115 = scmp.ne.s32.totalorder %s101, %s102
    %p116 = scmp.eq.s32.totalorder %s26, 1
    %p117 = por %p115, %p116
    %p119 = scmp.ne.s32.totalorder %s102, %s118
    %p120 = scmp.eq.s32.totalorder %s26, 0
    %p121 = por %p119, %p120
    %s122 = ssub.s32 %s27, %s39
    %p123 = scmp.eq.s32.totalorder %s122, 0
    %s125 = sadd.s32 %s124, 1
    %s126 = scalar_select %p123, %s124, %s125
    %p129 = pneg %p123
    %p130 = scmp.eq.s32.totalorder %s20, 1
    %p131 = por %p129, %p130
    %p132 = scmp.ne.s32.totalorder %s124, %s127
    %p133 = scmp.eq.s32.totalorder %s20, 0
    %p134 = por %p132, %p133
    %p135 = scmp.ne.s32.totalorder %s124, %s127
    %p136 = scmp.eq.s32.totalorder %s25, 1
    %p137 = por %p135, %p136
    %p138 = scmp.ne.s32.totalorder %s127, %s128
    %p139 = scmp.eq.s32.totalorder %s25, 0
    %p140 = por %p138, %p139
    %p141 = scmp.ne.s32.totalorder %s127, %s128
    %p142 = scmp.eq.s32.totalorder %s26, 1
    %p143 = por %p141, %p142
    %p145 = scmp.ne.s32.totalorder %s128, %s144
    %p146 = scmp.eq.s32.totalorder %s26, 0
    %p147 = por %p145, %p146
    %s149 = sadd.s32 %s148, 1
    %p152 = scmp.eq.s32.totalorder %s20, 1
    %p153 = scmp.ne.s32.totalorder %s148, %s150
    %p154 = scmp.eq.s32.totalorder %s20, 0
    %p155 = por %p153, %p154
    %p156 = scmp.ne.s32.totalorder %s148, %s150
    %p157 = scmp.eq.s32.totalorder %s25, 1
    %p158 = por %p156, %p157
    %p159 = scmp.ne.s32.totalorder %s150, %s151
    %p160 = scmp.eq.s32.totalorder %s25, 0
    %p161 = por %p159, %p160
    %p162 = scmp.ne.s32.totalorder %s150, %s151
    %p163 = scmp.eq.s32.totalorder %s26, 1
    %p164 = por %p162, %p163
    %p166 = scmp.ne.s32.totalorder %s151, %s165
    %p167 = scmp.eq.s32.totalorder %s26, 0
    %p168 = por %p166, %p167
    %s170 = sadd.s32 %s169, 1
    %p173 = scmp.eq.s32.totalorder %s20, 1
    %p174 = scmp.ne.s32.totalorder %s169, %s171
    %p175 = scmp.eq.s32.totalorder %s20, 0
    %p176 = por %p174, %p175
    %p177 = scmp.ne.s32.totalorder %s169, %s171
    %p178 = scmp.eq.s32.totalorder %s25, 1
    %p179 = por %p177, %p178
    %p180 = scmp.ne.s32.totalorder %s171, %s172
    %p181 = scmp.eq.s32.totalorder %s25, 0
    %p182 = por %p180, %p181
    %p183 = scmp.ne.s32.totalorder %s171, %s172
    %p184 = scmp.eq.s32.totalorder %s26, 1
    %p185 = por %p183, %p184
    %p187 = scmp.ne.s32.totalorder %s172, %s186
    %p188 = scmp.eq.s32.totalorder %s26, 0
    %p189 = por %p187, %p188
    %s191 = sadd.s32 %s190, 1
    %p194 = scmp.eq.s32.totalorder %s20, 1
    %p195 = scmp.ne.s32.totalorder %s190, %s192
    %p196 = scmp.eq.s32.totalorder %s20, 0
    %p197 = por %p195, %p196
    %p198 = scmp.ne.s32.totalorder %s190, %s192
    %p199 = scmp.eq.s32.totalorder %s25, 1
    %p200 = por %p198, %p199
    %p201 = scmp.ne.s32.totalorder %s192, %s193
    %p202 = scmp.eq.s32.totalorder %s25, 0
    %p203 = por %p201, %p202
    %p204 = scmp.ne.s32.totalorder %s192, %s193
    %p205 = scmp.eq.s32.totalorder %s26, 1
    %p206 = por %p204, %p205
    %p208 = scmp.ne.s32.totalorder %s193, %s207
    %p209 = scmp.eq.s32.totalorder %s26, 0
    %p210 = por %p208, %p209
    %s212 = sadd.s32 %s211, 1
    %p215 = scmp.eq.s32.totalorder %s20, 1
    %p216 = scmp.ne.s32.totalorder %s211, %s213
    %p217 = scmp.eq.s32.totalorder %s20, 0
    %p218 = por %p216, %p217
    %p219 = scmp.ne.s32.totalorder %s211, %s213
    %p220 = scmp.eq.s32.totalorder %s25, 1
    %p221 = por %p219, %p220
    %p222 = scmp.ne.s32.totalorder %s213, %s214
    %p223 = scmp.eq.s32.totalorder %s25, 0
    %p224 = por %p222, %p223
    %p225 = scmp.ne.s32.totalorder %s213, %s214
    %p226 = scmp.eq.s32.totalorder %s26, 1
    %p227 = por %p225, %p226
    %p229 = scmp.ne.s32.totalorder %s214, %s228
    %p230 = scmp.eq.s32.totalorder %s26, 0
    %p231 = por %p229, %p230
    %s233 = sadd.s32 %s232, 1
    %p236 = scmp.eq.s32.totalorder %s20, 1
    %p237 = scmp.ne.s32.totalorder %s232, %s234
    %p238 = scmp.eq.s32.totalorder %s20, 0
    %p239 = por %p237, %p238
    %p240 = scmp.ne.s32.totalorder %s232, %s234
    %p241 = scmp.eq.s32.totalorder %s25, 1
    %p242 = por %p240, %p241
    %p243 = scmp.ne.s32.totalorder %s234, %s235
    %p244 = scmp.eq.s32.totalorder %s25, 0
    %p245 = por %p243, %p244
    %p246 = scmp.ne.s32.totalorder %s234, %s235
    %p247 = scmp.eq.s32.totalorder %s26, 1
    %p248 = por %p246, %p247
    %p250 = scmp.ne.s32.totalorder %s235, %s249
    %p251 = scmp.eq.s32.totalorder %s26, 0
    %p252 = por %p250, %p251
    %s254 = sadd.s32 %s253, 1
    %p257 = scmp.eq.s32.totalorder %s20, 1
    %p258 = scmp.ne.s32.totalorder %s253, %s255
    %p259 = scmp.eq.s32.totalorder %s20, 0
    %p260 = por %p258, %p259
    %p261 = scmp.ne.s32.totalorder %s253, %s255
    %p262 = scmp.eq.s32.totalorder %s25, 1
    %p263 = por %p261, %p262
    %p264 = scmp.ne.s32.totalorder %s255, %s256
    %p265 = scmp.eq.s32.totalorder %s25, 0
    %p266 = por %p264, %p265
    %p267 = scmp.ne.s32.totalorder %s255, %s256
    %p268 = scmp.eq.s32.totalorder %s26, 1
    %p269 = por %p267, %p268
    %p271 = scmp.ne.s32.totalorder %s256, %s270
    %p272 = scmp.eq.s32.totalorder %s26, 0
    %p273 = por %p271, %p272
    %s275 = sadd.s32 %s274, 1
    %p278 = scmp.eq.s32.totalorder %s20, 1
    %p279 = scmp.ne.s32.totalorder %s274, %s276
    %p280 = scmp.eq.s32.totalorder %s20, 0
    %p281 = por %p279, %p280
    %p282 = scmp.ne.s32.totalorder %s274, %s276
    %p283 = scmp.eq.s32.totalorder %s25, 1
    %p284 = por %p282, %p283
    %p285 = scmp.ne.s32.totalorder %s276, %s277
    %p286 = scmp.eq.s32.totalorder %s25, 0
    %p287 = por %p285, %p286
    %p288 = scmp.ne.s32.totalorder %s276, %s277
    %p289 = scmp.eq.s32.totalorder %s26, 1
    %p290 = por %p288, %p289
    %p292 = scmp.ne.s32.totalorder %s277, %s291
    %p293 = scmp.eq.s32.totalorder %s26, 0
    %p294 = por %p292, %p293
    %s296 = sadd.s32 %s295, 1
    %p299 = scmp.eq.s32.totalorder %s20, 1
    %p300 = scmp.ne.s32.totalorder %s295, %s297
    %p301 = scmp.eq.s32.totalorder %s20, 0
    %p302 = por %p300, %p301
    %p303 = scmp.ne.s32.totalorder %s295, %s297
    %p304 = scmp.eq.s32.totalorder %s25, 1
    %p305 = por %p303, %p304
    %p306 = scmp.ne.s32.totalorder %s297, %s298
    %p307 = scmp.eq.s32.totalorder %s25, 0
    %p308 = por %p306, %p307
    %p309 = scmp.ne.s32.totalorder %s297, %s298
    %p310 = scmp.eq.s32.totalorder %s26, 1
    %p311 = por %p309, %p310
    %p313 = scmp.ne.s32.totalorder %s298, %s312
    %p314 = scmp.eq.s32.totalorder %s26, 0
    %p315 = por %p313, %p314
    %s317 = sadd.s32 %s316, 1
    %p320 = scmp.eq.s32.totalorder %s20, 1
    %p321 = scmp.ne.s32.totalorder %s316, %s318
    %p322 = scmp.eq.s32.totalorder %s20, 0
    %p323 = por %p321, %p322
    %p324 = scmp.ne.s32.totalorder %s316, %s318
    %p325 = scmp.eq.s32.totalorder %s25, 1
    %p326 = por %p324, %p325
    %p327 = scmp.ne.s32.totalorder %s318, %s319
    %p328 = scmp.eq.s32.totalorder %s25, 0
    %p329 = por %p327, %p328
    %p330 = scmp.ne.s32.totalorder %s318, %s319
    %p331 = scmp.eq.s32.totalorder %s26, 1
    %p332 = por %p330, %p331
    %p334 = scmp.ne.s32.totalorder %s319, %s333
    %p335 = scmp.eq.s32.totalorder %s26, 0
    %p336 = por %p334, %p335
    %s338 = sadd.s32 %s337, 1
    %p341 = scmp.eq.s32.totalorder %s20, 1
    %p342 = scmp.ne.s32.totalorder %s337, %s339
    %p343 = scmp.eq.s32.totalorder %s20, 0
    %p344 = por %p342, %p343
    %p345 = scmp.ne.s32.totalorder %s337, %s339
    %p346 = scmp.eq.s32.totalorder %s25, 1
    %p347 = por %p345, %p346
    %p348 = scmp.ne.s32.totalorder %s339, %s340
    %p349 = scmp.eq.s32.totalorder %s25, 0
    %p350 = por %p348, %p349
    %p351 = scmp.ne.s32.totalorder %s339, %s340
    %p352 = scmp.eq.s32.totalorder %s26, 1
    %p353 = por %p351, %p352
    %p355 = scmp.ne.s32.totalorder %s340, %s354
    %p356 = scmp.eq.s32.totalorder %s26, 0
    %p357 = por %p355, %p356
    %s358 = ssub.s32 %s27, %s39
    %s359 = ssub.s32 %s28, %s35
    %s360 = sor.u32 %s358, %s359
    %p361 = scmp.eq.s32.totalorder %s360, 0
    %s363 = sadd.s32 %s362, 1
    %s364 = scalar_select %p361, %s362, %s363
    %p367 = pneg %p361
    %p368 = scmp.eq.s32.totalorder %s20, 1
    %p369 = por %p367, %p368
    %p370 = scmp.ne.s32.totalorder %s362, %s365
    %p371 = scmp.eq.s32.totalorder %s20, 0
    %p372 = por %p370, %p371
    %p373 = scmp.ne.s32.totalorder %s362, %s365
    %p374 = scmp.eq.s32.totalorder %s25, 1
    %p375 = por %p373, %p374
    %p376 = scmp.ne.s32.totalorder %s365, %s366
    %p377 = scmp.eq.s32.totalorder %s25, 0
    %p378 = por %p376, %p377
    %p379 = scmp.ne.s32.totalorder %s365, %s366
    %p380 = scmp.eq.s32.totalorder %s26, 1
    %p381 = por %p379, %p380
    %p383 = scmp.ne.s32.totalorder %s366, %s382
    %p384 = scmp.eq.s32.totalorder %s26, 0
    %p385 = por %p383, %p384
    %p386 = scmp.le.s32.totalorder 1, %s20
    %p387 = scmp.lt.s32.totalorder %s20, 3
    %p388 = pnand %p386, %p387
    %p389 = pneg %p388
    // Predicated region
    $region9: #{_lambda_.5} parent=5 // pred_check
      _
    $region10: #{_lambda_.5} parent=5 // pred_check_branch
      %391 = sbr.rel (%p388) target = $region12
    $region11: #{_lambda_.5} parent=5 // pred_region
      %s392 = ssub.s32 %s20, 1
      // Predicated region
      $region13: #{_lambda_.5} parent=11 // pred_check
        %p393 = pneg %p161
      $region14: #{_lambda_.5} parent=11 // pred_check_branch
        %395 = sbr.rel (%p393) target = $region16
      $region15: #{_lambda_.5} parent=11 // pred_region
        _
      $region16: #{_lambda_.5} parent=11 // pred_fallthru
        _
      // Predicated region
      $region17: #{_lambda_.5} parent=11 // pred_check
        %p396 = pneg %p182
      $region18: #{_lambda_.5} parent=11 // pred_check_branch
        %398 = sbr.rel (%p396) target = $region20
      $region19: #{_lambda_.5} parent=11 // pred_region
        _
      $region20: #{_lambda_.5} parent=11 // pred_fallthru
        _
      // Predicated region
      $region21: #{_lambda_.5} parent=11 // pred_check
        %p399 = pneg %p203
      $region22: #{_lambda_.5} parent=11 // pred_check_branch
        %401 = sbr.rel (%p399) target = $region24
      $region23: #{_lambda_.5} parent=11 // pred_region
        _
      $region24: #{_lambda_.5} parent=11 // pred_fallthru
        _
      // Predicated region
      $region25: #{_lambda_.5} parent=11 // pred_check
        %p402 = pneg %p224
      $region26: #{_lambda_.5} parent=11 // pred_check_branch
        %404 = sbr.rel (%p402) target = $region28
      $region27: #{_lambda_.5} parent=11 // pred_region
        _
      $region28: #{_lambda_.5} parent=11 // pred_fallthru
        _
      // Predicated region
      $region29: #{_lambda_.5} parent=11 // pred_check
        %p405 = pneg %p245
      $region30: #{_lambda_.5} parent=11 // pred_check_branch
        %407 = sbr.rel (%p405) target = $region32
      $region31: #{_lambda_.5} parent=11 // pred_region
        _
      $region32: #{_lambda_.5} parent=11 // pred_fallthru
        _
      // Predicated region
      $region33: #{_lambda_.5} parent=11 // pred_check
        %p408 = pneg %p266
      $region34: #{_lambda_.5} parent=11 // pred_check_branch
        %410 = sbr.rel (%p408) target = $region36
      $region35: #{_lambda_.5} parent=11 // pred_region
        _
      $region36: #{_lambda_.5} parent=11 // pred_fallthru
        _
      // Predicated region
      $region37: #{_lambda_.5} parent=11 // pred_check
        %p411 = pneg %p287
      $region38: #{_lambda_.5} parent=11 // pred_check_branch
        %413 = sbr.rel (%p411) target = $region40
      $region39: #{_lambda_.5} parent=11 // pred_region
        _
      $region40: #{_lambda_.5} parent=11 // pred_fallthru
        _
      // Predicated region
      $region41: #{_lambda_.5} parent=11 // pred_check
        %p414 = pneg %p308
      $region42: #{_lambda_.5} parent=11 // pred_check_branch
        %416 = sbr.rel (%p414) target = $region44
      $region43: #{_lambda_.5} parent=11 // pred_region
        _
      $region44: #{_lambda_.5} parent=11 // pred_fallthru
        _
      // Predicated region
      $region45: #{_lambda_.5} parent=11 // pred_check
        %p417 = pneg %p329
      $region46: #{_lambda_.5} parent=11 // pred_check_branch
        %419 = sbr.rel (%p417) target = $region48
      $region47: #{_lambda_.5} parent=11 // pred_region
        _
      $region48: #{_lambda_.5} parent=11 // pred_fallthru
        _
      // Predicated region
      $region49: #{_lambda_.5} parent=11 // pred_check
        %p420 = pneg %p350
      $region50: #{_lambda_.5} parent=11 // pred_check_branch
        %422 = sbr.rel (%p420) target = $region52
      $region51: #{_lambda_.5} parent=11 // pred_region
        _
      $region52: #{_lambda_.5} parent=11 // pred_fallthru
        _
    $region12: #{_lambda_.5} parent=5 // pred_fallthru
      _
    %p423 = scmp.lt.s32.totalorder %s20, 2
    // Predicated region
    $region53: #{_lambda_.5} parent=5 // pred_check
      %p424 = pneg %p423
    $region54: #{_lambda_.5} parent=5 // pred_check_branch
      %426 = sbr.rel (%p424) target = $region56
    $region55: #{_lambda_.5} parent=5 // pred_region
      // Predicated region
      $region57: #{_lambda_.5} parent=55 // pred_check
        %p427 = pneg %p54
      $region58: #{_lambda_.5} parent=55 // pred_check_branch
        %429 = sbr.rel (%p427) target = $region60
      $region59: #{_lambda_.5} parent=55 // pred_region
        %p430 = scmp.lt.s32.totalorder %s27, 1
        %s431 = scalar_select %p430, %s27, 1
        %p432 = scmp.lt.s32.totalorder %s28, 0
        %s433 = scalar_select %p432, %s28, 0
        %s434 = sadd.s32 %s433, %s431
        %s435 = smul.addr %s434, 8
        %s436 = scalar_lea.vmem %s0, %s435
      $region60: #{_lambda_.5} parent=55 // pred_fallthru
        _
      // Predicated region
      $region61: #{_lambda_.5} parent=55 // pred_check
        %p437 = pneg %p82
      $region62: #{_lambda_.5} parent=55 // pred_check_branch
        %439 = sbr.rel (%p437) target = $region64
      $region63: #{_lambda_.5} parent=55 // pred_region
        %p440 = scmp.lt.s32.totalorder %s27, 1
        %s441 = scalar_select %p440, %s27, 1
        %p442 = scmp.lt.s32.totalorder %s28, 0
        %s443 = scalar_select %p442, %s28, 0
        %s444 = sadd.s32 %s443, %s441
        %s445 = smul.addr %s444, 4
        %s446 = scalar_lea.vmem %s1, %s445
      $region64: #{_lambda_.5} parent=55 // pred_fallthru
        _
      // Predicated region
      $region65: #{_lambda_.5} parent=55 // pred_check
        %p447 = pneg %p108
      $region66: #{_lambda_.5} parent=55 // pred_check_branch
        %449 = sbr.rel (%p447) target = $region68
      $region67: #{_lambda_.5} parent=55 // pred_region
        %p450 = scmp.lt.s32.totalorder %s27, 1
        %s451 = scalar_select %p450, %s27, 1
        %s452 = smul.addr %s451, 4
        %s453 = scalar_lea.vmem %s2, %s452
      $region68: #{_lambda_.5} parent=55 // pred_fallthru
        _
      // Predicated region
      $region69: #{_lambda_.5} parent=55 // pred_check
        %p454 = pneg %p134
      $region70: #{_lambda_.5} parent=55 // pred_check_branch
        %456 = sbr.rel (%p454) target = $region72
      $region71: #{_lambda_.5} parent=55 // pred_region
        %p457 = scmp.lt.s32.totalorder %s27, 1
        %s458 = scalar_select %p457, %s27, 1
        %s459 = smul.addr %s458, 4
        %s460 = scalar_lea.vmem %s3, %s459
      $region72: #{_lambda_.5} parent=55 // pred_fallthru
        _
    $region56: #{_lambda_.5} parent=5 // pred_fallthru
      _
    %p461 = scmp.le.s32.totalorder 1, %s20
    %p462 = scmp.lt.s32.totalorder %s20, 3
    %p463 = pnand %p461, %p462
    %p464 = pneg %p463
    // Predicated region
    $region73: #{_lambda_.5} parent=5 // pred_check
      _
    $region74: #{_lambda_.5} parent=5 // pred_check_branch
      %466 = sbr.rel (%p463) target = $region76
    $region75: #{_lambda_.5} parent=5 // pred_region
      %s467 = ssub.s32 %s20, 1
      %p468 = scmp.lt.s32.totalorder %s29, 1
      %s469 = scalar_select %p468, %s29, 1
      %p470 = scmp.lt.s32.totalorder %s30, 0
      %s471 = scalar_select %p470, %s30, 0
      %s472 = sadd.s32 %s471, %s469
      %s473 = smul.addr %s472, 8
      %s474 = scalar_lea.vmem %s0, %s473
      %p475 = pneg %p60
      %p476 = pneg %p57
      %p477 = scmp.lt.s32.totalorder %s29, 1
      %s478 = scalar_select %p477, %s29, 1
      %p479 = scmp.lt.s32.totalorder %s30, 0
      %s480 = scalar_select %p479, %s30, 0
      %s481 = sadd.s32 %s480, %s478
      %s482 = smul.addr %s481, 4
      %s483 = scalar_lea.vmem %s1, %s482
      %p484 = pneg %p88
      %p485 = pneg %p85
      %p486 = scmp.lt.s32.totalorder %s29, 1
      %s487 = scalar_select %p486, %s29, 1
      %s488 = smul.addr %s487, 4
      %s489 = scalar_lea.vmem %s2, %s488
      %p490 = pneg %p114
      %p491 = pneg %p111
      %p492 = scmp.lt.s32.totalorder %s29, 1
      %s493 = scalar_select %p492, %s29, 1
      %s494 = smul.addr %s493, 4
      %s495 = scalar_lea.vmem %s3, %s494
      %p496 = pneg %p140
      %p497 = pneg %p137
      %p498 = pneg %p161
      %p499 = pneg %p158
      %p500 = pneg %p182
      %p501 = pneg %p179
      %p502 = pneg %p203
      %p503 = pneg %p200
      %p504 = pneg %p224
      %p505 = pneg %p221
      %p506 = pneg %p245
      %p507 = pneg %p242
      %p508 = pneg %p266
      %p509 = pneg %p263
      %p510 = pneg %p287
      %p511 = pneg %p284
      %p512 = pneg %p308
      %p513 = pneg %p305
      %p514 = pneg %p329
      %p515 = pneg %p326
      %p516 = pneg %p350
      %p517 = pneg %p347
      %p518 = pneg %p378
      %p519 = pneg %p375
      %p520 = scmp.lt.s32.totalorder %s29, 1
      %s521 = scalar_select %p520, %s29, 1
      %p522 = scmp.lt.s32.totalorder %s30, 0
      %s523 = scalar_select %p522, %s30, 0
      %s524 = sadd.s32 %s523, %s521
      %s525 = smul.addr %s524, 8
      %s526 = scalar_lea.vmem %s14, %s525
      %p527 = scmp.lt.s32.totalorder %s29, 1
      %s528 = scalar_select %p527, %s29, 1
      %p529 = scmp.lt.s32.totalorder %s30, 0
      %s530 = scalar_select %p529, %s30, 0
      %s531 = sadd.s32 %s530, %s528
      %s532 = smul.addr %s531, 8
      %s533 = scalar_lea.vmem %s0, %s532
      %p534 = scmp.lt.s32.totalorder %s29, 1
      %s535 = scalar_select %p534, %s29, 1
      %p536 = scmp.lt.s32.totalorder %s30, 0
      %s537 = scalar_select %p536, %s30, 0
      %s538 = sadd.s32 %s537, %s535
      %s539 = smul.addr %s538, 4
      %s540 = scalar_lea.vmem %s1, %s539
      %p541 = scmp.lt.s32.totalorder %s29, 1
      %s542 = scalar_select %p541, %s29, 1
      %s543 = smul.addr %s542, 4
      %s544 = scalar_lea.vmem %s2, %s543
      %p545 = scmp.lt.s32.totalorder %s29, 1
      %s546 = scalar_select %p545, %s29, 1
      %s547 = smul.addr %s546, 4
      %s548 = scalar_lea.vmem %s3, %s547
      %p549 = scmp.lt.s32.totalorder %s29, 1
      %s550 = scalar_select %p549, %s29, 1
      %p551 = scmp.lt.s32.totalorder %s30, 0
      %s552 = scalar_select %p551, %s30, 0
      %s553 = sadd.s32 %s552, %s550
      %s554 = smul.addr %s553, 8
      %s555 = scalar_lea.vmem %s14, %s554
      %v557 = vld [vmem:[%s533] sm:$0xff]
      %v558 = vld [vmem:[%s540] sm:$0xf]
      %v559 = vld [vmem:[%s544] sm:$0xf]
      %v560 = vld [vmem:[%s548] sm:$0xf]
      %vm561 = vcmask 64512
      %v563 = vsel %vm561, %v558, 0
      %v566 = vsel %vm561, %v559, 0
      %568 = vmatprep.subr.bf16.mxu0 0
      %569 = vmatpush1.bf16.xpose.msra.mxu0 0
      %570 = vmatprep.subr.bf16.mxu0 0
      %571 = vmatpush1.bf16.xpose.msra.mxu0 0
      %572 = vmatprep.subr.bf16.mxu0 0
      %573 = vmatpush1.bf16.xpose.msra.mxu0 0
      %574 = vmatprep.subr.bf16.mxu0 0
      %575 = vmatpush1.bf16.xpose.msra.mxu0 0
      %576 = vmatprep.subr.bf16.mxu0 0
      %577 = vmatpush1.bf16.xpose.msra.mxu0 0
      %578 = vmatprep.subr.bf16.mxu0 0
      %579 = vmatpush1.bf16.xpose.msra.mxu0 0
      %580 = vmatprep.subr.bf16.mxu0 0
      %581 = vmatpush1.bf16.xpose.msra.mxu0 0
      %582 = vmatprep.subr.bf16.mxu0 0
      %583 = vmatpush1.bf16.xpose.msra.mxu0 %v566
      %584 = vmatprep.subr.bf16.mxu0 0
      %585 = vmatpush2.bf16.xpose.msra.mxu0 0
      %586 = vmatprep.subr.bf16.mxu0 0
      %587 = vmatpush2.bf16.xpose.msra.mxu0 0
      %588 = vmatprep.subr.bf16.mxu0 0
      %589 = vmatpush2.bf16.xpose.msra.mxu0 0
      %590 = vmatprep.subr.bf16.mxu0 0
      %591 = vmatpush2.bf16.xpose.msra.mxu0 0
      %592 = vmatprep.subr.bf16.mxu0 0
      %593 = vmatpush2.bf16.xpose.msra.mxu0 0
      %594 = vmatprep.subr.bf16.mxu0 0
      %595 = vmatpush2.bf16.xpose.msra.mxu0 0
      %596 = vmatprep.subr.bf16.mxu0 0
      %597 = vmatpush2.bf16.xpose.msra.mxu0 0
      %598 = vmatprep.subr.bf16.mxu0 0
      %599 = vmatpush2.bf16.xpose.msra.mxu0 0
      %600 = vmatprep.mubr.bf16.mxu0 0
      %601 = vmatmul.mubr.bf16.gmra.mxu0 %v563
      %v602 = vpop.f32.mrf.mxu0
      %v603 = vadd.f32 0.0, %v602
      %v604 = vpop.f32.mrf.mxu0
      %v605 = vpop.f32.mrf.mxu0
      %v606 = vpop.f32.mrf.mxu0
      %607 = vdwg.mxu0
      %v608 = vsel %vm561, %v603, -inf
      %609 = vmax.xlane.f32.xlu0 %v608
      %v610 = vpop.xlane.xlu0 %609
      %v611 = vsub.f32 %v603, %v610
      %v612 = vmul.f32 %v611, 1.442695
      %v613 = vpow.pop %v612
      %v614 = vsel %vm561, %v613, 0.0
      %615 = vadd.xlane.f32.xlu0 %v614
      %v616 = vpop.xlane.xlu0 %615
      %v617 = vrcp.pop %v616
      %v618 = vmul.f32 %v613, %v617
      %v619 = vpack.c.bf16 %v618, %v618
      %v621 = vsel %vm561, %v619, 0
      %vm623 = vcmask 1043456
      %v625 = vsel %vm623, %v560, 0
      %627 = vmatprep.subr.bf16.mxu0 0
      %628 = vmatpush1.bf16.msra.mxu0 0
      %629 = vmatprep.subr.bf16.mxu0 0
      %630 = vmatpush1.bf16.msra.mxu0 0
      %631 = vmatprep.subr.bf16.mxu0 0
      %632 = vmatpush1.bf16.msra.mxu0 0
      %633 = vmatprep.subr.bf16.mxu0 0
      %634 = vmatpush1.bf16.msra.mxu0 0
      %635 = vmatprep.subr.bf16.mxu0 0
      %636 = vmatpush1.bf16.msra.mxu0 0
      %637 = vmatprep.subr.bf16.mxu0 0
      %638 = vmatpush1.bf16.msra.mxu0 0
      %639 = vmatprep.subr.bf16.mxu0 0
      %640 = vmatpush1.bf16.msra.mxu0 0
      %641 = vmatprep.subr.bf16.mxu0 0
      %642 = vmatpush1.bf16.msra.mxu0 %v625
      %643 = vmatprep.subr.bf16.mxu0 0
      %644 = vmatpush2.bf16.msra.mxu0 0
      %645 = vmatprep.subr.bf16.mxu0 0
      %646 = vmatpush2.bf16.msra.mxu0 0
      %647 = vmatprep.subr.bf16.mxu0 0
      %648 = vmatpush2.bf16.msra.mxu0 0
      %649 = vmatprep.subr.bf16.mxu0 0
      %650 = vmatpush2.bf16.msra.mxu0 0
      %651 = vmatprep.subr.bf16.mxu0 0
      %652 = vmatpush2.bf16.msra.mxu0 0
      %653 = vmatprep.subr.bf16.mxu0 0
      %654 = vmatpush2.bf16.msra.mxu0 0
      %655 = vmatprep.subr.bf16.mxu0 0
      %656 = vmatpush2.bf16.msra.mxu0 0
      %657 = vmatprep.subr.bf16.mxu0 0
      %658 = vmatpush2.bf16.msra.mxu0 0
      %659 = vmatprep.mubr.bf16.mxu0 0
      %660 = vmatmul.mubr.bf16.gmra.mxu0 %v621
      %v661 = vpop.f32.mrf.mxu0
      %v662 = vadd.f32 0.0, %v661
      %v663 = vpop.f32.mrf.mxu0
      %v664 = vpop.f32.mrf.mxu0
      %v665 = vpop.f32.mrf.mxu0
      %666 = vdwg.mxu0
      %v667 = vpack.c.bf16 %v662, %v662
      %vm668 = vcmask 60416
      %669 = vst.msk [vmem:[#allocation2] sm:$0xf] %vm668, %v667
      %v671 = vunpack.c.l.b16 %v558
      %v672 = vpack.c.b16 %v671, %v671
      %673 = vrot.lane.b32.xlu0 %v672, 120
      %v674 = vpop.permute.xlu0 %673
      %v676 = vunpack.c.l.b16 %v559
      %v677 = vpack.c.b16 %v676, %v676
      %678 = vrot.lane.b32.xlu0 %v677, 120
      %v679 = vpop.permute.xlu0 %678
      %v681 = vsel %vm561, %v674, 0
      %v684 = vsel %vm561, %v679, 0
      %686 = vmatprep.subr.bf16.mxu0 0
      %687 = vmatpush1.bf16.xpose.msra.mxu0 0
      %688 = vmatprep.subr.bf16.mxu0 0
      %689 = vmatpush1.bf16.xpose.msra.mxu0 0
      %690 = vmatprep.subr.bf16.mxu0 0
      %691 = vmatpush1.bf16.xpose.msra.mxu0 0
      %692 = vmatprep.subr.bf16.mxu0 0
      %693 = vmatpush1.bf16.xpose.msra.mxu0 0
      %694 = vmatprep.subr.bf16.mxu0 0
      %695 = vmatpush1.bf16.xpose.msra.mxu0 0
      %696 = vmatprep.subr.bf16.mxu0 0
      %697 = vmatpush1.bf16.xpose.msra.mxu0 0
      %698 = vmatprep.subr.bf16.mxu0 0
      %699 = vmatpush1.bf16.xpose.msra.mxu0 0
      %700 = vmatprep.subr.bf16.mxu0 0
      %701 = vmatpush1.bf16.xpose.msra.mxu0 %v684
      %702 = vmatprep.subr.bf16.mxu0 0
      %703 = vmatpush2.bf16.xpose.msra.mxu0 0
      %704 = vmatprep.subr.bf16.mxu0 0
      %705 = vmatpush2.bf16.xpose.msra.mxu0 0
      %706 = vmatprep.subr.bf16.mxu0 0
      %707 = vmatpush2.bf16.xpose.msra.mxu0 0
      %708 = vmatprep.subr.bf16.mxu0 0
      %709 = vmatpush2.bf16.xpose.msra.mxu0 0
      %710 = vmatprep.subr.bf16.mxu0 0
      %711 = vmatpush2.bf16.xpose.msra.mxu0 0
      %712 = vmatprep.subr.bf16.mxu0 0
      %713 = vmatpush2.bf16.xpose.msra.mxu0 0
      %714 = vmatprep.subr.bf16.mxu0 0
      %715 = vmatpush2.bf16.xpose.msra.mxu0 0
      %716 = vmatprep.subr.bf16.mxu0 0
      %717 = vmatpush2.bf16.xpose.msra.mxu0 0
      %718 = vmatprep.mubr.bf16.mxu0 0
      %719 = vmatmul.mubr.bf16.gmra.mxu0 %v681
      %v720 = vpop.f32.mrf.mxu0
      %v721 = vadd.f32 0.0, %v720
      %v722 = vpop.f32.mrf.mxu0
      %v723 = vpop.f32.mrf.mxu0
      %v724 = vpop.f32.mrf.mxu0
      %725 = vdwg.mxu0
      %v726 = vsel %vm561, %v721, -inf
      %727 = vmax.xlane.f32.xlu0 %v726
      %v728 = vpop.xlane.xlu0 %727
      %v729 = vsub.f32 %v721, %v728
      %v730 = vmul.f32 %v729, 1.442695
      %v731 = vpow.pop %v730
      %v732 = vsel %vm561, %v731, 0.0
      %733 = vadd.xlane.f32.xlu0 %v732
      %v734 = vpop.xlane.xlu0 %733
      %v735 = vrcp.pop %v734
      %v736 = vmul.f32 %v731, %v735
      %v737 = vpack.c.bf16 %v736, %v736
      %v739 = vunpack.c.l.b16 %v560
      %v740 = vpack.c.b16 %v739, %v739
      %741 = vrot.lane.b32.xlu0 %v740, 120
      %v742 = vpop.permute.xlu0 %741
      %v744 = vsel %vm561, %v737, 0
      %v747 = vsel %vm623, %v742, 0
      %749 = vmatprep.subr.bf16.mxu0 0
      %750 = vmatpush1.bf16.msra.mxu0 0
      %751 = vmatprep.subr.bf16.mxu0 0
      %752 = vmatpush1.bf16.msra.mxu0 0
      %753 = vmatprep.subr.bf16.mxu0 0
      %754 = vmatpush1.bf16.msra.mxu0 0
      %755 = vmatprep.subr.bf16.mxu0 0
      %756 = vmatpush1.bf16.msra.mxu0 0
      %757 = vmatprep.subr.bf16.mxu0 0
      %758 = vmatpush1.bf16.msra.mxu0 0
      %759 = vmatprep.subr.bf16.mxu0 0
      %760 = vmatpush1.bf16.msra.mxu0 0
      %761 = vmatprep.subr.bf16.mxu0 0
      %762 = vmatpush1.bf16.msra.mxu0 0
      %763 = vmatprep.subr.bf16.mxu0 0
      %764 = vmatpush1.bf16.msra.mxu0 %v747
      %765 = vmatprep.subr.bf16.mxu0 0
      %766 = vmatpush2.bf16.msra.mxu0 0
      %767 = vmatprep.subr.bf16.mxu0 0
      %768 = vmatpush2.bf16.msra.mxu0 0
      %769 = vmatprep.subr.bf16.mxu0 0
      %770 = vmatpush2.bf16.msra.mxu0 0
      %771 = vmatprep.subr.bf16.mxu0 0
      %772 = vmatpush2.bf16.msra.mxu0 0
      %773 = vmatprep.subr.bf16.mxu0 0
      %774 = vmatpush2.bf16.msra.mxu0 0
      %775 = vmatprep.subr.bf16.mxu0 0
      %776 = vmatpush2.bf16.msra.mxu0 0
      %777 = vmatprep.subr.bf16.mxu0 0
      %778 = vmatpush2.bf16.msra.mxu0 0
      %779 = vmatprep.subr.bf16.mxu0 0
      %780 = vmatpush2.bf16.msra.mxu0 0
      %781 = vmatprep.mubr.bf16.mxu0 0
      %782 = vmatmul.mubr.bf16.gmra.mxu0 %v744
      %v783 = vpop.f32.mrf.mxu0
      %v784 = vadd.f32 0.0, %v783
      %v785 = vpop.f32.mrf.mxu0
      %v786 = vpop.f32.mrf.mxu0
      %v787 = vpop.f32.mrf.mxu0
      %788 = vdwg.mxu0
      %v789 = vpack.c.bf16 %v784, %v784
      %v791 = vunpack.c.l.b16 %v789
      %v792 = vpack.c.b16 %v791, %v791
      %793 = vrot.lane.b32.xlu0 %v792, 8
      %v794 = vpop.permute.xlu0 %793
      %vm796 = vcmask 126016
      %797 = vst.msk [vmem:[#allocation2] sm:$0xf] %vm796, %v794
      %798 = vrot.lane.b32.xlu0 %v672, 112
      %v799 = vpop.permute.xlu0 %798
      %800 = vrot.lane.b32.xlu0 %v677, 112
      %v801 = vpop.permute.xlu0 %800
      %v803 = vsel %vm561, %v799, 0
      %v806 = vsel %vm561, %v801, 0
      %808 = vmatprep.subr.bf16.mxu0 0
      %809 = vmatpush1.bf16.xpose.msra.mxu0 0
      %810 = vmatprep.subr.bf16.mxu0 0
      %811 = vmatpush1.bf16.xpose.msra.mxu0 0
      %812 = vmatprep.subr.bf16.mxu0 0
      %813 = vmatpush1.bf16.xpose.msra.mxu0 0
      %814 = vmatprep.subr.bf16.mxu0 0
      %815 = vmatpush1.bf16.xpose.msra.mxu0 0
      %816 = vmatprep.subr.bf16.mxu0 0
      %817 = vmatpush1.bf16.xpose.msra.mxu0 0
      %818 = vmatprep.subr.bf16.mxu0 0
      %819 = vmatpush1.bf16.xpose.msra.mxu0 0
      %820 = vmatprep.subr.bf16.mxu0 0
      %821 = vmatpush1.bf16.xpose.msra.mxu0 0
      %822 = vmatprep.subr.bf16.mxu0 0
      %823 = vmatpush1.bf16.xpose.msra.mxu0 %v806
      %824 = vmatprep.subr.bf16.mxu0 0
      %825 = vmatpush2.bf16.xpose.msra.mxu0 0
      %826 = vmatprep.subr.bf16.mxu0 0
      %827 = vmatpush2.bf16.xpose.msra.mxu0 0
      %828 = vmatprep.subr.bf16.mxu0 0
      %829 = vmatpush2.bf16.xpose.msra.mxu0 0
      %830 = vmatprep.subr.bf16.mxu0 0
      %831 = vmatpush2.bf16.xpose.msra.mxu0 0
      %832 = vmatprep.subr.bf16.mxu0 0
      %833 = vmatpush2.bf16.xpose.msra.mxu0 0
      %834 = vmatprep.subr.bf16.mxu0 0
      %835 = vmatpush2.bf16.xpose.msra.mxu0 0
      %836 = vmatprep.subr.bf16.mxu0 0
      %837 = vmatpush2.bf16.xpose.msra.mxu0 0
      %838 = vmatprep.subr.bf16.mxu0 0
      %839 = vmatpush2.bf16.xpose.msra.mxu0 0
      %840 = vmatprep.mubr.bf16.mxu0 0
      %841 = vmatmul.mubr.bf16.gmra.mxu0 %v803
      %v842 = vpop.f32.mrf.mxu0
      %v843 = vadd.f32 0.0, %v842
      %v844 = vpop.f32.mrf.mxu0
      %v845 = vpop.f32.mrf.mxu0
      %v846 = vpop.f32.mrf.mxu0
      %847 = vdwg.mxu0
      %v848 = vsel %vm561, %v843, -inf
      %849 = vmax.xlane.f32.xlu0 %v848
      %v850 = vpop.xlane.xlu0 %849
      %v851 = vsub.f32 %v843, %v850
      %v852 = vmul.f32 %v851, 1.442695
      %v853 = vpow.pop %v852
      %v854 = vsel %vm561, %v853, 0.0
      %855 = vadd.xlane.f32.xlu0 %v854
      %v856 = vpop.xlane.xlu0 %855
      %v857 = vrcp.pop %v856
      %v858 = vmul.f32 %v853, %v857
      %v859 = vpack.c.bf16 %v858, %v858
      %860 = vrot.lane.b32.xlu0 %v740, 112
      %v861 = vpop.permute.xlu0 %860
      %v863 = vsel %vm561, %v859, 0
      %v866 = vsel %vm623, %v861, 0
      %868 = vmatprep.subr.bf16.mxu0 0
      %869 = vmatpush1.bf16.msra.mxu0 0
      %870 = vmatprep.subr.bf16.mxu0 0
      %871 = vmatpush1.bf16.msra.mxu0 0
      %872 = vmatprep.subr.bf16.mxu0 0
      %873 = vmatpush1.bf16.msra.mxu0 0
      %874 = vmatprep.subr.bf16.mxu0 0
      %875 = vmatpush1.bf16.msra.mxu0 0
      %876 = vmatprep.subr.bf16.mxu0 0
      %877 = vmatpush1.bf16.msra.mxu0 0
      %878 = vmatprep.subr.bf16.mxu0 0
      %879 = vmatpush1.bf16.msra.mxu0 0
      %880 = vmatprep.subr.bf16.mxu0 0
      %881 = vmatpush1.bf16.msra.mxu0 0
      %882 = vmatprep.subr.bf16.mxu0 0
      %883 = vmatpush1.bf16.msra.mxu0 %v866
      %884 = vmatprep.subr.bf16.mxu0 0
      %885 = vmatpush2.bf16.msra.mxu0 0
      %886 = vmatprep.subr.bf16.mxu0 0
      %887 = vmatpush2.bf16.msra.mxu0 0
      %888 = vmatprep.subr.bf16.mxu0 0
      %889 = vmatpush2.bf16.msra.mxu0 0
      %890 = vmatprep.subr.bf16.mxu0 0
      %891 = vmatpush2.bf16.msra.mxu0 0
      %892 = vmatprep.subr.bf16.mxu0 0
      %893 = vmatpush2.bf16.msra.mxu0 0
      %894 = vmatprep.subr.bf16.mxu0 0
      %895 = vmatpush2.bf16.msra.mxu0 0
      %896 = vmatprep.subr.bf16.mxu0 0
      %897 = vmatpush2.bf16.msra.mxu0 0
      %898 = vmatprep.subr.bf16.mxu0 0
      %899 = vmatpush2.bf16.msra.mxu0 0
      %900 = vmatprep.mubr.bf16.mxu0 0
      %901 = vmatmul.mubr.bf16.gmra.mxu0 %v863
      %v902 = vpop.f32.mrf.mxu0
      %v903 = vadd.f32 0.0, %v902
      %v904 = vpop.f32.mrf.mxu0
      %v905 = vpop.f32.mrf.mxu0
      %v906 = vpop.f32.mrf.mxu0
      %907 = vdwg.mxu0
      %v908 = vpack.c.bf16 %v903, %v903
      %v910 = vunpack.c.l.b16 %v908
      %v911 = vpack.c.b16 %v910, %v910
      %912 = vrot.lane.b32.xlu0 %v911, 16
      %v913 = vpop.permute.xlu0 %912
      %vm915 = vcmask 191616
      %916 = vst.msk [vmem:[#allocation2] sm:$0xf] %vm915, %v913
      %917 = vrot.lane.b32.xlu0 %v672, 104
      %v918 = vpop.permute.xlu0 %917
      %919 = vrot.lane.b32.xlu0 %v677, 104
      %v920 = vpop.permute.xlu0 %919
      %v922 = vsel %vm561, %v918, 0
      %v925 = vsel %vm561, %v920, 0
      %927 = vmatprep.subr.bf16.mxu0 0
      %928 = vmatpush1.bf16.xpose.msra.mxu0 0
      %929 = vmatprep.subr.bf16.mxu0 0
      %930 = vmatpush1.bf16.xpose.msra.mxu0 0
      %931 = vmatprep.subr.bf16.mxu0 0
      %932 = vmatpush1.bf16.xpose.msra.mxu0 0
      %933 = vmatprep.subr.bf16.mxu0 0
      %934 = vmatpush1.bf16.xpose.msra.mxu0 0
      %935 = vmatprep.subr.bf16.mxu0 0
      %936 = vmatpush1.bf16.xpose.msra.mxu0 0
      %937 = vmatprep.subr.bf16.mxu0 0
      %938 = vmatpush1.bf16.xpose.msra.mxu0 0
      %939 = vmatprep.subr.bf16.mxu0 0
      %940 = vmatpush1.bf16.xpose.msra.mxu0 0
      %941 = vmatprep.subr.bf16.mxu0 0
      %942 = vmatpush1.bf16.xpose.msra.mxu0 %v925
      %943 = vmatprep.subr.bf16.mxu0 0
      %944 = vmatpush2.bf16.xpose.msra.mxu0 0
      %945 = vmatprep.subr.bf16.mxu0 0
      %946 = vmatpush2.bf16.xpose.msra.mxu0 0
      %947 = vmatprep.subr.bf16.mxu0 0
      %948 = vmatpush2.bf16.xpose.msra.mxu0 0
      %949 = vmatprep.subr.bf16.mxu0 0
      %950 = vmatpush2.bf16.xpose.msra.mxu0 0
      %951 = vmatprep.subr.bf16.mxu0 0
      %952 = vmatpush2.bf16.xpose.msra.mxu0 0
      %953 = vmatprep.subr.bf16.mxu0 0
      %954 = vmatpush2.bf16.xpose.msra.mxu0 0
      %955 = vmatprep.subr.bf16.mxu0 0
      %956 = vmatpush2.bf16.xpose.msra.mxu0 0
      %957 = vmatprep.subr.bf16.mxu0 0
      %958 = vmatpush2.bf16.xpose.msra.mxu0 0
      %959 = vmatprep.mubr.bf16.mxu0 0
      %960 = vmatmul.mubr.bf16.gmra.mxu0 %v922
      %v961 = vpop.f32.mrf.mxu0
      %v962 = vadd.f32 0.0, %v961
      %v963 = vpop.f32.mrf.mxu0
      %v964 = vpop.f32.mrf.mxu0
      %v965 = vpop.f32.mrf.mxu0
      %966 = vdwg.mxu0
      %v967 = vsel %vm561, %v962, -inf
      %968 = vmax.xlane.f32.xlu0 %v967
      %v969 = vpop.xlane.xlu0 %968
      %v970 = vsub.f32 %v962, %v969
      %v971 = vmul.f32 %v970, 1.442695
      %v972 = vpow.pop %v971
      %v973 = vsel %vm561, %v972, 0.0
      %974 = vadd.xlane.f32.xlu0 %v973
      %v975 = vpop.xlane.xlu0 %974
      %v976 = vrcp.pop %v975
      %v977 = vmul.f32 %v972, %v976
      %v978 = vpack.c.bf16 %v977, %v977
      %979 = vrot.lane.b32.xlu0 %v740, 104
      %v980 = vpop.permute.xlu0 %979
      %v982 = vsel %vm561, %v978, 0
      %v985 = vsel %vm623, %v980, 0
      %987 = vmatprep.subr.bf16.mxu0 0
      %988 = vmatpush1.bf16.msra.mxu0 0
      %989 = vmatprep.subr.bf16.mxu0 0
      %990 = vmatpush1.bf16.msra.mxu0 0
      %991 = vmatprep.subr.bf16.mxu0 0
      %992 = vmatpush1.bf16.msra.mxu0 0
      %993 = vmatprep.subr.bf16.mxu0 0
      %994 = vmatpush1.bf16.msra.mxu0 0
      %995 = vmatprep.subr.bf16.mxu0 0
      %996 = vmatpush1.bf16.msra.mxu0 0
      %997 = vmatprep.subr.bf16.mxu0 0
      %998 = vmatpush1.bf16.msra.mxu0 0
      %999 = vmatprep.subr.bf16.mxu0 0
      %1000 = vmatpush1.bf16.msra.mxu0 0
      %1001 = vmatprep.subr.bf16.mxu0 0
      %1002 = vmatpush1.bf16.msra.mxu0 %v985
      %1003 = vmatprep.subr.bf16.mxu0 0
      %1004 = vmatpush2.bf16.msra.mxu0 0
      %1005 = vmatprep.subr.bf16.mxu0 0
      %1006 = vmatpush2.bf16.msra.mxu0 0
      %1007 = vmatprep.subr.bf16.mxu0 0
      %1008 = vmatpush2.bf16.msra.mxu0 0
      %1009 = vmatprep.subr.bf16.mxu0 0
      %1010 = vmatpush2.bf16.msra.mxu0 0
      %1011 = vmatprep.subr.bf16.mxu0 0
      %1012 = vmatpush2.bf16.msra.mxu0 0
      %1013 = vmatprep.subr.bf16.mxu0 0
      %1014 = vmatpush2.bf16.msra.mxu0 0
      %1015 = vmatprep.subr.bf16.mxu0 0
      %1016 = vmatpush2.bf16.msra.mxu0 0
      %1017 = vmatprep.subr.bf16.mxu0 0
      %1018 = vmatpush2.bf16.msra.mxu0 0
      %1019 = vmatprep.mubr.bf16.mxu0 0
      %1020 = vmatmul.mubr.bf16.gmra.mxu0 %v982
      %v1021 = vpop.f32.mrf.mxu0
      %v1022 = vadd.f32 0.0, %v1021
      %v1023 = vpop.f32.mrf.mxu0
      %v1024 = vpop.f32.mrf.mxu0
      %v1025 = vpop.f32.mrf.mxu0
      %1026 = vdwg.mxu0
      %v1027 = vpack.c.bf16 %v1022, %v1022
      %v1029 = vunpack.c.l.b16 %v1027
      %v1030 = vpack.c.b16 %v1029, %v1029
      %1031 = vrot.lane.b32.xlu0 %v1030, 24
      %v1032 = vpop.permute.xlu0 %1031
      %vm1034 = vcmask 257216
      %1035 = vst.msk [vmem:[#allocation2] sm:$0xf] %vm1034, %v1032
      %v1036 = vld [vmem:[#allocation2] sm:$0xf]
      %v1037 = vld [vmem:[%s4] sm:$0xf]
      %v1038 = vld [vmem:[%s4 + $0x4] sm:$0xf]
      %v1039 = vld [vmem:[%s4 + $0x8] sm:$0xf]
      %v1040 = vld [vmem:[%s4 + $0xc] sm:$0xf]
      %v1041 = vld [vmem:[%s5] sm:$0x1]
      %v1043 = vlaneseq
      %v1044 = vshrl.u32 %v1043, 7
      %v1045 = vsub.s32 0, %v1044
      %v1046 = vrot.slane %v1041, %v1045
      %v1052 = vunpack.c.l.b16 %v1037
      %v1053 = vunpack.c.l.b16 %v1038
      %v1054 = vunpack.c.l.b16 %v1039
      %v1055 = vunpack.c.l.b16 %v1040
      %v1056 = vpack.c.b16 %v1053, %v1052
      %v1057 = vpack.c.b16 %v1055, %v1054
      %vm1060 = vcmask 261120
      %v1062 = vsel %vm1060, %v1036, 0
      %1064 = vmatprep.subr.bf16.mxu0 0
      %1065 = vmatpush1.bf16.msra.mxu0 0
      %1066 = vmatprep.subr.bf16.mxu0 0
      %1067 = vmatpush1.bf16.msra.mxu0 0
      %1068 = vmatprep.subr.bf16.mxu0 0
      %1069 = vmatpush1.bf16.msra.mxu0 0
      %1070 = vmatprep.subr.bf16.mxu0 0
      %1071 = vmatpush1.bf16.msra.mxu0 0
      %1072 = vmatprep.subr.bf16.mxu0 0
      %1073 = vmatpush1.bf16.msra.mxu0 0
      %1074 = vmatprep.subr.bf16.mxu0 0
      %1075 = vmatpush1.bf16.msra.mxu0 0
      %1076 = vmatprep.subr.bf16.mxu0 0
      %1077 = vmatpush1.bf16.msra.mxu0 %v1057
      %1078 = vmatprep.subr.bf16.mxu0 0
      %1079 = vmatpush1.bf16.msra.mxu0 %v1056
      %1080 = vmatprep.subr.bf16.mxu0 0
      %1081 = vmatpush2.bf16.msra.mxu0 0
      %1082 = vmatprep.subr.bf16.mxu0 0
      %1083 = vmatpush2.bf16.msra.mxu0 0
      %1084 = vmatprep.subr.bf16.mxu0 0
      %1085 = vmatpush2.bf16.msra.mxu0 0
      %1086 = vmatprep.subr.bf16.mxu0 0
      %1087 = vmatpush2.bf16.msra.mxu0 0
      %1088 = vmatprep.subr.bf16.mxu0 0
      %1089 = vmatpush2.bf16.msra.mxu0 0
      %1090 = vmatprep.subr.bf16.mxu0 0
      %1091 = vmatpush2.bf16.msra.mxu0 0
      %1092 = vmatprep.subr.bf16.mxu0 0
      %1093 = vmatpush2.bf16.msra.mxu0 0
      %1094 = vmatprep.subr.bf16.mxu0 0
      %1095 = vmatpush2.bf16.msra.mxu0 0
      %1096 = vmatprep.mubr.bf16.mxu0 0
      %1097 = vmatmul.mubr.bf16.gmra.mxu0 %v1062
      %v1098 = vpop.f32.mrf.mxu0
      %v1099 = vadd.f32 %v1046, %v1098
      %v1100 = vpop.f32.mrf.mxu0
      %v1101 = vpop.f32.mrf.mxu0
      %v1102 = vpop.f32.mrf.mxu0
      %1103 = vdwg.mxu0
      %v1104 = vadd.f32 %v557, %v1099
      %v1105 = vsel %vm1060, %v1104, 0.0
      %1106 = vadd.xlane.f32.xlu0 %v1105
      %v1107 = vpop.xlane.xlu0 %1106
      %v1108 = vrcp.pop 32.0
      %v1109 = vmul.f32 %v1107, %v1108
      %v1110 = vsub.f32 %v1104, %v1109
      %v1111 = vmul.f32 %v1110, %v1110
      %v1112 = vsel %vm1060, %v1111, 0.0
      %1113 = vadd.xlane.f32.xlu0 %v1112
      %v1114 = vpop.xlane.xlu0 %1113
      %v1115 = vmul.f32 %v1114, %v1108
      %v1116 = vadd.f32 %v1115, 1e-05
      %v1117 = vrsqrt.pop %v1116
      %v1118 = vmul.f32 %v1110, %v1117
      %v1119 = vld [vmem:[%s6] sm:$0x1]
      %v1121 = vlaneseq
      %v1122 = vshrl.u32 %v1121, 7
      %v1123 = vsub.s32 0, %v1122
      %v1124 = vrot.slane %v1119, %v1123
      %v1126 = vmul.f32 %v1118, %v1124
      %v1127 = vld [vmem:[%s7] sm:$0x1]
      %v1129 = vlaneseq
      %v1130 = vshrl.u32 %v1129, 7
      %v1131 = vsub.s32 0, %v1130
      %v1132 = vrot.slane %v1127, %v1131
      %v1134 = vadd.f32 %v1126, %v1132
      %v1135 = vpack.c.bf16 %v1134, %v1134
      %v1136 = vld [vmem:[%s8] sm:$0xf]
      %v1137 = vld [vmem:[%s8 + $0x4] sm:$0xf]
      %v1138 = vld [vmem:[%s8 + $0x8] sm:$0xf]
      %v1139 = vld [vmem:[%s8 + $0xc] sm:$0xf]
      %v1140 = vld [vmem:[%s9] sm:$0x1]
      %v1142 = vlaneseq
      %v1143 = vshrl.u32 %v1142, 7
      %v1144 = vsub.s32 0, %v1143
      %v1145 = vrot.slane %v1140, %v1144
      %v1151 = vunpack.c.l.b16 %v1136
      %v1152 = vunpack.c.l.b16 %v1137
      %v1153 = vunpack.c.l.b16 %v1138
      %v1154 = vunpack.c.l.b16 %v1139
      %v1155 = vpack.c.b16 %v1152, %v1151
      %v1156 = vpack.c.b16 %v1154, %v1153
      %v1160 = vsel %vm1060, %v1135, 0
      %1162 = vmatprep.subr.bf16.mxu0 0
      %1163 = vmatpush1.bf16.msra.mxu0 0
      %1164 = vmatprep.subr.bf16.mxu0 0
      %1165 = vmatpush1.bf16.msra.mxu0 0
      %1166 = vmatprep.subr.bf16.mxu0 0
      %1167 = vmatpush1.bf16.msra.mxu0 0
      %1168 = vmatprep.subr.bf16.mxu0 0
      %1169 = vmatpush1.bf16.msra.mxu0 0
      %1170 = vmatprep.subr.bf16.mxu0 0
      %1171 = vmatpush1.bf16.msra.mxu0 0
      %1172 = vmatprep.subr.bf16.mxu0 0
      %1173 = vmatpush1.bf16.msra.mxu0 0
      %1174 = vmatprep.subr.bf16.mxu0 0
      %1175 = vmatpush1.bf16.msra.mxu0 %v1156
      %1176 = vmatprep.subr.bf16.mxu0 0
      %1177 = vmatpush1.bf16.msra.mxu0 %v1155
      %1178 = vmatprep.subr.bf16.mxu0 0
      %1179 = vmatpush2.bf16.msra.mxu0 0
      %1180 = vmatprep.subr.bf16.mxu0 0
      %1181 = vmatpush2.bf16.msra.mxu0 0
      %1182 = vmatprep.subr.bf16.mxu0 0
      %1183 = vmatpush2.bf16.msra.mxu0 0
      %1184 = vmatprep.subr.bf16.mxu0 0
      %1185 = vmatpush2.bf16.msra.mxu0 0
      %1186 = vmatprep.subr.bf16.mxu0 0
      %1187 = vmatpush2.bf16.msra.mxu0 0
      %1188 = vmatprep.subr.bf16.mxu0 0
      %1189 = vmatpush2.bf16.msra.mxu0 0
      %1190 = vmatprep.subr.bf16.mxu0 0
      %1191 = vmatpush2.bf16.msra.mxu0 0
      %1192 = vmatprep.subr.bf16.mxu0 0
      %1193 = vmatpush2.bf16.msra.mxu0 0
      %1194 = vmatprep.mubr.bf16.mxu0 0
      %1195 = vmatmul.mubr.bf16.gmra.mxu0 %v1160
      %v1196 = vpop.f32.mrf.mxu0
      %v1197 = vadd.f32 %v1145, %v1196
      %v1198 = vpop.f32.mrf.mxu0
      %v1199 = vpop.f32.mrf.mxu0
      %v1200 = vpop.f32.mrf.mxu0
      %1201 = vdwg.mxu0
      %v1202 = vmax.f32 %v1197, 0.0
      %v1203 = vpack.c.bf16 %v1202, %v1202
      %v1204 = vld [vmem:[%s10] sm:$0xf]
      %v1205 = vld [vmem:[%s10 + $0x4] sm:$0xf]
      %v1206 = vld [vmem:[%s10 + $0x8] sm:$0xf]
      %v1207 = vld [vmem:[%s10 + $0xc] sm:$0xf]
      %v1208 = vld [vmem:[%s10 + $0x10] sm:$0xf]
      %v1209 = vld [vmem:[%s10 + $0x14] sm:$0xf]
      %v1210 = vld [vmem:[%s10 + $0x18] sm:$0xf]
      %v1211 = vld [vmem:[%s10 + $0x1c] sm:$0xf]
      %v1212 = vld [vmem:[%s10 + $0x20] sm:$0xf]
      %v1213 = vld [vmem:[%s10 + $0x24] sm:$0xf]
      %v1214 = vld [vmem:[%s10 + $0x28] sm:$0xf]
      %v1215 = vld [vmem:[%s10 + $0x2c] sm:$0xf]
      %v1216 = vld [vmem:[%s10 + $0x30] sm:$0xf]
      %v1217 = vld [vmem:[%s10 + $0x34] sm:$0xf]
      %v1218 = vld [vmem:[%s10 + $0x38] sm:$0xf]
      %v1219 = vld [vmem:[%s10 + $0x3c] sm:$0xf]
      %v1220 = vld [vmem:[%s11] sm:$0x1]
      %v1222 = vlaneseq
      %v1223 = vshrl.u32 %v1222, 7
      %v1224 = vsub.s32 0, %v1223
      %v1225 = vrot.slane %v1220, %v1224
      %v1243 = vunpack.c.l.b16 %v1204
      %v1244 = vunpack.c.l.b16 %v1205
      %v1245 = vunpack.c.l.b16 %v1206
      %v1246 = vunpack.c.l.b16 %v1207
      %v1247 = vunpack.c.l.b16 %v1208
      %v1248 = vunpack.c.l.b16 %v1209
      %v1249 = vunpack.c.l.b16 %v1210
      %v1250 = vunpack.c.l.b16 %v1211
      %v1251 = vunpack.c.l.b16 %v1212
      %v1252 = vunpack.c.l.b16 %v1213
      %v1253 = vunpack.c.l.b16 %v1214
      %v1254 = vunpack.c.l.b16 %v1215
      %v1255 = vunpack.c.l.b16 %v1216
      %v1256 = vunpack.c.l.b16 %v1217
      %v1257 = vunpack.c.l.b16 %v1218
      %v1258 = vunpack.c.l.b16 %v1219
      %v1259 = vpack.c.b16 %v1244, %v1243
      %v1260 = vpack.c.b16 %v1246, %v1245
      %v1261 = vpack.c.b16 %v1248, %v1247
      %v1262 = vpack.c.b16 %v1250, %v1249
      %v1263 = vpack.c.b16 %v1252, %v1251
      %v1264 = vpack.c.b16 %v1254, %v1253
      %v1265 = vpack.c.b16 %v1256, %v1255
      %v1266 = vpack.c.b16 %v1258, %v1257
      %1275 = vmatprep.subr.bf16.mxu0 0
      %1276 = vmatpush1.bf16.msra.mxu0 %v1266
      %1277 = vmatprep.subr.bf16.mxu0 0
      %1278 = vmatpush1.bf16.msra.mxu0 %v1265
      %1279 = vmatprep.subr.bf16.mxu0 0
      %1280 = vmatpush1.bf16.msra.mxu0 %v1264
      %1281 = vmatprep.subr.bf16.mxu0 0
      %1282 = vmatpush1.bf16.msra.mxu0 %v1263
      %1283 = vmatprep.subr.bf16.mxu0 0
      %1284 = vmatpush1.bf16.msra.mxu0 %v1262
      %1285 = vmatprep.subr.bf16.mxu0 0
      %1286 = vmatpush1.bf16.msra.mxu0 %v1261
      %1287 = vmatprep.subr.bf16.mxu0 0
      %1288 = vmatpush1.bf16.msra.mxu0 %v1260
      %1289 = vmatprep.subr.bf16.mxu0 0
      %1290 = vmatpush1.bf16.msra.mxu0 %v1259
      %1291 = vmatprep.subr.bf16.mxu0 0
      %1292 = vmatpush2.bf16.msra.mxu0 0
      %1293 = vmatprep.subr.bf16.mxu0 0
      %1294 = vmatpush2.bf16.msra.mxu0 0
      %1295 = vmatprep.subr.bf16.mxu0 0
      %1296 = vmatpush2.bf16.msra.mxu0 0
      %1297 = vmatprep.subr.bf16.mxu0 0
      %1298 = vmatpush2.bf16.msra.mxu0 0
      %1299 = vmatprep.subr.bf16.mxu0 0
      %1300 = vmatpush2.bf16.msra.mxu0 0
      %1301 = vmatprep.subr.bf16.mxu0 0
      %1302 = vmatpush2.bf16.msra.mxu0 0
      %1303 = vmatprep.subr.bf16.mxu0 0
      %1304 = vmatpush2.bf16.msra.mxu0 0
      %1305 = vmatprep.subr.bf16.mxu0 0
      %1306 = vmatpush2.bf16.msra.mxu0 0
      %1307 = vmatprep.mubr.bf16.mxu0 0
      %1308 = vmatmul.mubr.bf16.gmra.mxu0 %v1203
      %v1309 = vpop.f32.mrf.mxu0
      %v1310 = vadd.f32 %v1225, %v1309
      %v1311 = vpop.f32.mrf.mxu0
      %v1312 = vpop.f32.mrf.mxu0
      %v1313 = vpop.f32.mrf.mxu0
      %1314 = vdwg.mxu0
      %v1315 = vadd.f32 %v1134, %v1310
      %v1316 = vsel %vm1060, %v1315, 0.0
      %1317 = vadd.xlane.f32.xlu0 %v1316
      %v1318 = vpop.xlane.xlu0 %1317
      %v1319 = vmul.f32 %v1318, %v1108
      %v1320 = vsub.f32 %v1315, %v1319
      %v1321 = vmul.f32 %v1320, %v1320
      %v1322 = vsel %vm1060, %v1321, 0.0
      %1323 = vadd.xlane.f32.xlu0 %v1322
      %v1324 = vpop.xlane.xlu0 %1323
      %v1325 = vmul.f32 %v1324, %v1108
      %v1326 = vadd.f32 %v1325, 1e-05
      %v1327 = vrsqrt.pop %v1326
      %v1328 = vmul.f32 %v1320, %v1327
      %v1329 = vld [vmem:[%s12] sm:$0x1]
      %v1331 = vlaneseq
      %v1332 = vshrl.u32 %v1331, 7
      %v1333 = vsub.s32 0, %v1332
      %v1334 = vrot.slane %v1329, %v1333
      %v1336 = vmul.f32 %v1328, %v1334
      %v1337 = vld [vmem:[%s13] sm:$0x1]
      %v1339 = vlaneseq
      %v1340 = vshrl.u32 %v1339, 7
      %v1341 = vsub.s32 0, %v1340
      %v1342 = vrot.slane %v1337, %v1341
      %v1344 = vadd.f32 %v1336, %v1342
      %1345 = vst.msk [vmem:[%s555] sm:$0xff] %vm1060, %v1344
      %p1346 = scmp.lt.s32.totalorder %s29, 1
      %s1347 = scalar_select %p1346, %s29, 1
      %p1348 = scmp.lt.s32.totalorder %s30, 0
      %s1349 = scalar_select %p1348, %s30, 0
      %s1350 = sadd.s32 %s1349, %s1347
      %s1351 = smul.addr %s1350, 8
      %s1352 = scalar_lea.vmem %s14, %s1351
      // Predicated region
      $region77: #{_lambda_.5} parent=75 // pred_check
        %p1353 = pneg %p375
      $region78: #{_lambda_.5} parent=75 // pred_check_branch
        %1355 = sbr.rel (%p1353) target = $region80
      $region79: #{_lambda_.5} parent=75 // pred_region
        _
      $region80: #{_lambda_.5} parent=75 // pred_fallthru
        _
    $region76: #{_lambda_.5} parent=5 // pred_fallthru
      _
    %p1356 = scmp.le.s32.totalorder 2, %s20
    // Predicated region
    $region81: #{_lambda_.5} parent=5 // pred_check
      %p1357 = pneg %p1356
    $region82: #{_lambda_.5} parent=5 // pred_check_branch
      %1359 = sbr.rel (%p1357) target = $region84
    $region83: #{_lambda_.5} parent=5 // pred_region
      %s1360 = ssub.s32 %s20, 2
      // Predicated region
      $region85: #{_lambda_.5} parent=83 // pred_check
        %p1361 = pneg %p381
      $region86: #{_lambda_.5} parent=83 // pred_check_branch
        %1363 = sbr.rel (%p1361) target = $region88
      $region87: #{_lambda_.5} parent=83 // pred_region
        %p1364 = scmp.lt.s32.totalorder %s31, 1
        %s1365 = scalar_select %p1364, %s31, 1
        %p1366 = scmp.lt.s32.totalorder %s32, 0
        %s1367 = scalar_select %p1366, %s32, 0
        %s1368 = sadd.s32 %s1367, %s1365
        %s1369 = smul.addr %s1368, 8
        %s1370 = scalar_lea.vmem %s14, %s1369
      $region88: #{_lambda_.5} parent=83 // pred_fallthru
        _
    $region84: #{_lambda_.5} parent=5 // pred_fallthru
      _
  $region6: #{_lambda_.5} parent=0 // loop_footer
    %s24 = sadd.s32 1, %s20
  $region7: #{_lambda_.5} parent=0 // loop_footer_branch
    %19 = sbr.rel target = $region3
  $region8: #{_lambda_.5} parent=0 // loop_exit
    _

// kernel: _lambda_.7
$region0: #{_lambda_.7}
  #allocation0 [shape = 'u32[]', space=smem, size = 0x4, offset = 0x4, fixed_abs, tag = 'smem constant byte address 0x4 - core index']
  #allocation1 [shape = 'u32[144,128]{1,0:T(1,128)}', space=vmem, size = 0x12000, scoped, tag = 'internal scratch']
  #allocation2 [shape = 'bf16[8,32]{1,0:T(8,128)(2,1)}', space=vmem, size = 0x800, scoped, tag = 'scratch operand']
  %s0 = inlined_call_operand.vmem [shape: f32[2,8,32], index: 0, kind: input, shape index: {}]
  %s1 = inlined_call_operand.vmem [shape: bf16[2,8,32], index: 1, kind: input, shape index: {}]
  %s2 = inlined_call_operand.vmem [shape: bf16[2,8,32], index: 2, kind: input, shape index: {}]
  %s3 = inlined_call_operand.vmem [shape: bf16[2,8,32], index: 3, kind: input, shape index: {}]
  %s4 = inlined_call_operand.vmem [shape: bf16[32,32], index: 4, kind: input, shape index: {}]
  %s5 = inlined_call_operand.vmem [shape: f32[1,32], index: 5, kind: input, shape index: {}]
  %s6 = inlined_call_operand.vmem [shape: f32[1,32], index: 6, kind: input, shape index: {}]
  %s7 = inlined_call_operand.vmem [shape: f32[1,32], index: 7, kind: input, shape index: {}]
  %s8 = inlined_call_operand.vmem [shape: bf16[32,128], index: 8, kind: input, shape index: {}]
  %s9 = inlined_call_operand.vmem [shape: f32[1,128], index: 9, kind: input, shape index: {}]
  %s10 = inlined_call_operand.vmem [shape: bf16[128,32], index: 10, kind: input, shape index: {}]
  %s11 = inlined_call_operand.vmem [shape: f32[1,32], index: 11, kind: input, shape index: {}]
  %s12 = inlined_call_operand.vmem [shape: f32[1,32], index: 12, kind: input, shape index: {}]
  %s13 = inlined_call_operand.vmem [shape: f32[1,32], index: 13, kind: input, shape index: {}]
  %s14 = inlined_call_operand.hbm [shape: f32[2,8,32], index: 14, kind: output, shape index: {}]
  %s15 = sld [smem:[#allocation0]]
  $region89: #{_lambda_.7} parent=0
    _
  %s17 = ssub.s32 1, %s15
  %s18 = scalar_select 0, %s17, %s15
  $region1: #{_lambda_.7} parent=0
    #allocation3 [shape = 'u8[8192]{0}', space=vmem, size = 0x2000, scoped, tag = 'output window, operand 0']
    #allocation4 [shape = 's32[2]{0}', space=sflag, size = 0x8, scoped, tag = 'scoped memory for _lambda_.7']
    %19 = vsyncpa [#allocation4], 0
    %s20 = scalar_lea.sflag [#allocation4], 1
    %21 = vsyncpa %s20, 0
    loop: start=0, step=1, limit=4
    $region2: #{_lambda_.7} parent=1 // loop_pre_header
      _
    $region3: #{_lambda_.7} parent=1 // loop_header
      %s23 = sphi 0, %s27
      %p24 = scmp.ge.s32.totalorder %s23, 4
      %s30 = sphi 0, %s42
      %s31 = sphi 0, %s38
      %s32 = sphi 0, %s30
      %s33 = sphi 0, %s31
      %s34 = sphi 0, %s32
      %s35 = sphi 0, %s33
      %s47 = sphi 0, %s49
      %s50 = sphi 0, %s47
      %s51 = sphi 0, %s50
      %s67 = sphi 0, %s51
      %s75 = sphi 0, %s77
      %s78 = sphi 0, %s75
      %s79 = sphi 0, %s78
      %s95 = sphi 0, %s79
      %s101 = sphi 0, %s103
      %s104 = sphi 0, %s101
      %s105 = sphi 0, %s104
      %s121 = sphi 0, %s105
      %s127 = sphi 0, %s129
      %s130 = sphi 0, %s127
      %s131 = sphi 0, %s130
      %s147 = sphi 0, %s131
      %s151 = sphi 0, %s151
      %s153 = sphi 0, %s151
      %s154 = sphi 0, %s153
      %s168 = sphi 0, %s154
      %s172 = sphi 0, %s172
      %s174 = sphi 0, %s172
      %s175 = sphi 0, %s174
      %s189 = sphi 0, %s175
      %s193 = sphi 0, %s193
      %s195 = sphi 0, %s193
      %s196 = sphi 0, %s195
      %s210 = sphi 0, %s196
      %s214 = sphi 0, %s214
      %s216 = sphi 0, %s214
      %s217 = sphi 0, %s216
      %s231 = sphi 0, %s217
      %s235 = sphi 0, %s235
      %s237 = sphi 0, %s235
      %s238 = sphi 0, %s237
      %s252 = sphi 0, %s238
      %s256 = sphi 0, %s256
      %s258 = sphi 0, %s256
      %s259 = sphi 0, %s258
      %s273 = sphi 0, %s259
      %s277 = sphi 0, %s277
      %s279 = sphi 0, %s277
      %s280 = sphi 0, %s279
      %s294 = sphi 0, %s280
      %s298 = sphi 0, %s298
      %s300 = sphi 0, %s298
      %s301 = sphi 0, %s300
      %s315 = sphi 0, %s301
      %s319 = sphi 0, %s319
      %s321 = sphi 0, %s319
      %s322 = sphi 0, %s321
      %s336 = sphi 0, %s322
      %s340 = sphi 0, %s340
      %s342 = sphi 0, %s340
      %s343 = sphi 0, %s342
      %s357 = sphi 0, %s343
      %s365 = sphi 0, %s367
      %s368 = sphi 0, %s365
      %s369 = sphi 0, %s368
      %s385 = sphi 0, %s369
    $region4: #{_lambda_.7} parent=1 // loop_header_branch
      %26 = sbr.rel (%p24) target = $region8
    $region5: #{_lambda_.7} parent=1 // loop_body
      %s28 = ssub.s32 %s23, 1
      %s29 = ssub.s32 %s23, 2
      %s36 = sadd.s32 1, %s31
      %p37 = scmp.ge.s32.totalorder %s36, 1
      %s38 = scalar_select %p37, 0, %s36
      %s39 = sadd.s32 1, %s30
      %s40 = scalar_select %p37, %s39, %s30
      %p41 = scmp.ge.s32.totalorder %s40, 2
      %s42 = scalar_select %p41, 0, %s40
      %s43 = ssub.s32 %s30, %s42
      %s44 = ssub.s32 %s31, %s38
      %s45 = sor.u32 %s43, %s44
      %p46 = scmp.eq.s32.totalorder %s45, 0
      %s48 = sadd.s32 %s47, 1
      %s49 = scalar_select %p46, %s47, %s48
      %p52 = pneg %p46
      %p53 = scmp.eq.s32.totalorder %s23, 1
      %p54 = por %p52, %p53
      %p55 = scmp.ne.s32.totalorder %s47, %s50
      %p56 = scmp.eq.s32.totalorder %s23, 0
      %p57 = por %p55, %p56
      %p58 = scmp.ne.s32.totalorder %s47, %s50
      %p59 = scmp.eq.s32.totalorder %s28, 1
      %p60 = por %p58, %p59
      %p61 = scmp.ne.s32.totalorder %s50, %s51
      %p62 = scmp.eq.s32.totalorder %s28, 0
      %p63 = por %p61, %p62
      %p64 = scmp.ne.s32.totalorder %s50, %s51
      %p65 = scmp.eq.s32.totalorder %s29, 1
      %p66 = por %p64, %p65
      %p68 = scmp.ne.s32.totalorder %s51, %s67
      %p69 = scmp.eq.s32.totalorder %s29, 0
      %p70 = por %p68, %p69
      %s71 = ssub.s32 %s30, %s42
      %s72 = ssub.s32 %s31, %s38
      %s73 = sor.u32 %s71, %s72
      %p74 = scmp.eq.s32.totalorder %s73, 0
      %s76 = sadd.s32 %s75, 1
      %s77 = scalar_select %p74, %s75, %s76
      %p80 = pneg %p74
      %p81 = scmp.eq.s32.totalorder %s23, 1
      %p82 = por %p80, %p81
      %p83 = scmp.ne.s32.totalorder %s75, %s78
      %p84 = scmp.eq.s32.totalorder %s23, 0
      %p85 = por %p83, %p84
      %p86 = scmp.ne.s32.totalorder %s75, %s78
      %p87 = scmp.eq.s32.totalorder %s28, 1
      %p88 = por %p86, %p87
      %p89 = scmp.ne.s32.totalorder %s78, %s79
      %p90 = scmp.eq.s32.totalorder %s28, 0
      %p91 = por %p89, %p90
      %p92 = scmp.ne.s32.totalorder %s78, %s79
      %p93 = scmp.eq.s32.totalorder %s29, 1
      %p94 = por %p92, %p93
      %p96 = scmp.ne.s32.totalorder %s79, %s95
      %p97 = scmp.eq.s32.totalorder %s29, 0
      %p98 = por %p96, %p97
      %s99 = ssub.s32 %s30, %s42
      %p100 = scmp.eq.s32.totalorder %s99, 0
      %s102 = sadd.s32 %s101, 1
      %s103 = scalar_select %p100, %s101, %s102
      %p106 = pneg %p100
      %p107 = scmp.eq.s32.totalorder %s23, 1
      %p108 = por %p106, %p107
      %p109 = scmp.ne.s32.totalorder %s101, %s104
      %p110 = scmp.eq.s32.totalorder %s23, 0
      %p111 = por %p109, %p110
      %p112 = scmp.ne.s32.totalorder %s101, %s104
      %p113 = scmp.eq.s32.totalorder %s28, 1
      %p114 = por %p112, %p113
      %p115 = scmp.ne.s32.totalorder %s104, %s105
      %p116 = scmp.eq.s32.totalorder %s28, 0
      %p117 = por %p115, %p116
      %p118 = scmp.ne.s32.totalorder %s104, %s105
      %p119 = scmp.eq.s32.totalorder %s29, 1
      %p120 = por %p118, %p119
      %p122 = scmp.ne.s32.totalorder %s105, %s121
      %p123 = scmp.eq.s32.totalorder %s29, 0
      %p124 = por %p122, %p123
      %s125 = ssub.s32 %s30, %s42
      %p126 = scmp.eq.s32.totalorder %s125, 0
      %s128 = sadd.s32 %s127, 1
      %s129 = scalar_select %p126, %s127, %s128
      %p132 = pneg %p126
      %p133 = scmp.eq.s32.totalorder %s23, 1
      %p134 = por %p132, %p133
      %p135 = scmp.ne.s32.totalorder %s127, %s130
      %p136 = scmp.eq.s32.totalorder %s23, 0
      %p137 = por %p135, %p136
      %p138 = scmp.ne.s32.totalorder %s127, %s130
      %p139 = scmp.eq.s32.totalorder %s28, 1
      %p140 = por %p138, %p139
      %p141 = scmp.ne.s32.totalorder %s130, %s131
      %p142 = scmp.eq.s32.totalorder %s28, 0
      %p143 = por %p141, %p142
      %p144 = scmp.ne.s32.totalorder %s130, %s131
      %p145 = scmp.eq.s32.totalorder %s29, 1
      %p146 = por %p144, %p145
      %p148 = scmp.ne.s32.totalorder %s131, %s147
      %p149 = scmp.eq.s32.totalorder %s29, 0
      %p150 = por %p148, %p149
      %s152 = sadd.s32 %s151, 1
      %p155 = scmp.eq.s32.totalorder %s23, 1
      %p156 = scmp.ne.s32.totalorder %s151, %s153
      %p157 = scmp.eq.s32.totalorder %s23, 0
      %p158 = por %p156, %p157
      %p159 = scmp.ne.s32.totalorder %s151, %s153
      %p160 = scmp.eq.s32.totalorder %s28, 1
      %p161 = por %p159, %p160
      %p162 = scmp.ne.s32.totalorder %s153, %s154
      %p163 = scmp.eq.s32.totalorder %s28, 0
      %p164 = por %p162, %p163
      %p165 = scmp.ne.s32.totalorder %s153, %s154
      %p166 = scmp.eq.s32.totalorder %s29, 1
      %p167 = por %p165, %p166
      %p169 = scmp.ne.s32.totalorder %s154, %s168
      %p170 = scmp.eq.s32.totalorder %s29, 0
      %p171 = por %p169, %p170
      %s173 = sadd.s32 %s172, 1
      %p176 = scmp.eq.s32.totalorder %s23, 1
      %p177 = scmp.ne.s32.totalorder %s172, %s174
      %p178 = scmp.eq.s32.totalorder %s23, 0
      %p179 = por %p177, %p178
      %p180 = scmp.ne.s32.totalorder %s172, %s174
      %p181 = scmp.eq.s32.totalorder %s28, 1
      %p182 = por %p180, %p181
      %p183 = scmp.ne.s32.totalorder %s174, %s175
      %p184 = scmp.eq.s32.totalorder %s28, 0
      %p185 = por %p183, %p184
      %p186 = scmp.ne.s32.totalorder %s174, %s175
      %p187 = scmp.eq.s32.totalorder %s29, 1
      %p188 = por %p186, %p187
      %p190 = scmp.ne.s32.totalorder %s175, %s189
      %p191 = scmp.eq.s32.totalorder %s29, 0
      %p192 = por %p190, %p191
      %s194 = sadd.s32 %s193, 1
      %p197 = scmp.eq.s32.totalorder %s23, 1
      %p198 = scmp.ne.s32.totalorder %s193, %s195
      %p199 = scmp.eq.s32.totalorder %s23, 0
      %p200 = por %p198, %p199
      %p201 = scmp.ne.s32.totalorder %s193, %s195
      %p202 = scmp.eq.s32.totalorder %s28, 1
      %p203 = por %p201, %p202
      %p204 = scmp.ne.s32.totalorder %s195, %s196
      %p205 = scmp.eq.s32.totalorder %s28, 0
      %p206 = por %p204, %p205
      %p207 = scmp.ne.s32.totalorder %s195, %s196
      %p208 = scmp.eq.s32.totalorder %s29, 1
      %p209 = por %p207, %p208
      %p211 = scmp.ne.s32.totalorder %s196, %s210
      %p212 = scmp.eq.s32.totalorder %s29, 0
      %p213 = por %p211, %p212
      %s215 = sadd.s32 %s214, 1
      %p218 = scmp.eq.s32.totalorder %s23, 1
      %p219 = scmp.ne.s32.totalorder %s214, %s216
      %p220 = scmp.eq.s32.totalorder %s23, 0
      %p221 = por %p219, %p220
      %p222 = scmp.ne.s32.totalorder %s214, %s216
      %p223 = scmp.eq.s32.totalorder %s28, 1
      %p224 = por %p222, %p223
      %p225 = scmp.ne.s32.totalorder %s216, %s217
      %p226 = scmp.eq.s32.totalorder %s28, 0
      %p227 = por %p225, %p226
      %p228 = scmp.ne.s32.totalorder %s216, %s217
      %p229 = scmp.eq.s32.totalorder %s29, 1
      %p230 = por %p228, %p229
      %p232 = scmp.ne.s32.totalorder %s217, %s231
      %p233 = scmp.eq.s32.totalorder %s29, 0
      %p234 = por %p232, %p233
      %s236 = sadd.s32 %s235, 1
      %p239 = scmp.eq.s32.totalorder %s23, 1
      %p240 = scmp.ne.s32.totalorder %s235, %s237
      %p241 = scmp.eq.s32.totalorder %s23, 0
      %p242 = por %p240, %p241
      %p243 = scmp.ne.s32.totalorder %s235, %s237
      %p244 = scmp.eq.s32.totalorder %s28, 1
      %p245 = por %p243, %p244
      %p246 = scmp.ne.s32.totalorder %s237, %s238
      %p247 = scmp.eq.s32.totalorder %s28, 0
      %p248 = por %p246, %p247
      %p249 = scmp.ne.s32.totalorder %s237, %s238
      %p250 = scmp.eq.s32.totalorder %s29, 1
      %p251 = por %p249, %p250
      %p253 = scmp.ne.s32.totalorder %s238, %s252
      %p254 = scmp.eq.s32.totalorder %s29, 0
      %p255 = por %p253, %p254
      %s257 = sadd.s32 %s256, 1
      %p260 = scmp.eq.s32.totalorder %s23, 1
      %p261 = scmp.ne.s32.totalorder %s256, %s258
      %p262 = scmp.eq.s32.totalorder %s23, 0
      %p263 = por %p261, %p262
      %p264 = scmp.ne.s32.totalorder %s256, %s258
      %p265 = scmp.eq.s32.totalorder %s28, 1
      %p266 = por %p264, %p265
      %p267 = scmp.ne.s32.totalorder %s258, %s259
      %p268 = scmp.eq.s32.totalorder %s28, 0
      %p269 = por %p267, %p268
      %p270 = scmp.ne.s32.totalorder %s258, %s259
      %p271 = scmp.eq.s32.totalorder %s29, 1
      %p272 = por %p270, %p271
      %p274 = scmp.ne.s32.totalorder %s259, %s273
      %p275 = scmp.eq.s32.totalorder %s29, 0
      %p276 = por %p274, %p275
      %s278 = sadd.s32 %s277, 1
      %p281 = scmp.eq.s32.totalorder %s23, 1
      %p282 = scmp.ne.s32.totalorder %s277, %s279
      %p283 = scmp.eq.s32.totalorder %s23, 0
      %p284 = por %p282, %p283
      %p285 = scmp.ne.s32.totalorder %s277, %s279
      %p286 = scmp.eq.s32.totalorder %s28, 1
      %p287 = por %p285, %p286
      %p288 = scmp.ne.s32.totalorder %s279, %s280
      %p289 = scmp.eq.s32.totalorder %s28, 0
      %p290 = por %p288, %p289
      %p291 = scmp.ne.s32.totalorder %s279, %s280
      %p292 = scmp.eq.s32.totalorder %s29, 1
      %p293 = por %p291, %p292
      %p295 = scmp.ne.s32.totalorder %s280, %s294
      %p296 = scmp.eq.s32.totalorder %s29, 0
      %p297 = por %p295, %p296
      %s299 = sadd.s32 %s298, 1
      %p302 = scmp.eq.s32.totalorder %s23, 1
      %p303 = scmp.ne.s32.totalorder %s298, %s300
      %p304 = scmp.eq.s32.totalorder %s23, 0
      %p305 = por %p303, %p304
      %p306 = scmp.ne.s32.totalorder %s298, %s300
      %p307 = scmp.eq.s32.totalorder %s28, 1
      %p308 = por %p306, %p307
      %p309 = scmp.ne.s32.totalorder %s300, %s301
      %p310 = scmp.eq.s32.totalorder %s28, 0
      %p311 = por %p309, %p310
      %p312 = scmp.ne.s32.totalorder %s300, %s301
      %p313 = scmp.eq.s32.totalorder %s29, 1
      %p314 = por %p312, %p313
      %p316 = scmp.ne.s32.totalorder %s301, %s315
      %p317 = scmp.eq.s32.totalorder %s29, 0
      %p318 = por %p316, %p317
      %s320 = sadd.s32 %s319, 1
      %p323 = scmp.eq.s32.totalorder %s23, 1
      %p324 = scmp.ne.s32.totalorder %s319, %s321
      %p325 = scmp.eq.s32.totalorder %s23, 0
      %p326 = por %p324, %p325
      %p327 = scmp.ne.s32.totalorder %s319, %s321
      %p328 = scmp.eq.s32.totalorder %s28, 1
      %p329 = por %p327, %p328
      %p330 = scmp.ne.s32.totalorder %s321, %s322
      %p331 = scmp.eq.s32.totalorder %s28, 0
      %p332 = por %p330, %p331
      %p333 = scmp.ne.s32.totalorder %s321, %s322
      %p334 = scmp.eq.s32.totalorder %s29, 1
      %p335 = por %p333, %p334
      %p337 = scmp.ne.s32.totalorder %s322, %s336
      %p338 = scmp.eq.s32.totalorder %s29, 0
      %p339 = por %p337, %p338
      %s341 = sadd.s32 %s340, 1
      %p344 = scmp.eq.s32.totalorder %s23, 1
      %p345 = scmp.ne.s32.totalorder %s340, %s342
      %p346 = scmp.eq.s32.totalorder %s23, 0
      %p347 = por %p345, %p346
      %p348 = scmp.ne.s32.totalorder %s340, %s342
      %p349 = scmp.eq.s32.totalorder %s28, 1
      %p350 = por %p348, %p349
      %p351 = scmp.ne.s32.totalorder %s342, %s343
      %p352 = scmp.eq.s32.totalorder %s28, 0
      %p353 = por %p351, %p352
      %p354 = scmp.ne.s32.totalorder %s342, %s343
      %p355 = scmp.eq.s32.totalorder %s29, 1
      %p356 = por %p354, %p355
      %p358 = scmp.ne.s32.totalorder %s343, %s357
      %p359 = scmp.eq.s32.totalorder %s29, 0
      %p360 = por %p358, %p359
      %s361 = ssub.s32 %s30, %s42
      %s362 = ssub.s32 %s31, %s38
      %s363 = sor.u32 %s361, %s362
      %p364 = scmp.eq.s32.totalorder %s363, 0
      %s366 = sadd.s32 %s365, 1
      %s367 = scalar_select %p364, %s365, %s366
      %p370 = pneg %p364
      %p371 = scmp.eq.s32.totalorder %s23, 1
      %p372 = por %p370, %p371
      %p373 = scmp.ne.s32.totalorder %s365, %s368
      %p374 = scmp.eq.s32.totalorder %s23, 0
      %p375 = por %p373, %p374
      %p376 = scmp.ne.s32.totalorder %s365, %s368
      %p377 = scmp.eq.s32.totalorder %s28, 1
      %p378 = por %p376, %p377
      %p379 = scmp.ne.s32.totalorder %s368, %s369
      %p380 = scmp.eq.s32.totalorder %s28, 0
      %p381 = por %p379, %p380
      %p382 = scmp.ne.s32.totalorder %s368, %s369
      %p383 = scmp.eq.s32.totalorder %s29, 1
      %p384 = por %p382, %p383
      %p386 = scmp.ne.s32.totalorder %s369, %s385
      %p387 = scmp.eq.s32.totalorder %s29, 0
      %p388 = por %p386, %p387
      %p389 = scmp.le.s32.totalorder 1, %s23
      %p390 = scmp.lt.s32.totalorder %s23, 3
      %p391 = pnand %p389, %p390
      %p392 = pneg %p391
      // Predicated region
      $region9: #{_lambda_.7} parent=5 // pred_check
        _
      $region10: #{_lambda_.7} parent=5 // pred_check_branch
        %394 = sbr.rel (%p391) target = $region12
      $region11: #{_lambda_.7} parent=5 // pred_region
        %s395 = ssub.s32 %s23, 1
        // Predicated region
        $region13: #{_lambda_.7} parent=11 // pred_check
          %p396 = pneg %p164
        $region14: #{_lambda_.7} parent=11 // pred_check_branch
          %398 = sbr.rel (%p396) target = $region16
        $region15: #{_lambda_.7} parent=11 // pred_region
          _
        $region16: #{_lambda_.7} parent=11 // pred_fallthru
          _
        // Predicated region
        $region17: #{_lambda_.7} parent=11 // pred_check
          %p399 = pneg %p185
        $region18: #{_lambda_.7} parent=11 // pred_check_branch
          %401 = sbr.rel (%p399) target = $region20
        $region19: #{_lambda_.7} parent=11 // pred_region
          _
        $region20: #{_lambda_.7} parent=11 // pred_fallthru
          _
        // Predicated region
        $region21: #{_lambda_.7} parent=11 // pred_check
          %p402 = pneg %p206
        $region22: #{_lambda_.7} parent=11 // pred_check_branch
          %404 = sbr.rel (%p402) target = $region24
        $region23: #{_lambda_.7} parent=11 // pred_region
          _
        $region24: #{_lambda_.7} parent=11 // pred_fallthru
          _
        // Predicated region
        $region25: #{_lambda_.7} parent=11 // pred_check
          %p405 = pneg %p227
        $region26: #{_lambda_.7} parent=11 // pred_check_branch
          %407 = sbr.rel (%p405) target = $region28
        $region27: #{_lambda_.7} parent=11 // pred_region
          _
        $region28: #{_lambda_.7} parent=11 // pred_fallthru
          _
        // Predicated region
        $region29: #{_lambda_.7} parent=11 // pred_check
          %p408 = pneg %p248
        $region30: #{_lambda_.7} parent=11 // pred_check_branch
          %410 = sbr.rel (%p408) target = $region32
        $region31: #{_lambda_.7} parent=11 // pred_region
          _
        $region32: #{_lambda_.7} parent=11 // pred_fallthru
          _
        // Predicated region
        $region33: #{_lambda_.7} parent=11 // pred_check
          %p411 = pneg %p269
        $region34: #{_lambda_.7} parent=11 // pred_check_branch
          %413 = sbr.rel (%p411) target = $region36
        $region35: #{_lambda_.7} parent=11 // pred_region
          _
        $region36: #{_lambda_.7} parent=11 // pred_fallthru
          _
        // Predicated region
        $region37: #{_lambda_.7} parent=11 // pred_check
          %p414 = pneg %p290
        $region38: #{_lambda_.7} parent=11 // pred_check_branch
          %416 = sbr.rel (%p414) target = $region40
        $region39: #{_lambda_.7} parent=11 // pred_region
          _
        $region40: #{_lambda_.7} parent=11 // pred_fallthru
          _
        // Predicated region
        $region41: #{_lambda_.7} parent=11 // pred_check
          %p417 = pneg %p311
        $region42: #{_lambda_.7} parent=11 // pred_check_branch
          %419 = sbr.rel (%p417) target = $region44
        $region43: #{_lambda_.7} parent=11 // pred_region
          _
        $region44: #{_lambda_.7} parent=11 // pred_fallthru
          _
        // Predicated region
        $region45: #{_lambda_.7} parent=11 // pred_check
          %p420 = pneg %p332
        $region46: #{_lambda_.7} parent=11 // pred_check_branch
          %422 = sbr.rel (%p420) target = $region48
        $region47: #{_lambda_.7} parent=11 // pred_region
          _
        $region48: #{_lambda_.7} parent=11 // pred_fallthru
          _
        // Predicated region
        $region49: #{_lambda_.7} parent=11 // pred_check
          %p423 = pneg %p353
        $region50: #{_lambda_.7} parent=11 // pred_check_branch
          %425 = sbr.rel (%p423) target = $region52
        $region51: #{_lambda_.7} parent=11 // pred_region
          _
        $region52: #{_lambda_.7} parent=11 // pred_fallthru
          _
      $region12: #{_lambda_.7} parent=5 // pred_fallthru
        _
      %p426 = scmp.lt.s32.totalorder %s23, 2
      // Predicated region
      $region53: #{_lambda_.7} parent=5 // pred_check
        %p427 = pneg %p426
      $region54: #{_lambda_.7} parent=5 // pred_check_branch
        %429 = sbr.rel (%p427) target = $region56
      $region55: #{_lambda_.7} parent=5 // pred_region
        // Predicated region
        $region57: #{_lambda_.7} parent=55 // pred_check
          %p430 = pneg %p57
        $region58: #{_lambda_.7} parent=55 // pred_check_branch
          %432 = sbr.rel (%p430) target = $region60
        $region59: #{_lambda_.7} parent=55 // pred_region
          %p433 = scmp.lt.s32.totalorder %s30, 1
          %s434 = scalar_select %p433, %s30, 1
          %p435 = scmp.lt.s32.totalorder %s31, 0
          %s436 = scalar_select %p435, %s31, 0
          %s437 = sadd.s32 %s436, %s434
          %s438 = smul.addr %s437, 8
          %s439 = scalar_lea.vmem %s0, %s438
        $region60: #{_lambda_.7} parent=55 // pred_fallthru
          _
        // Predicated region
        $region61: #{_lambda_.7} parent=55 // pred_check
          %p440 = pneg %p85
        $region62: #{_lambda_.7} parent=55 // pred_check_branch
          %442 = sbr.rel (%p440) target = $region64
        $region63: #{_lambda_.7} parent=55 // pred_region
          %p443 = scmp.lt.s32.totalorder %s30, 1
          %s444 = scalar_select %p443, %s30, 1
          %p445 = scmp.lt.s32.totalorder %s31, 0
          %s446 = scalar_select %p445, %s31, 0
          %s447 = sadd.s32 %s446, %s444
          %s448 = smul.addr %s447, 4
          %s449 = scalar_lea.vmem %s1, %s448
        $region64: #{_lambda_.7} parent=55 // pred_fallthru
          _
        // Predicated region
        $region65: #{_lambda_.7} parent=55 // pred_check
          %p450 = pneg %p111
        $region66: #{_lambda_.7} parent=55 // pred_check_branch
          %452 = sbr.rel (%p450) target = $region68
        $region67: #{_lambda_.7} parent=55 // pred_region
          %p453 = scmp.lt.s32.totalorder %s30, 1
          %s454 = scalar_select %p453, %s30, 1
          %s455 = smul.addr %s454, 4
          %s456 = scalar_lea.vmem %s2, %s455
        $region68: #{_lambda_.7} parent=55 // pred_fallthru
          _
        // Predicated region
        $region69: #{_lambda_.7} parent=55 // pred_check
          %p457 = pneg %p137
        $region70: #{_lambda_.7} parent=55 // pred_check_branch
          %459 = sbr.rel (%p457) target = $region72
        $region71: #{_lambda_.7} parent=55 // pred_region
          %p460 = scmp.lt.s32.totalorder %s30, 1
          %s461 = scalar_select %p460, %s30, 1
          %s462 = smul.addr %s461, 4
          %s463 = scalar_lea.vmem %s3, %s462
        $region72: #{_lambda_.7} parent=55 // pred_fallthru
          _
      $region56: #{_lambda_.7} parent=5 // pred_fallthru
        _
      %p464 = scmp.le.s32.totalorder 1, %s23
      %p465 = scmp.lt.s32.totalorder %s23, 3
      %p466 = pnand %p464, %p465
      %p467 = pneg %p466
      // Predicated region
      $region73: #{_lambda_.7} parent=5 // pred_check
        _
      $region74: #{_lambda_.7} parent=5 // pred_check_branch
        %469 = sbr.rel (%p466) target = $region76
      $region75: #{_lambda_.7} parent=5 // pred_region
        %s470 = ssub.s32 %s23, 1
        %p471 = scmp.lt.s32.totalorder %s32, 1
        %s472 = scalar_select %p471, %s32, 1
        %p473 = scmp.lt.s32.totalorder %s33, 0
        %s474 = scalar_select %p473, %s33, 0
        %s475 = sadd.s32 %s474, %s472
        %s476 = smul.addr %s475, 8
        %s477 = scalar_lea.vmem %s0, %s476
        %p478 = pneg %p63
        %p479 = pneg %p60
        %p480 = scmp.lt.s32.totalorder %s32, 1
        %s481 = scalar_select %p480, %s32, 1
        %p482 = scmp.lt.s32.totalorder %s33, 0
        %s483 = scalar_select %p482, %s33, 0
        %s484 = sadd.s32 %s483, %s481
        %s485 = smul.addr %s484, 4
        %s486 = scalar_lea.vmem %s1, %s485
        %p487 = pneg %p91
        %p488 = pneg %p88
        %p489 = scmp.lt.s32.totalorder %s32, 1
        %s490 = scalar_select %p489, %s32, 1
        %s491 = smul.addr %s490, 4
        %s492 = scalar_lea.vmem %s2, %s491
        %p493 = pneg %p117
        %p494 = pneg %p114
        %p495 = scmp.lt.s32.totalorder %s32, 1
        %s496 = scalar_select %p495, %s32, 1
        %s497 = smul.addr %s496, 4
        %s498 = scalar_lea.vmem %s3, %s497
        %p499 = pneg %p143
        %p500 = pneg %p140
        %p501 = pneg %p164
        %p502 = pneg %p161
        %p503 = pneg %p185
        %p504 = pneg %p182
        %p505 = pneg %p206
        %p506 = pneg %p203
        %p507 = pneg %p227
        %p508 = pneg %p224
        %p509 = pneg %p248
        %p510 = pneg %p245
        %p511 = pneg %p269
        %p512 = pneg %p266
        %p513 = pneg %p290
        %p514 = pneg %p287
        %p515 = pneg %p311
        %p516 = pneg %p308
        %p517 = pneg %p332
        %p518 = pneg %p329
        %p519 = pneg %p353
        %p520 = pneg %p350
        %p521 = pneg %p381
        %p522 = pneg %p378
        %s523 = sand.u32 %s368, 1
        %s524 = scalar_lea.sflag [#allocation4], %s523
        %s525 = sand.u32 %s368, 1
        %s526 = smul.addr %s525, 8
        %s527 = scalar_lea.vmem [#allocation3], %s526
        %p528 = scmp.lt.s32.totalorder %s32, 1
        %s529 = scalar_select %p528, %s32, 1
        %p530 = scmp.lt.s32.totalorder %s33, 0
        %s531 = scalar_select %p530, %s33, 0
        %s532 = sadd.s32 %s531, %s529
        %s533 = smul.addr %s532, 8
        %s534 = scalar_lea.vmem %s0, %s533
        %p535 = scmp.lt.s32.totalorder %s32, 1
        %s536 = scalar_select %p535, %s32, 1
        %p537 = scmp.lt.s32.totalorder %s33, 0
        %s538 = scalar_select %p537, %s33, 0
        %s539 = sadd.s32 %s538, %s536
        %s540 = smul.addr %s539, 4
        %s541 = scalar_lea.vmem %s1, %s540
        %p542 = scmp.lt.s32.totalorder %s32, 1
        %s543 = scalar_select %p542, %s32, 1
        %s544 = smul.addr %s543, 4
        %s545 = scalar_lea.vmem %s2, %s544
        %p546 = scmp.lt.s32.totalorder %s32, 1
        %s547 = scalar_select %p546, %s32, 1
        %s548 = smul.addr %s547, 4
        %s549 = scalar_lea.vmem %s3, %s548
        %v551 = vld [vmem:[%s534] sm:$0xff]
        %v552 = vld [vmem:[%s541] sm:$0xf]
        %v553 = vld [vmem:[%s545] sm:$0xf]
        %v554 = vld [vmem:[%s549] sm:$0xf]
        %vm555 = vcmask 64512
        %v557 = vsel %vm555, %v552, 0
        %v560 = vsel %vm555, %v553, 0
        %562 = vmatprep.subr.bf16.mxu0 0
        %563 = vmatpush1.bf16.xpose.msra.mxu0 0
        %564 = vmatprep.subr.bf16.mxu0 0
        %565 = vmatpush1.bf16.xpose.msra.mxu0 0
        %566 = vmatprep.subr.bf16.mxu0 0
        %567 = vmatpush1.bf16.xpose.msra.mxu0 0
        %568 = vmatprep.subr.bf16.mxu0 0
        %569 = vmatpush1.bf16.xpose.msra.mxu0 0
        %570 = vmatprep.subr.bf16.mxu0 0
        %571 = vmatpush1.bf16.xpose.msra.mxu0 0
        %572 = vmatprep.subr.bf16.mxu0 0
        %573 = vmatpush1.bf16.xpose.msra.mxu0 0
        %574 = vmatprep.subr.bf16.mxu0 0
        %575 = vmatpush1.bf16.xpose.msra.mxu0 0
        %576 = vmatprep.subr.bf16.mxu0 0
        %577 = vmatpush1.bf16.xpose.msra.mxu0 %v560
        %578 = vmatprep.subr.bf16.mxu0 0
        %579 = vmatpush2.bf16.xpose.msra.mxu0 0
        %580 = vmatprep.subr.bf16.mxu0 0
        %581 = vmatpush2.bf16.xpose.msra.mxu0 0
        %582 = vmatprep.subr.bf16.mxu0 0
        %583 = vmatpush2.bf16.xpose.msra.mxu0 0
        %584 = vmatprep.subr.bf16.mxu0 0
        %585 = vmatpush2.bf16.xpose.msra.mxu0 0
        %586 = vmatprep.subr.bf16.mxu0 0
        %587 = vmatpush2.bf16.xpose.msra.mxu0 0
        %588 = vmatprep.subr.bf16.mxu0 0
        %589 = vmatpush2.bf16.xpose.msra.mxu0 0
        %590 = vmatprep.subr.bf16.mxu0 0
        %591 = vmatpush2.bf16.xpose.msra.mxu0 0
        %592 = vmatprep.subr.bf16.mxu0 0
        %593 = vmatpush2.bf16.xpose.msra.mxu0 0
        %594 = vmatprep.mubr.bf16.mxu0 0
        %595 = vmatmul.mubr.bf16.gmra.mxu0 %v557
        %v596 = vpop.f32.mrf.mxu0
        %v597 = vadd.f32 0.0, %v596
        %v598 = vpop.f32.mrf.mxu0
        %v599 = vpop.f32.mrf.mxu0
        %v600 = vpop.f32.mrf.mxu0
        %601 = vdwg.mxu0
        %v602 = vsel %vm555, %v597, -inf
        %603 = vmax.xlane.f32.xlu0 %v602
        %v604 = vpop.xlane.xlu0 %603
        %v605 = vsub.f32 %v597, %v604
        %v606 = vmul.f32 %v605, 1.442695
        %v607 = vpow.pop %v606
        %v608 = vsel %vm555, %v607, 0.0
        %609 = vadd.xlane.f32.xlu0 %v608
        %v610 = vpop.xlane.xlu0 %609
        %v611 = vrcp.pop %v610
        %v612 = vmul.f32 %v607, %v611
        %v613 = vpack.c.bf16 %v612, %v612
        %v615 = vsel %vm555, %v613, 0
        %vm617 = vcmask 1043456
        %v619 = vsel %vm617, %v554, 0
        %621 = vmatprep.subr.bf16.mxu0 0
        %622 = vmatpush1.bf16.msra.mxu0 0
        %623 = vmatprep.subr.bf16.mxu0 0
        %624 = vmatpush1.bf16.msra.mxu0 0
        %625 = vmatprep.subr.bf16.mxu0 0
        %626 = vmatpush1.bf16.msra.mxu0 0
        %627 = vmatprep.subr.bf16.mxu0 0
        %628 = vmatpush1.bf16.msra.mxu0 0
        %629 = vmatprep.subr.bf16.mxu0 0
        %630 = vmatpush1.bf16.msra.mxu0 0
        %631 = vmatprep.subr.bf16.mxu0 0
        %632 = vmatpush1.bf16.msra.mxu0 0
        %633 = vmatprep.subr.bf16.mxu0 0
        %634 = vmatpush1.bf16.msra.mxu0 0
        %635 = vmatprep.subr.bf16.mxu0 0
        %636 = vmatpush1.bf16.msra.mxu0 %v619
        %637 = vmatprep.subr.bf16.mxu0 0
        %638 = vmatpush2.bf16.msra.mxu0 0
        %639 = vmatprep.subr.bf16.mxu0 0
        %640 = vmatpush2.bf16.msra.mxu0 0
        %641 = vmatprep.subr.bf16.mxu0 0
        %642 = vmatpush2.bf16.msra.mxu0 0
        %643 = vmatprep.subr.bf16.mxu0 0
        %644 = vmatpush2.bf16.msra.mxu0 0
        %645 = vmatprep.subr.bf16.mxu0 0
        %646 = vmatpush2.bf16.msra.mxu0 0
        %647 = vmatprep.subr.bf16.mxu0 0
        %648 = vmatpush2.bf16.msra.mxu0 0
        %649 = vmatprep.subr.bf16.mxu0 0
        %650 = vmatpush2.bf16.msra.mxu0 0
        %651 = vmatprep.subr.bf16.mxu0 0
        %652 = vmatpush2.bf16.msra.mxu0 0
        %653 = vmatprep.mubr.bf16.mxu0 0
        %654 = vmatmul.mubr.bf16.gmra.mxu0 %v615
        %v655 = vpop.f32.mrf.mxu0
        %v656 = vadd.f32 0.0, %v655
        %v657 = vpop.f32.mrf.mxu0
        %v658 = vpop.f32.mrf.mxu0
        %v659 = vpop.f32.mrf.mxu0
        %660 = vdwg.mxu0
        %v661 = vpack.c.bf16 %v656, %v656
        %vm662 = vcmask 60416
        %663 = vst.msk [vmem:[#allocation2] sm:$0xf] %vm662, %v661
        %v665 = vunpack.c.l.b16 %v552
        %v666 = vpack.c.b16 %v665, %v665
        %667 = vrot.lane.b32.xlu0 %v666, 120
        %v668 = vpop.permute.xlu0 %667
        %v670 = vunpack.c.l.b16 %v553
        %v671 = vpack.c.b16 %v670, %v670
        %672 = vrot.lane.b32.xlu0 %v671, 120
        %v673 = vpop.permute.xlu0 %672
        %v675 = vsel %vm555, %v668, 0
        %v678 = vsel %vm555, %v673, 0
        %680 = vmatprep.subr.bf16.mxu0 0
        %681 = vmatpush1.bf16.xpose.msra.mxu0 0
        %682 = vmatprep.subr.bf16.mxu0 0
        %683 = vmatpush1.bf16.xpose.msra.mxu0 0
        %684 = vmatprep.subr.bf16.mxu0 0
        %685 = vmatpush1.bf16.xpose.msra.mxu0 0
        %686 = vmatprep.subr.bf16.mxu0 0
        %687 = vmatpush1.bf16.xpose.msra.mxu0 0
        %688 = vmatprep.subr.bf16.mxu0 0
        %689 = vmatpush1.bf16.xpose.msra.mxu0 0
        %690 = vmatprep.subr.bf16.mxu0 0
        %691 = vmatpush1.bf16.xpose.msra.mxu0 0
        %692 = vmatprep.subr.bf16.mxu0 0
        %693 = vmatpush1.bf16.xpose.msra.mxu0 0
        %694 = vmatprep.subr.bf16.mxu0 0
        %695 = vmatpush1.bf16.xpose.msra.mxu0 %v678
        %696 = vmatprep.subr.bf16.mxu0 0
        %697 = vmatpush2.bf16.xpose.msra.mxu0 0
        %698 = vmatprep.subr.bf16.mxu0 0
        %699 = vmatpush2.bf16.xpose.msra.mxu0 0
        %700 = vmatprep.subr.bf16.mxu0 0
        %701 = vmatpush2.bf16.xpose.msra.mxu0 0
        %702 = vmatprep.subr.bf16.mxu0 0
        %703 = vmatpush2.bf16.xpose.msra.mxu0 0
        %704 = vmatprep.subr.bf16.mxu0 0
        %705 = vmatpush2.bf16.xpose.msra.mxu0 0
        %706 = vmatprep.subr.bf16.mxu0 0
        %707 = vmatpush2.bf16.xpose.msra.mxu0 0
        %708 = vmatprep.subr.bf16.mxu0 0
        %709 = vmatpush2.bf16.xpose.msra.mxu0 0
        %710 = vmatprep.subr.bf16.mxu0 0
        %711 = vmatpush2.bf16.xpose.msra.mxu0 0
        %712 = vmatprep.mubr.bf16.mxu0 0
        %713 = vmatmul.mubr.bf16.gmra.mxu0 %v675
        %v714 = vpop.f32.mrf.mxu0
        %v715 = vadd.f32 0.0, %v714
        %v716 = vpop.f32.mrf.mxu0
        %v717 = vpop.f32.mrf.mxu0
        %v718 = vpop.f32.mrf.mxu0
        %719 = vdwg.mxu0
        %v720 = vsel %vm555, %v715, -inf
        %721 = vmax.xlane.f32.xlu0 %v720
        %v722 = vpop.xlane.xlu0 %721
        %v723 = vsub.f32 %v715, %v722
        %v724 = vmul.f32 %v723, 1.442695
        %v725 = vpow.pop %v724
        %v726 = vsel %vm555, %v725, 0.0
        %727 = vadd.xlane.f32.xlu0 %v726
        %v728 = vpop.xlane.xlu0 %727
        %v729 = vrcp.pop %v728
        %v730 = vmul.f32 %v725, %v729
        %v731 = vpack.c.bf16 %v730, %v730
        %v733 = vunpack.c.l.b16 %v554
        %v734 = vpack.c.b16 %v733, %v733
        %735 = vrot.lane.b32.xlu0 %v734, 120
        %v736 = vpop.permute.xlu0 %735
        %v738 = vsel %vm555, %v731, 0
        %v741 = vsel %vm617, %v736, 0
        %743 = vmatprep.subr.bf16.mxu0 0
        %744 = vmatpush1.bf16.msra.mxu0 0
        %745 = vmatprep.subr.bf16.mxu0 0
        %746 = vmatpush1.bf16.msra.mxu0 0
        %747 = vmatprep.subr.bf16.mxu0 0
        %748 = vmatpush1.bf16.msra.mxu0 0
        %749 = vmatprep.subr.bf16.mxu0 0
        %750 = vmatpush1.bf16.msra.mxu0 0
        %751 = vmatprep.subr.bf16.mxu0 0
        %752 = vmatpush1.bf16.msra.mxu0 0
        %753 = vmatprep.subr.bf16.mxu0 0
        %754 = vmatpush1.bf16.msra.mxu0 0
        %755 = vmatprep.subr.bf16.mxu0 0
        %756 = vmatpush1.bf16.msra.mxu0 0
        %757 = vmatprep.subr.bf16.mxu0 0
        %758 = vmatpush1.bf16.msra.mxu0 %v741
        %759 = vmatprep.subr.bf16.mxu0 0
        %760 = vmatpush2.bf16.msra.mxu0 0
        %761 = vmatprep.subr.bf16.mxu0 0
        %762 = vmatpush2.bf16.msra.mxu0 0
        %763 = vmatprep.subr.bf16.mxu0 0
        %764 = vmatpush2.bf16.msra.mxu0 0
        %765 = vmatprep.subr.bf16.mxu0 0
        %766 = vmatpush2.bf16.msra.mxu0 0
        %767 = vmatprep.subr.bf16.mxu0 0
        %768 = vmatpush2.bf16.msra.mxu0 0
        %769 = vmatprep.subr.bf16.mxu0 0
        %770 = vmatpush2.bf16.msra.mxu0 0
        %771 = vmatprep.subr.bf16.mxu0 0
        %772 = vmatpush2.bf16.msra.mxu0 0
        %773 = vmatprep.subr.bf16.mxu0 0
        %774 = vmatpush2.bf16.msra.mxu0 0
        %775 = vmatprep.mubr.bf16.mxu0 0
        %776 = vmatmul.mubr.bf16.gmra.mxu0 %v738
        %v777 = vpop.f32.mrf.mxu0
        %v778 = vadd.f32 0.0, %v777
        %v779 = vpop.f32.mrf.mxu0
        %v780 = vpop.f32.mrf.mxu0
        %v781 = vpop.f32.mrf.mxu0
        %782 = vdwg.mxu0
        %v783 = vpack.c.bf16 %v778, %v778
        %v785 = vunpack.c.l.b16 %v783
        %v786 = vpack.c.b16 %v785, %v785
        %787 = vrot.lane.b32.xlu0 %v786, 8
        %v788 = vpop.permute.xlu0 %787
        %vm790 = vcmask 126016
        %791 = vst.msk [vmem:[#allocation2] sm:$0xf] %vm790, %v788
        %792 = vrot.lane.b32.xlu0 %v666, 112
        %v793 = vpop.permute.xlu0 %792
        %794 = vrot.lane.b32.xlu0 %v671, 112
        %v795 = vpop.permute.xlu0 %794
        %v797 = vsel %vm555, %v793, 0
        %v800 = vsel %vm555, %v795, 0
        %802 = vmatprep.subr.bf16.mxu0 0
        %803 = vmatpush1.bf16.xpose.msra.mxu0 0
        %804 = vmatprep.subr.bf16.mxu0 0
        %805 = vmatpush1.bf16.xpose.msra.mxu0 0
        %806 = vmatprep.subr.bf16.mxu0 0
        %807 = vmatpush1.bf16.xpose.msra.mxu0 0
        %808 = vmatprep.subr.bf16.mxu0 0
        %809 = vmatpush1.bf16.xpose.msra.mxu0 0
        %810 = vmatprep.subr.bf16.mxu0 0
        %811 = vmatpush1.bf16.xpose.msra.mxu0 0
        %812 = vmatprep.subr.bf16.mxu0 0
        %813 = vmatpush1.bf16.xpose.msra.mxu0 0
        %814 = vmatprep.subr.bf16.mxu0 0
        %815 = vmatpush1.bf16.xpose.msra.mxu0 0
        %816 = vmatprep.subr.bf16.mxu0 0
        %817 = vmatpush1.bf16.xpose.msra.mxu0 %v800
        %818 = vmatprep.subr.bf16.mxu0 0
        %819 = vmatpush2.bf16.xpose.msra.mxu0 0
        %820 = vmatprep.subr.bf16.mxu0 0
        %821 = vmatpush2.bf16.xpose.msra.mxu0 0
        %822 = vmatprep.subr.bf16.mxu0 0
        %823 = vmatpush2.bf16.xpose.msra.mxu0 0
        %824 = vmatprep.subr.bf16.mxu0 0
        %825 = vmatpush2.bf16.xpose.msra.mxu0 0
        %826 = vmatprep.subr.bf16.mxu0 0
        %827 = vmatpush2.bf16.xpose.msra.mxu0 0
        %828 = vmatprep.subr.bf16.mxu0 0
        %829 = vmatpush2.bf16.xpose.msra.mxu0 0
        %830 = vmatprep.subr.bf16.mxu0 0
        %831 = vmatpush2.bf16.xpose.msra.mxu0 0
        %832 = vmatprep.subr.bf16.mxu0 0
        %833 = vmatpush2.bf16.xpose.msra.mxu0 0
        %834 = vmatprep.mubr.bf16.mxu0 0
        %835 = vmatmul.mubr.bf16.gmra.mxu0 %v797
        %v836 = vpop.f32.mrf.mxu0
        %v837 = vadd.f32 0.0, %v836
        %v838 = vpop.f32.mrf.mxu0
        %v839 = vpop.f32.mrf.mxu0
        %v840 = vpop.f32.mrf.mxu0
        %841 = vdwg.mxu0
        %v842 = vsel %vm555, %v837, -inf
        %843 = vmax.xlane.f32.xlu0 %v842
        %v844 = vpop.xlane.xlu0 %843
        %v845 = vsub.f32 %v837, %v844
        %v846 = vmul.f32 %v845, 1.442695
        %v847 = vpow.pop %v846
        %v848 = vsel %vm555, %v847, 0.0
        %849 = vadd.xlane.f32.xlu0 %v848
        %v850 = vpop.xlane.xlu0 %849
        %v851 = vrcp.pop %v850
        %v852 = vmul.f32 %v847, %v851
        %v853 = vpack.c.bf16 %v852, %v852
        %854 = vrot.lane.b32.xlu0 %v734, 112
        %v855 = vpop.permute.xlu0 %854
        %v857 = vsel %vm555, %v853, 0
        %v860 = vsel %vm617, %v855, 0
        %862 = vmatprep.subr.bf16.mxu0 0
        %863 = vmatpush1.bf16.msra.mxu0 0
        %864 = vmatprep.subr.bf16.mxu0 0
        %865 = vmatpush1.bf16.msra.mxu0 0
        %866 = vmatprep.subr.bf16.mxu0 0
        %867 = vmatpush1.bf16.msra.mxu0 0
        %868 = vmatprep.subr.bf16.mxu0 0
        %869 = vmatpush1.bf16.msra.mxu0 0
        %870 = vmatprep.subr.bf16.mxu0 0
        %871 = vmatpush1.bf16.msra.mxu0 0
        %872 = vmatprep.subr.bf16.mxu0 0
        %873 = vmatpush1.bf16.msra.mxu0 0
        %874 = vmatprep.subr.bf16.mxu0 0
        %875 = vmatpush1.bf16.msra.mxu0 0
        %876 = vmatprep.subr.bf16.mxu0 0
        %877 = vmatpush1.bf16.msra.mxu0 %v860
        %878 = vmatprep.subr.bf16.mxu0 0
        %879 = vmatpush2.bf16.msra.mxu0 0
        %880 = vmatprep.subr.bf16.mxu0 0
        %881 = vmatpush2.bf16.msra.mxu0 0
        %882 = vmatprep.subr.bf16.mxu0 0
        %883 = vmatpush2.bf16.msra.mxu0 0
        %884 = vmatprep.subr.bf16.mxu0 0
        %885 = vmatpush2.bf16.msra.mxu0 0
        %886 = vmatprep.subr.bf16.mxu0 0
        %887 = vmatpush2.bf16.msra.mxu0 0
        %888 = vmatprep.subr.bf16.mxu0 0
        %889 = vmatpush2.bf16.msra.mxu0 0
        %890 = vmatprep.subr.bf16.mxu0 0
        %891 = vmatpush2.bf16.msra.mxu0 0
        %892 = vmatprep.subr.bf16.mxu0 0
        %893 = vmatpush2.bf16.msra.mxu0 0
        %894 = vmatprep.mubr.bf16.mxu0 0
        %895 = vmatmul.mubr.bf16.gmra.mxu0 %v857
        %v896 = vpop.f32.mrf.mxu0
        %v897 = vadd.f32 0.0, %v896
        %v898 = vpop.f32.mrf.mxu0
        %v899 = vpop.f32.mrf.mxu0
        %v900 = vpop.f32.mrf.mxu0
        %901 = vdwg.mxu0
        %v902 = vpack.c.bf16 %v897, %v897
        %v904 = vunpack.c.l.b16 %v902
        %v905 = vpack.c.b16 %v904, %v904
        %906 = vrot.lane.b32.xlu0 %v905, 16
        %v907 = vpop.permute.xlu0 %906
        %vm909 = vcmask 191616
        %910 = vst.msk [vmem:[#allocation2] sm:$0xf] %vm909, %v907
        %911 = vrot.lane.b32.xlu0 %v666, 104
        %v912 = vpop.permute.xlu0 %911
        %913 = vrot.lane.b32.xlu0 %v671, 104
        %v914 = vpop.permute.xlu0 %913
        %v916 = vsel %vm555, %v912, 0
        %v919 = vsel %vm555, %v914, 0
        %921 = vmatprep.subr.bf16.mxu0 0
        %922 = vmatpush1.bf16.xpose.msra.mxu0 0
        %923 = vmatprep.subr.bf16.mxu0 0
        %924 = vmatpush1.bf16.xpose.msra.mxu0 0
        %925 = vmatprep.subr.bf16.mxu0 0
        %926 = vmatpush1.bf16.xpose.msra.mxu0 0
        %927 = vmatprep.subr.bf16.mxu0 0
        %928 = vmatpush1.bf16.xpose.msra.mxu0 0
        %929 = vmatprep.subr.bf16.mxu0 0
        %930 = vmatpush1.bf16.xpose.msra.mxu0 0
        %931 = vmatprep.subr.bf16.mxu0 0
        %932 = vmatpush1.bf16.xpose.msra.mxu0 0
        %933 = vmatprep.subr.bf16.mxu0 0
        %934 = vmatpush1.bf16.xpose.msra.mxu0 0
        %935 = vmatprep.subr.bf16.mxu0 0
        %936 = vmatpush1.bf16.xpose.msra.mxu0 %v919
        %937 = vmatprep.subr.bf16.mxu0 0
        %938 = vmatpush2.bf16.xpose.msra.mxu0 0
        %939 = vmatprep.subr.bf16.mxu0 0
        %940 = vmatpush2.bf16.xpose.msra.mxu0 0
        %941 = vmatprep.subr.bf16.mxu0 0
        %942 = vmatpush2.bf16.xpose.msra.mxu0 0
        %943 = vmatprep.subr.bf16.mxu0 0
        %944 = vmatpush2.bf16.xpose.msra.mxu0 0
        %945 = vmatprep.subr.bf16.mxu0 0
        %946 = vmatpush2.bf16.xpose.msra.mxu0 0
        %947 = vmatprep.subr.bf16.mxu0 0
        %948 = vmatpush2.bf16.xpose.msra.mxu0 0
        %949 = vmatprep.subr.bf16.mxu0 0
        %950 = vmatpush2.bf16.xpose.msra.mxu0 0
        %951 = vmatprep.subr.bf16.mxu0 0
        %952 = vmatpush2.bf16.xpose.msra.mxu0 0
        %953 = vmatprep.mubr.bf16.mxu0 0
        %954 = vmatmul.mubr.bf16.gmra.mxu0 %v916
        %v955 = vpop.f32.mrf.mxu0
        %v956 = vadd.f32 0.0, %v955
        %v957 = vpop.f32.mrf.mxu0
        %v958 = vpop.f32.mrf.mxu0
        %v959 = vpop.f32.mrf.mxu0
        %960 = vdwg.mxu0
        %v961 = vsel %vm555, %v956, -inf
        %962 = vmax.xlane.f32.xlu0 %v961
        %v963 = vpop.xlane.xlu0 %962
        %v964 = vsub.f32 %v956, %v963
        %v965 = vmul.f32 %v964, 1.442695
        %v966 = vpow.pop %v965
        %v967 = vsel %vm555, %v966, 0.0
        %968 = vadd.xlane.f32.xlu0 %v967
        %v969 = vpop.xlane.xlu0 %968
        %v970 = vrcp.pop %v969
        %v971 = vmul.f32 %v966, %v970
        %v972 = vpack.c.bf16 %v971, %v971
        %973 = vrot.lane.b32.xlu0 %v734, 104
        %v974 = vpop.permute.xlu0 %973
        %v976 = vsel %vm555, %v972, 0
        %v979 = vsel %vm617, %v974, 0
        %981 = vmatprep.subr.bf16.mxu0 0
        %982 = vmatpush1.bf16.msra.mxu0 0
        %983 = vmatprep.subr.bf16.mxu0 0
        %984 = vmatpush1.bf16.msra.mxu0 0
        %985 = vmatprep.subr.bf16.mxu0 0
        %986 = vmatpush1.bf16.msra.mxu0 0
        %987 = vmatprep.subr.bf16.mxu0 0
        %988 = vmatpush1.bf16.msra.mxu0 0
        %989 = vmatprep.subr.bf16.mxu0 0
        %990 = vmatpush1.bf16.msra.mxu0 0
        %991 = vmatprep.subr.bf16.mxu0 0
        %992 = vmatpush1.bf16.msra.mxu0 0
        %993 = vmatprep.subr.bf16.mxu0 0
        %994 = vmatpush1.bf16.msra.mxu0 0
        %995 = vmatprep.subr.bf16.mxu0 0
        %996 = vmatpush1.bf16.msra.mxu0 %v979
        %997 = vmatprep.subr.bf16.mxu0 0
        %998 = vmatpush2.bf16.msra.mxu0 0
        %999 = vmatprep.subr.bf16.mxu0 0
        %1000 = vmatpush2.bf16.msra.mxu0 0
        %1001 = vmatprep.subr.bf16.mxu0 0
        %1002 = vmatpush2.bf16.msra.mxu0 0
        %1003 = vmatprep.subr.bf16.mxu0 0
        %1004 = vmatpush2.bf16.msra.mxu0 0
        %1005 = vmatprep.subr.bf16.mxu0 0
        %1006 = vmatpush2.bf16.msra.mxu0 0
        %1007 = vmatprep.subr.bf16.mxu0 0
        %1008 = vmatpush2.bf16.msra.mxu0 0
        %1009 = vmatprep.subr.bf16.mxu0 0
        %1010 = vmatpush2.bf16.msra.mxu0 0
        %1011 = vmatprep.subr.bf16.mxu0 0
        %1012 = vmatpush2.bf16.msra.mxu0 0
        %1013 = vmatprep.mubr.bf16.mxu0 0
        %1014 = vmatmul.mubr.bf16.gmra.mxu0 %v976
        %v1015 = vpop.f32.mrf.mxu0
        %v1016 = vadd.f32 0.0, %v1015
        %v1017 = vpop.f32.mrf.mxu0
        %v1018 = vpop.f32.mrf.mxu0
        %v1019 = vpop.f32.mrf.mxu0
        %1020 = vdwg.mxu0
        %v1021 = vpack.c.bf16 %v1016, %v1016
        %v1023 = vunpack.c.l.b16 %v1021
        %v1024 = vpack.c.b16 %v1023, %v1023
        %1025 = vrot.lane.b32.xlu0 %v1024, 24
        %v1026 = vpop.permute.xlu0 %1025
        %vm1028 = vcmask 257216
        %1029 = vst.msk [vmem:[#allocation2] sm:$0xf] %vm1028, %v1026
        %v1030 = vld [vmem:[#allocation2] sm:$0xf]
        %v1031 = vld [vmem:[%s4] sm:$0xf]
        %v1032 = vld [vmem:[%s4 + $0x4] sm:$0xf]
        %v1033 = vld [vmem:[%s4 + $0x8] sm:$0xf]
        %v1034 = vld [vmem:[%s4 + $0xc] sm:$0xf]
        %v1035 = vld [vmem:[%s5] sm:$0x1]
        %v1037 = vlaneseq
        %v1038 = vshrl.u32 %v1037, 7
        %v1039 = vsub.s32 0, %v1038
        %v1040 = vrot.slane %v1035, %v1039
        %v1046 = vunpack.c.l.b16 %v1031
        %v1047 = vunpack.c.l.b16 %v1032
        %v1048 = vunpack.c.l.b16 %v1033
        %v1049 = vunpack.c.l.b16 %v1034
        %v1050 = vpack.c.b16 %v1047, %v1046
        %v1051 = vpack.c.b16 %v1049, %v1048
        %vm1054 = vcmask 261120
        %v1056 = vsel %vm1054, %v1030, 0
        %1058 = vmatprep.subr.bf16.mxu0 0
        %1059 = vmatpush1.bf16.msra.mxu0 0
        %1060 = vmatprep.subr.bf16.mxu0 0
        %1061 = vmatpush1.bf16.msra.mxu0 0
        %1062 = vmatprep.subr.bf16.mxu0 0
        %1063 = vmatpush1.bf16.msra.mxu0 0
        %1064 = vmatprep.subr.bf16.mxu0 0
        %1065 = vmatpush1.bf16.msra.mxu0 0
        %1066 = vmatprep.subr.bf16.mxu0 0
        %1067 = vmatpush1.bf16.msra.mxu0 0
        %1068 = vmatprep.subr.bf16.mxu0 0
        %1069 = vmatpush1.bf16.msra.mxu0 0
        %1070 = vmatprep.subr.bf16.mxu0 0
        %1071 = vmatpush1.bf16.msra.mxu0 %v1051
        %1072 = vmatprep.subr.bf16.mxu0 0
        %1073 = vmatpush1.bf16.msra.mxu0 %v1050
        %1074 = vmatprep.subr.bf16.mxu0 0
        %1075 = vmatpush2.bf16.msra.mxu0 0
        %1076 = vmatprep.subr.bf16.mxu0 0
        %1077 = vmatpush2.bf16.msra.mxu0 0
        %1078 = vmatprep.subr.bf16.mxu0 0
        %1079 = vmatpush2.bf16.msra.mxu0 0
        %1080 = vmatprep.subr.bf16.mxu0 0
        %1081 = vmatpush2.bf16.msra.mxu0 0
        %1082 = vmatprep.subr.bf16.mxu0 0
        %1083 = vmatpush2.bf16.msra.mxu0 0
        %1084 = vmatprep.subr.bf16.mxu0 0
        %1085 = vmatpush2.bf16.msra.mxu0 0
        %1086 = vmatprep.subr.bf16.mxu0 0
        %1087 = vmatpush2.bf16.msra.mxu0 0
        %1088 = vmatprep.subr.bf16.mxu0 0
        %1089 = vmatpush2.bf16.msra.mxu0 0
        %1090 = vmatprep.mubr.bf16.mxu0 0
        %1091 = vmatmul.mubr.bf16.gmra.mxu0 %v1056
        %v1092 = vpop.f32.mrf.mxu0
        %v1093 = vadd.f32 %v1040, %v1092
        %v1094 = vpop.f32.mrf.mxu0
        %v1095 = vpop.f32.mrf.mxu0
        %v1096 = vpop.f32.mrf.mxu0
        %1097 = vdwg.mxu0
        %v1098 = vadd.f32 %v551, %v1093
        %v1099 = vsel %vm1054, %v1098, 0.0
        %1100 = vadd.xlane.f32.xlu0 %v1099
        %v1101 = vpop.xlane.xlu0 %1100
        %v1102 = vrcp.pop 32.0
        %v1103 = vmul.f32 %v1101, %v1102
        %v1104 = vsub.f32 %v1098, %v1103
        %v1105 = vmul.f32 %v1104, %v1104
        %v1106 = vsel %vm1054, %v1105, 0.0
        %1107 = vadd.xlane.f32.xlu0 %v1106
        %v1108 = vpop.xlane.xlu0 %1107
        %v1109 = vmul.f32 %v1108, %v1102
        %v1110 = vadd.f32 %v1109, 1e-05
        %v1111 = vrsqrt.pop %v1110
        %v1112 = vmul.f32 %v1104, %v1111
        %v1113 = vld [vmem:[%s6] sm:$0x1]
        %v1115 = vlaneseq
        %v1116 = vshrl.u32 %v1115, 7
        %v1117 = vsub.s32 0, %v1116
        %v1118 = vrot.slane %v1113, %v1117
        %v1120 = vmul.f32 %v1112, %v1118
        %v1121 = vld [vmem:[%s7] sm:$0x1]
        %v1123 = vlaneseq
        %v1124 = vshrl.u32 %v1123, 7
        %v1125 = vsub.s32 0, %v1124
        %v1126 = vrot.slane %v1121, %v1125
        %v1128 = vadd.f32 %v1120, %v1126
        %v1129 = vpack.c.bf16 %v1128, %v1128
        %v1130 = vld [vmem:[%s8] sm:$0xf]
        %v1131 = vld [vmem:[%s8 + $0x4] sm:$0xf]
        %v1132 = vld [vmem:[%s8 + $0x8] sm:$0xf]
        %v1133 = vld [vmem:[%s8 + $0xc] sm:$0xf]
        %v1134 = vld [vmem:[%s9] sm:$0x1]
        %v1136 = vlaneseq
        %v1137 = vshrl.u32 %v1136, 7
        %v1138 = vsub.s32 0, %v1137
        %v1139 = vrot.slane %v1134, %v1138
        %v1145 = vunpack.c.l.b16 %v1130
        %v1146 = vunpack.c.l.b16 %v1131
        %v1147 = vunpack.c.l.b16 %v1132
        %v1148 = vunpack.c.l.b16 %v1133
        %v1149 = vpack.c.b16 %v1146, %v1145
        %v1150 = vpack.c.b16 %v1148, %v1147
        %v1154 = vsel %vm1054, %v1129, 0
        %1156 = vmatprep.subr.bf16.mxu0 0
        %1157 = vmatpush1.bf16.msra.mxu0 0
        %1158 = vmatprep.subr.bf16.mxu0 0
        %1159 = vmatpush1.bf16.msra.mxu0 0
        %1160 = vmatprep.subr.bf16.mxu0 0
        %1161 = vmatpush1.bf16.msra.mxu0 0
        %1162 = vmatprep.subr.bf16.mxu0 0
        %1163 = vmatpush1.bf16.msra.mxu0 0
        %1164 = vmatprep.subr.bf16.mxu0 0
        %1165 = vmatpush1.bf16.msra.mxu0 0
        %1166 = vmatprep.subr.bf16.mxu0 0
        %1167 = vmatpush1.bf16.msra.mxu0 0
        %1168 = vmatprep.subr.bf16.mxu0 0
        %1169 = vmatpush1.bf16.msra.mxu0 %v1150
        %1170 = vmatprep.subr.bf16.mxu0 0
        %1171 = vmatpush1.bf16.msra.mxu0 %v1149
        %1172 = vmatprep.subr.bf16.mxu0 0
        %1173 = vmatpush2.bf16.msra.mxu0 0
        %1174 = vmatprep.subr.bf16.mxu0 0
        %1175 = vmatpush2.bf16.msra.mxu0 0
        %1176 = vmatprep.subr.bf16.mxu0 0
        %1177 = vmatpush2.bf16.msra.mxu0 0
        %1178 = vmatprep.subr.bf16.mxu0 0
        %1179 = vmatpush2.bf16.msra.mxu0 0
        %1180 = vmatprep.subr.bf16.mxu0 0
        %1181 = vmatpush2.bf16.msra.mxu0 0
        %1182 = vmatprep.subr.bf16.mxu0 0
        %1183 = vmatpush2.bf16.msra.mxu0 0
        %1184 = vmatprep.subr.bf16.mxu0 0
        %1185 = vmatpush2.bf16.msra.mxu0 0
        %1186 = vmatprep.subr.bf16.mxu0 0
        %1187 = vmatpush2.bf16.msra.mxu0 0
        %1188 = vmatprep.mubr.bf16.mxu0 0
        %1189 = vmatmul.mubr.bf16.gmra.mxu0 %v1154
        %v1190 = vpop.f32.mrf.mxu0
        %v1191 = vadd.f32 %v1139, %v1190
        %v1192 = vpop.f32.mrf.mxu0
        %v1193 = vpop.f32.mrf.mxu0
        %v1194 = vpop.f32.mrf.mxu0
        %1195 = vdwg.mxu0
        %v1196 = vmax.f32 %v1191, 0.0
        %v1197 = vpack.c.bf16 %v1196, %v1196
        %v1198 = vld [vmem:[%s10] sm:$0xf]
        %v1199 = vld [vmem:[%s10 + $0x4] sm:$0xf]
        %v1200 = vld [vmem:[%s10 + $0x8] sm:$0xf]
        %v1201 = vld [vmem:[%s10 + $0xc] sm:$0xf]
        %v1202 = vld [vmem:[%s10 + $0x10] sm:$0xf]
        %v1203 = vld [vmem:[%s10 + $0x14] sm:$0xf]
        %v1204 = vld [vmem:[%s10 + $0x18] sm:$0xf]
        %v1205 = vld [vmem:[%s10 + $0x1c] sm:$0xf]
        %v1206 = vld [vmem:[%s10 + $0x20] sm:$0xf]
        %v1207 = vld [vmem:[%s10 + $0x24] sm:$0xf]
        %v1208 = vld [vmem:[%s10 + $0x28] sm:$0xf]
        %v1209 = vld [vmem:[%s10 + $0x2c] sm:$0xf]
        %v1210 = vld [vmem:[%s10 + $0x30] sm:$0xf]
        %v1211 = vld [vmem:[%s10 + $0x34] sm:$0xf]
        %v1212 = vld [vmem:[%s10 + $0x38] sm:$0xf]
        %v1213 = vld [vmem:[%s10 + $0x3c] sm:$0xf]
        %v1214 = vld [vmem:[%s11] sm:$0x1]
        %v1216 = vlaneseq
        %v1217 = vshrl.u32 %v1216, 7
        %v1218 = vsub.s32 0, %v1217
        %v1219 = vrot.slane %v1214, %v1218
        %v1237 = vunpack.c.l.b16 %v1198
        %v1238 = vunpack.c.l.b16 %v1199
        %v1239 = vunpack.c.l.b16 %v1200
        %v1240 = vunpack.c.l.b16 %v1201
        %v1241 = vunpack.c.l.b16 %v1202
        %v1242 = vunpack.c.l.b16 %v1203
        %v1243 = vunpack.c.l.b16 %v1204
        %v1244 = vunpack.c.l.b16 %v1205
        %v1245 = vunpack.c.l.b16 %v1206
        %v1246 = vunpack.c.l.b16 %v1207
        %v1247 = vunpack.c.l.b16 %v1208
        %v1248 = vunpack.c.l.b16 %v1209
        %v1249 = vunpack.c.l.b16 %v1210
        %v1250 = vunpack.c.l.b16 %v1211
        %v1251 = vunpack.c.l.b16 %v1212
        %v1252 = vunpack.c.l.b16 %v1213
        %v1253 = vpack.c.b16 %v1238, %v1237
        %v1254 = vpack.c.b16 %v1240, %v1239
        %v1255 = vpack.c.b16 %v1242, %v1241
        %v1256 = vpack.c.b16 %v1244, %v1243
        %v1257 = vpack.c.b16 %v1246, %v1245
        %v1258 = vpack.c.b16 %v1248, %v1247
        %v1259 = vpack.c.b16 %v1250, %v1249
        %v1260 = vpack.c.b16 %v1252, %v1251
        %1269 = vmatprep.subr.bf16.mxu0 0
        %1270 = vmatpush1.bf16.msra.mxu0 %v1260
        %1271 = vmatprep.subr.bf16.mxu0 0
        %1272 = vmatpush1.bf16.msra.mxu0 %v1259
        %1273 = vmatprep.subr.bf16.mxu0 0
        %1274 = vmatpush1.bf16.msra.mxu0 %v1258
        %1275 = vmatprep.subr.bf16.mxu0 0
        %1276 = vmatpush1.bf16.msra.mxu0 %v1257
        %1277 = vmatprep.subr.bf16.mxu0 0
        %1278 = vmatpush1.bf16.msra.mxu0 %v1256
        %1279 = vmatprep.subr.bf16.mxu0 0
        %1280 = vmatpush1.bf16.msra.mxu0 %v1255
        %1281 = vmatprep.subr.bf16.mxu0 0
        %1282 = vmatpush1.bf16.msra.mxu0 %v1254
        %1283 = vmatprep.subr.bf16.mxu0 0
        %1284 = vmatpush1.bf16.msra.mxu0 %v1253
        %1285 = vmatprep.subr.bf16.mxu0 0
        %1286 = vmatpush2.bf16.msra.mxu0 0
        %1287 = vmatprep.subr.bf16.mxu0 0
        %1288 = vmatpush2.bf16.msra.mxu0 0
        %1289 = vmatprep.subr.bf16.mxu0 0
        %1290 = vmatpush2.bf16.msra.mxu0 0
        %1291 = vmatprep.subr.bf16.mxu0 0
        %1292 = vmatpush2.bf16.msra.mxu0 0
        %1293 = vmatprep.subr.bf16.mxu0 0
        %1294 = vmatpush2.bf16.msra.mxu0 0
        %1295 = vmatprep.subr.bf16.mxu0 0
        %1296 = vmatpush2.bf16.msra.mxu0 0
        %1297 = vmatprep.subr.bf16.mxu0 0
        %1298 = vmatpush2.bf16.msra.mxu0 0
        %1299 = vmatprep.subr.bf16.mxu0 0
        %1300 = vmatpush2.bf16.msra.mxu0 0
        %1301 = vmatprep.mubr.bf16.mxu0 0
        %1302 = vmatmul.mubr.bf16.gmra.mxu0 %v1197
        %v1303 = vpop.f32.mrf.mxu0
        %v1304 = vadd.f32 %v1219, %v1303
        %v1305 = vpop.f32.mrf.mxu0
        %v1306 = vpop.f32.mrf.mxu0
        %v1307 = vpop.f32.mrf.mxu0
        %1308 = vdwg.mxu0
        %v1309 = vadd.f32 %v1128, %v1304
        %v1310 = vsel %vm1054, %v1309, 0.0
        %1311 = vadd.xlane.f32.xlu0 %v1310
        %v1312 = vpop.xlane.xlu0 %1311
        %v1313 = vmul.f32 %v1312, %v1102
        %v1314 = vsub.f32 %v1309, %v1313
        %v1315 = vmul.f32 %v1314, %v1314
        %v1316 = vsel %vm1054, %v1315, 0.0
        %1317 = vadd.xlane.f32.xlu0 %v1316
        %v1318 = vpop.xlane.xlu0 %1317
        %v1319 = vmul.f32 %v1318, %v1102
        %v1320 = vadd.f32 %v1319, 1e-05
        %v1321 = vrsqrt.pop %v1320
        %v1322 = vmul.f32 %v1314, %v1321
        %v1323 = vld [vmem:[%s12] sm:$0x1]
        %v1325 = vlaneseq
        %v1326 = vshrl.u32 %v1325, 7
        %v1327 = vsub.s32 0, %v1326
        %v1328 = vrot.slane %v1323, %v1327
        %v1330 = vmul.f32 %v1322, %v1328
        %v1331 = vld [vmem:[%s13] sm:$0x1]
        %v1333 = vlaneseq
        %v1334 = vshrl.u32 %v1333, 7
        %v1335 = vsub.s32 0, %v1334
        %v1336 = vrot.slane %v1331, %v1335
        %v1338 = vadd.f32 %v1330, %v1336
        %1339 = vst.msk [vmem:[%s527] sm:$0xff] %vm1054, %v1338
        %s1340 = sand.u32 %s368, 1
        %s1341 = scalar_lea.sflag [#allocation4], %s1340
        %s1342 = sand.u32 %s368, 1
        %s1343 = smul.addr %s1342, 8
        %s1344 = scalar_lea.vmem [#allocation3], %s1343
        // Predicated region
        $region77: #{_lambda_.7} parent=75 // pred_check
          %p1345 = pneg %p378
        $region78: #{_lambda_.7} parent=75 // pred_check_branch
          %1347 = sbr.rel (%p1345) target = $region80
        $region79: #{_lambda_.7} parent=75 // pred_region
          %s1349 = ssub.s32 128, 128
          %1350 = vsyncadd %s1341, %s1349
          %s1351 = sadd.s32 %s33, %s32
          %s1352 = smul.addr %s1351, 128
          %s1353 = scalar_lea.hbm %s14, %s1352
          %s1355 = sshll.u32 %s1344, 4
          %s1356 = int_to_ptr.vmem [resolvable:$true] %s1355
          %1358 = dma.vmem_to_hbm [thread:$0]  %s1356, 128, %s1353, %s1341
        $region80: #{_lambda_.7} parent=75 // pred_fallthru
          _
      $region76: #{_lambda_.7} parent=5 // pred_fallthru
        _
      %p1359 = scmp.le.s32.totalorder 2, %s23
      // Predicated region
      $region81: #{_lambda_.7} parent=5 // pred_check
        %p1360 = pneg %p1359
      $region82: #{_lambda_.7} parent=5 // pred_check_branch
        %1362 = sbr.rel (%p1360) target = $region84
      $region83: #{_lambda_.7} parent=5 // pred_region
        %s1363 = ssub.s32 %s23, 2
        // Predicated region
        $region85: #{_lambda_.7} parent=83 // pred_check
          %p1364 = pneg %p384
        $region86: #{_lambda_.7} parent=83 // pred_check_branch
          %1366 = sbr.rel (%p1364) target = $region88
        $region87: #{_lambda_.7} parent=83 // pred_region
          %s1367 = sand.u32 %s369, 1
          %s1368 = scalar_lea.sflag [#allocation4], %s1367
          %s1369 = sand.u32 %s369, 1
          %s1370 = smul.addr %s1369, 8
          %s1371 = scalar_lea.vmem [#allocation3], %s1370
          %1372 = dma.done %s1368, 128
        $region88: #{_lambda_.7} parent=83 // pred_fallthru
          _
      $region84: #{_lambda_.7} parent=5 // pred_fallthru
        _
    $region6: #{_lambda_.7} parent=1 // loop_footer
      %s27 = sadd.s32 1, %s23
    $region7: #{_lambda_.7} parent=1 // loop_footer_branch
      %22 = sbr.rel target = $region3
    $region8: #{_lambda_.7} parent=1 // loop_exit
      _
    %1373 = vsyncpa [#allocation4], 1
    %s1374 = scalar_lea.sflag [#allocation4], 1
    %1375 = vsyncpa %s1374, 1

</llo_original>
